<compile_context>
chip_gen: v6e
topology: v6e:2x2x1
jax: 0.10.0
libtpu: 0.0.40
codegen_flags: <defaults>
</compile_context>

<pallas_src>
import functools

import jax
import jax.numpy as jnp
import numpy as np
from jax.experimental import pallas as pl
from jax.experimental.pallas import tpu as pltpu

EPS = 1e-5
LANES = 128


def _round_up(x, m):
    return (x + m - 1) // m * m


def _pick_tile_h(h, max_th=64):
    if h <= max_th:
        return h
    for th in range(max_th, 0, -1):
        if h % th == 0:
            return th
    return h


# --------------------------------------------------------------------------- #
# In-kernel helpers
# --------------------------------------------------------------------------- #
def _conv3x3_dy_grouped(xp, w_ref, th, w):
    """3x3 conv on a row-haloed, width-padded tile.

    xp    : (TH+2, W+2, C)  bf16 activations (1-px zero halo already applied)
    w_ref : (3, 3*C, Co)    bf16 packed weights, w_ref[dy] = [w(dy,0)|w(dy,1)|w(dy,2)]
    returns (TH*W, Co) f32 accumulator.
    """
    c = xp.shape[-1]
    co = w_ref.shape[-1]
    acc = jnp.zeros((th * w, co), jnp.float32)
    for dy in range(3):                               # unrolled at trace time
        rows = xp[dy:dy + th]                         # (TH, W+2, C) leading-dim slice
        patch = jnp.concatenate(
            [rows[:, 0:w], rows[:, 1:w + 1], rows[:, 2:w + 2]], axis=-1)
        acc = acc + jnp.dot(patch.reshape(th * w, 3 * c), w_ref[dy],
                            preferred_element_type=jnp.float32)
    return acc


def _write_out_and_stats(acc, y_ref, s_ref):
    """Store bf16 conv output + per-tile [sum, centered M2] f32 stats."""
    cnt = acc.shape[0]
    tsum = jnp.sum(acc, axis=0, keepdims=True)                 # (1, Co)
    centered = acc - tsum / cnt
    tm2 = jnp.sum(centered * centered, axis=0, keepdims=True)  # (1, Co)
    s_ref[...] = jnp.concatenate([tsum, tm2], axis=0).reshape(s_ref.shape)
    y_ref[...] = acc.reshape(y_ref.shape).astype(y_ref.dtype)


# --------------------------------------------------------------------------- #
# Kernels
# --------------------------------------------------------------------------- #
def _conv1_stats_kernel(xw_ref, w_ref, y_ref, s_ref):
    # xw_ref: (1, 1, TH+2, W+2, Cin) bf16 zero-halo'd input row window
    _, _, thp2, wp2, _ = xw_ref.shape
    th, w = thp2 - 2, wp2 - 2
    acc = _conv3x3_dy_grouped(xw_ref[0, 0], w_ref, th, w)
    _write_out_and_stats(acc, y_ref, s_ref)


def _bn1_relu_conv2_stats_kernel(yw_ref, sc_ref, sh_ref, w_ref, y_ref, s_ref):
    # yw_ref: (1, 1, TH+2, W+2, C1p) bf16 raw conv1 output window (zero halo)
    # sc/sh : (1, C1p) f32 folded BN1 scale/shift
    _, _, thp2, wp2, _ = yw_ref.shape
    th, w = thp2 - 2, wp2 - 2
    t = pl.program_id(1)
    n_t = pl.num_programs(1)

    h = jnp.maximum(
        yw_ref[0, 0].astype(jnp.float32) * sc_ref[...] + sh_ref[...], 0.0)

    # Halo pixels that are *image border* padding were stored as raw zeros; after
    # the BN affine they would become relu(shift) != 0, so mask them back to 0.
    row = jax.lax.broadcasted_iota(jnp.int32, (thp2, wp2, 1), 0)
    col = jax.lax.broadcasted_iota(jnp.int32, (thp2, wp2, 1), 1)
    pad = ((col == 0) | (col == wp2 - 1)
           | ((row == 0) & (t == 0))
           | ((row == thp2 - 1) & (t == n_t - 1)))
    h = jnp.where(pad, 0.0, h).astype(jnp.bfloat16)

    acc = _conv3x3_dy_grouped(h, w_ref, th, w)
    _write_out_and_stats(acc, y_ref, s_ref)


# --------------------------------------------------------------------------- #
# Wrapper
# --------------------------------------------------------------------------- #
def _pack_w(w_oihw, ci_pad, co_pad):
    # OIHW -> (3, 3*ci_pad, co_pad) bf16; group dy rows ordered [dx0 | dx1 | dx2] x ci.
    o, i, _, _ = w_oihw.shape
    wt = jnp.transpose(w_oihw, (2, 3, 1, 0))        # (dy, dx, ci, co)
    wt = jnp.pad(wt, ((0, 0), (0, 0), (0, ci_pad - i), (0, co_pad - o)))
    return wt.reshape(3, 3 * ci_pad, co_pad).astype(jnp.bfloat16)


def _halo_row_windows(a, th, n_h):
    # (N, H, W, C) -> (N, nH, TH+2, W+2, C): 1-px zero halo + overlapping row windows.
    # TODO(synk): switch to element-offset (halo) BlockSpec indexing to avoid the
    # small duplicated-halo-row HBM copy once that indexing mode is used.
    ap = jnp.pad(a, ((0, 0), (1, 1), (1, 1), (0, 0)))
    return jnp.stack([ap[:, t * th:t * th + th + 2] for t in range(n_h)], axis=1)


def _bn_fold(stats, gamma, beta, cnt):
    # stats: (N, nH, 2, C) f32 per-tile [sum, centered M2]; Chan parallel combine.
    c = stats.shape[-1]
    s = stats.reshape(-1, 2, c)
    sums, m2s = s[:, 0, :], s[:, 1, :]
    total = s.shape[0] * cnt
    mean = jnp.sum(sums, axis=0) / total
    tile_mean = sums / cnt
    m2 = jnp.sum(m2s, axis=0) + cnt * jnp.sum((tile_mean - mean) ** 2, axis=0)
    var = m2 / total                                # biased (training-mode) variance
    scale = gamma * jax.lax.rsqrt(var + EPS)
    shift = beta - mean * scale
    return scale.reshape(1, -1), shift.reshape(1, -1)


def double_conv(x_nchw, w1_oihw, g1, b1, w2_oihw, g2, b2, *, tile_h=None):
    """PyTorch-semantics DoubleConv forward (training-mode BN). NCHW in / NCHW out."""
    n, cin, h, w = x_nchw.shape
    c1, c2 = w1_oihw.shape[0], w2_oihw.shape[0]
    c1p, c2p = _round_up(c1, LANES), _round_up(c2, LANES)

    th = _pick_tile_h(h) if tile_h is None else tile_h
    assert h % th == 0, "tile_h must divide H"
    n_h = h // th

    cparams = pltpu.CompilerParams(
        dimension_semantics=("parallel", "parallel"),
    )

    # ---- layout glue (plain XLA): NHWC, bf16 activations, halo'd row windows ----
    x = jnp.transpose(x_nchw, (0, 2, 3, 1)).astype(jnp.bfloat16)
    xw = _halo_row_windows(x, th, n_h)              # (N, nH, TH+2, W+2, Cin)
    w1p = _pack_w(w1_oihw, cin, c1p)                # K = 3*Cin per dy group (no 128-pad on Cin)
    w2p = _pack_w(w2_oihw, c1p, c2p)                # K = 3*C1p per dy group
    g1p = jnp.pad(g1.astype(jnp.float32), (0, c1p - c1))
    b1p = jnp.pad(b1.astype(jnp.float32), (0, c1p - c1))
    g2p = jnp.pad(g2.astype(jnp.float32), (0, c2p - c2))
    b2p = jnp.pad(b2.astype(jnp.float32), (0, c2p - c2))

    # ---- pass 1: conv1 + per-tile BN1 stats ----
    y1, s1 = pl.pallas_call(
        _conv1_stats_kernel,
        grid=(n, n_h),
        in_specs=[
            pl.BlockSpec((1, 1, th + 2, w + 2, cin), lambda i, t: (i, t, 0, 0, 0)),
            pl.BlockSpec((3, 3 * cin, c1p), lambda i, t: (0, 0, 0)),
        ],
        out_specs=(
            pl.BlockSpec((1, th, w, c1p), lambda i, t: (i, t, 0, 0)),
            pl.BlockSpec((1, 1, 2, c1p), lambda i, t: (i, t, 0, 0)),
        ),
        out_shape=(
            jax.ShapeDtypeStruct((n, h, w, c1p), jnp.bfloat16),
            jax.ShapeDtypeStruct((n, n_h, 2, c1p), jnp.float32),
        ),
        compiler_params=cparams,
    )(xw, w1p)

    sc1, sh1 = _bn_fold(s1, g1p, b1p, th * w)

    # ---- pass 2: BN1 + ReLU + conv2 + per-tile BN2 stats ----
    y1w = _halo_row_windows(y1, th, n_h)            # (N, nH, TH+2, W+2, C1p) bf16
    y2, s2 = pl.pallas_call(
        _bn1_relu_conv2_stats_kernel,
        grid=(n, n_h),
        in_specs=[
            pl.BlockSpec((1, 1, th + 2, w + 2, c1p), lambda i, t: (i, t, 0, 0, 0)),
            pl.BlockSpec((1, c1p), lambda i, t: (0, 0)),
            pl.BlockSpec((1, c1p), lambda i, t: (0, 0)),
            pl.BlockSpec((3, 3 * c1p, c2p), lambda i, t: (0, 0, 0)),
        ],
        out_specs=(
            pl.BlockSpec((1, th, w, c2p), lambda i, t: (i, t, 0, 0)),
            pl.BlockSpec((1, 1, 2, c2p), lambda i, t: (i, t, 0, 0)),
        ),
        out_shape=(
            jax.ShapeDtypeStruct((n, h, w, c2p), jnp.bfloat16),
            jax.ShapeDtypeStruct((n, n_h, 2, c2p), jnp.float32),
        ),
        compiler_params=cparams,
    )(y1w, sc1, sh1, w2p)

    sc2, sh2 = _bn_fold(s2, g2p, b2p, th * w)

    # ---- epilogue (plain fused XLA): BN2 + ReLU + channel slice + NCHW ----
    out = jnp.maximum(
        y2[..., :c2].astype(jnp.float32) * sc2[0, :c2] + sh2[0, :c2], 0.0)
    # TODO(synk): BatchNorm running_mean/running_var momentum updates are training
    # state bookkeeping that does not affect the forward output; omitted.
    return jnp.transpose(out, (0, 3, 1, 2))


# --------------------------------------------------------------------------- #
# Reference + test
# --------------------------------------------------------------------------- #
def _reference(x, w1, g1, b1, w2, g2, b2):
    """Plain-JAX f32 reference matching PyTorch training-mode forward."""
    def conv(x, w):
        return jax.lax.conv_general_dilated(
            x, w, window_strides=(1, 1), padding=((1, 1), (1, 1)),
            dimension_numbers=("NCHW", "OIHW", "NCHW"),
            precision=jax.lax.Precision.HIGHEST)

    def bn_relu(y, g, b):
        m = jnp.mean(y, axis=(0, 2, 3), keepdims=True)
        v = jnp.mean((y - m) ** 2, axis=(0, 2, 3), keepdims=True)
        yn = (y - m) * jax.lax.rsqrt(v + EPS)
        yn = yn * g.reshape(1, -1, 1, 1) + b.reshape(1, -1, 1, 1)
        return jnp.maximum(yn, 0.0)

    hmid = bn_relu(conv(x, w1), g1, b1)
    return bn_relu(conv(hmid, w2), g2, b2)


if __name__ == "__main__":
    N, Cin, H, W = 2, 4, 16, 16
    Cout = 8

    key = jax.random.PRNGKey(0)
    kx, kw1, kw2, kg1, kb1, kg2, kb2 = jax.random.split(key, 7)

    x = jax.random.normal(kx, (N, Cin, H, W), jnp.float32)
    # Conv2d weights are OIHW, bias=False
    w1 = jax.random.normal(kw1, (Cout, Cin, 3, 3), jnp.float32) * 0.1
    w2 = jax.random.normal(kw2, (Cout, Cout, 3, 3), jnp.float32) * 0.1
    g1 = 1.0 + 0.1 * jax.random.normal(kg1, (Cout,), jnp.float32)
    b1 = 0.1 * jax.random.normal(kb1, (Cout,), jnp.float32)
    g2 = 1.0 + 0.1 * jax.random.normal(kg2, (Cout,), jnp.float32)
    b2 = 0.1 * jax.random.normal(kb2, (Cout,), jnp.float32)

    # tile_h=8 -> grid (N, 2): exercises the row-tiling / halo path.
    run = jax.jit(functools.partial(double_conv, tile_h=8))
    out = jax.block_until_ready(run(x, w1, g1, b1, w2, g2, b2))

    ref = jax.block_until_ready(_reference(x, w1, g1, b1, w2, g2, b2))
    # tolerance accounts for bf16 MXU operands / bf16 intermediates (f32 accumulation
    # and f32 BN statistics) vs the full-f32 reference.
    np.testing.assert_allclose(np.asarray(out), np.asarray(ref),
                               rtol=2e-2, atol=3e-2)
    assert out.shape == (N, Cout, H, W)

    print("KERNEL_OK")
</pallas_src>

<mosaic_0001>
module attributes {stable_mosaic.version = 11 : i64} {
  func.func @_conv1_stats_kernel(%arg0: i32, %arg1: i32, %arg2: memref<1x1x10x18x4xbf16, #tpu.memory_space<vmem>>, %arg3: memref<3x12x128xbf16, #tpu.memory_space<vmem>>, %arg4: memref<1x8x16x128xbf16, #tpu.memory_space<vmem>>, %arg5: memref<1x1x2x128xf32, #tpu.memory_space<vmem>>) attributes {dimension_semantics = [#tpu.dimension_semantics<parallel>, #tpu.dimension_semantics<parallel>], iteration_bounds = array<i64: 2, 2>, scalar_prefetch = 0 : i64, scratch_operands = 0 : i64, tpu.core_type = #tpu.core_type<tc>, window_params = [{transform_indices = @transform_0, window_bounds = array<i64: 1, 1, 10, 18, 4>}, {pipeline_mode = #tpu.pipeline_mode<synchronous>, transform_indices = @transform_1, window_bounds = array<i64: 3, 12, 128>}, {transform_indices = @transform_2, window_bounds = array<i64: 1, 8, 16, 128>}, {transform_indices = @transform_3, window_bounds = array<i64: 1, 1, 2, 128>}]} {
    %c0 = arith.constant 0 : index
    %c0_0 = arith.constant 0 : index
    %c0_1 = arith.constant 0 : index
    %c0_2 = arith.constant 0 : index
    %c0_3 = arith.constant 0 : index
    %0 = vector.load %arg2[%c0, %c0_0, %c0_1, %c0_2, %c0_3] : memref<1x1x10x18x4xbf16, #tpu.memory_space<vmem>>, vector<1x1x10x18x4xbf16>
    %1 = vector.shape_cast %0 : vector<1x1x10x18x4xbf16> to vector<10x18x4xbf16>
    %cst = arith.constant 0.000000e+00 : f32
    %2 = vector.broadcast %cst : f32 to vector<128x128xf32>
    %3 = vector.extract_strided_slice %1 {offsets = [0, 0, 0], sizes = [8, 18, 4], strides = [1, 1, 1]} : vector<10x18x4xbf16> to vector<8x18x4xbf16>
    %4 = vector.extract_strided_slice %3 {offsets = [0, 0, 0], sizes = [8, 16, 4], strides = [1, 1, 1]} : vector<8x18x4xbf16> to vector<8x16x4xbf16>
    %5 = vector.extract_strided_slice %3 {offsets = [0, 1, 0], sizes = [8, 16, 4], strides = [1, 1, 1]} : vector<8x18x4xbf16> to vector<8x16x4xbf16>
    %6 = vector.extract_strided_slice %3 {offsets = [0, 2, 0], sizes = [8, 16, 4], strides = [1, 1, 1]} : vector<8x18x4xbf16> to vector<8x16x4xbf16>
    %7 = tpu.concatenate %4, %5, %6 in 2 : vector<8x16x4xbf16>, vector<8x16x4xbf16>, vector<8x16x4xbf16> -> vector<8x16x12xbf16>
    %8 = vector.shape_cast %7 : vector<8x16x12xbf16> to vector<128x12xbf16>
    %c0_4 = arith.constant 0 : index
    %c0_5 = arith.constant 0 : index
    %c0_6 = arith.constant 0 : index
    %9 = vector.load %arg3[%c0_4, %c0_5, %c0_6] : memref<3x12x128xbf16, #tpu.memory_space<vmem>>, vector<1x12x128xbf16>
    %10 = vector.shape_cast %9 : vector<1x12x128xbf16> to vector<12x128xbf16>
    %cst_7 = arith.constant dense<0.000000e+00> : vector<128x128xf32>
    %11 = tpu.matmul %8, %10, %cst_7 {dimension_numbers = #tpu.dot_dimension_numbers<[1], [0], [0], [1], [0, 0, 1, 1], [], []>} : vector<128x12xbf16>, vector<12x128xbf16>, vector<128x128xf32> -> vector<128x128xf32>
    %12 = arith.addf %2, %11 : vector<128x128xf32>
    %13 = vector.extract_strided_slice %1 {offsets = [1, 0, 0], sizes = [8, 18, 4], strides = [1, 1, 1]} : vector<10x18x4xbf16> to vector<8x18x4xbf16>
    %14 = vector.extract_strided_slice %13 {offsets = [0, 0, 0], sizes = [8, 16, 4], strides = [1, 1, 1]} : vector<8x18x4xbf16> to vector<8x16x4xbf16>
    %15 = vector.extract_strided_slice %13 {offsets = [0, 1, 0], sizes = [8, 16, 4], strides = [1, 1, 1]} : vector<8x18x4xbf16> to vector<8x16x4xbf16>
    %16 = vector.extract_strided_slice %13 {offsets = [0, 2, 0], sizes = [8, 16, 4], strides = [1, 1, 1]} : vector<8x18x4xbf16> to vector<8x16x4xbf16>
    %17 = tpu.concatenate %14, %15, %16 in 2 : vector<8x16x4xbf16>, vector<8x16x4xbf16>, vector<8x16x4xbf16> -> vector<8x16x12xbf16>
    %18 = vector.shape_cast %17 : vector<8x16x12xbf16> to vector<128x12xbf16>
    %c1 = arith.constant 1 : index
    %c0_8 = arith.constant 0 : index
    %c0_9 = arith.constant 0 : index
    %19 = vector.load %arg3[%c1, %c0_8, %c0_9] : memref<3x12x128xbf16, #tpu.memory_space<vmem>>, vector<1x12x128xbf16>
    %20 = vector.shape_cast %19 : vector<1x12x128xbf16> to vector<12x128xbf16>
    %cst_10 = arith.constant dense<0.000000e+00> : vector<128x128xf32>
    %21 = tpu.matmul %18, %20, %cst_10 {dimension_numbers = #tpu.dot_dimension_numbers<[1], [0], [0], [1], [0, 0, 1, 1], [], []>} : vector<128x12xbf16>, vector<12x128xbf16>, vector<128x128xf32> -> vector<128x128xf32>
    %22 = arith.addf %12, %21 : vector<128x128xf32>
    %23 = vector.extract_strided_slice %1 {offsets = [2, 0, 0], sizes = [8, 18, 4], strides = [1, 1, 1]} : vector<10x18x4xbf16> to vector<8x18x4xbf16>
    %24 = vector.extract_strided_slice %23 {offsets = [0, 0, 0], sizes = [8, 16, 4], strides = [1, 1, 1]} : vector<8x18x4xbf16> to vector<8x16x4xbf16>
    %25 = vector.extract_strided_slice %23 {offsets = [0, 1, 0], sizes = [8, 16, 4], strides = [1, 1, 1]} : vector<8x18x4xbf16> to vector<8x16x4xbf16>
    %26 = vector.extract_strided_slice %23 {offsets = [0, 2, 0], sizes = [8, 16, 4], strides = [1, 1, 1]} : vector<8x18x4xbf16> to vector<8x16x4xbf16>
    %27 = tpu.concatenate %24, %25, %26 in 2 : vector<8x16x4xbf16>, vector<8x16x4xbf16>, vector<8x16x4xbf16> -> vector<8x16x12xbf16>
    %28 = vector.shape_cast %27 : vector<8x16x12xbf16> to vector<128x12xbf16>
    %c2 = arith.constant 2 : index
    %c0_11 = arith.constant 0 : index
    %c0_12 = arith.constant 0 : index
    %29 = vector.load %arg3[%c2, %c0_11, %c0_12] : memref<3x12x128xbf16, #tpu.memory_space<vmem>>, vector<1x12x128xbf16>
    %30 = vector.shape_cast %29 : vector<1x12x128xbf16> to vector<12x128xbf16>
    %cst_13 = arith.constant dense<0.000000e+00> : vector<128x128xf32>
    %31 = tpu.matmul %28, %30, %cst_13 {dimension_numbers = #tpu.dot_dimension_numbers<[1], [0], [0], [1], [0, 0, 1, 1], [], []>} : vector<128x12xbf16>, vector<12x128xbf16>, vector<128x128xf32> -> vector<128x128xf32>
    %32 = arith.addf %22, %31 : vector<128x128xf32>
    %cst_14 = arith.constant dense<0.000000e+00> : vector<128xf32>
    %33 = vector.multi_reduction <add>, %32, %cst_14 [0] : vector<128x128xf32> to vector<128xf32>
    %34 = vector.shape_cast %33 : vector<128xf32> to vector<1x128xf32>
    %cst_15 = arith.constant 1.280000e+02 : f32
    %35 = vector.broadcast %cst_15 : f32 to vector<1x128xf32>
    %36 = arith.divf %34, %35 : vector<1x128xf32>
    %37 = vector.broadcast %36 : vector<1x128xf32> to vector<128x128xf32>
    %38 = arith.subf %32, %37 : vector<128x128xf32>
    %39 = arith.mulf %38, %38 : vector<128x128xf32>
    %cst_16 = arith.constant dense<0.000000e+00> : vector<128xf32>
    %40 = vector.multi_reduction <add>, %39, %cst_16 [0] : vector<128x128xf32> to vector<128xf32>
    %41 = vector.shape_cast %40 : vector<128xf32> to vector<1x128xf32>
    %42 = tpu.concatenate %34, %41 in 0 : vector<1x128xf32>, vector<1x128xf32> -> vector<2x128xf32>
    %43 = vector.shape_cast %42 : vector<2x128xf32> to vector<1x1x2x128xf32>
    %c0_17 = arith.constant 0 : index
    %c0_18 = arith.constant 0 : index
    %c0_19 = arith.constant 0 : index
    %c0_20 = arith.constant 0 : index
    %44 = vector.load %arg5[%c0_17, %c0_18, %c0_19, %c0_20] : memref<1x1x2x128xf32, #tpu.memory_space<vmem>>, vector<1x1x2x128xf32>
    tpu.vector_store %arg5[%c0_17, %c0_18, %c0_19, %c0_20], %43 {strides = array<i32>} : memref<1x1x2x128xf32, #tpu.memory_space<vmem>>, vector<1x1x2x128xf32>,
    %45 = vector.shape_cast %32 : vector<128x128xf32> to vector<1x8x16x128xf32>
    %46 = arith.truncf %45 : vector<1x8x16x128xf32> to vector<1x8x16x128xbf16>
    %c0_21 = arith.constant 0 : index
    %c0_22 = arith.constant 0 : index
    %c0_23 = arith.constant 0 : index
    %c0_24 = arith.constant 0 : index
    %47 = vector.load %arg4[%c0_21, %c0_22, %c0_23, %c0_24] : memref<1x8x16x128xbf16, #tpu.memory_space<vmem>>, vector<1x8x16x128xbf16>
    tpu.vector_store %arg4[%c0_21, %c0_22, %c0_23, %c0_24], %46 {strides = array<i32>} : memref<1x8x16x128xbf16, #tpu.memory_space<vmem>>, vector<1x8x16x128xbf16>,
    return
  }
  func.func @transform_0(%arg0: i32, %arg1: i32) -> (i32, i32, i32, i32, i32) {
    %c0_i32 = arith.constant 0 : i32
    %c0_i32_0 = arith.constant 0 : i32
    %c0_i32_1 = arith.constant 0 : i32
    %c0_i32_2 = arith.constant 0 : i32
    return %arg0, %arg1, %c0_i32, %c0_i32_0, %c0_i32_1 : i32, i32, i32, i32, i32
  }
  func.func @transform_1(%arg0: i32, %arg1: i32) -> (i32, i32, i32) {
    %c0_i32 = arith.constant 0 : i32
    %c0_i32_0 = arith.constant 0 : i32
    %c0_i32_1 = arith.constant 0 : i32
    %c0_i32_2 = arith.constant 0 : i32
    return %c0_i32, %c0_i32_0, %c0_i32_1 : i32, i32, i32
  }
  func.func @transform_2(%arg0: i32, %arg1: i32) -> (i32, i32, i32, i32) {
    %c0_i32 = arith.constant 0 : i32
    %c0_i32_0 = arith.constant 0 : i32
    %c0_i32_1 = arith.constant 0 : i32
    return %arg0, %arg1, %c0_i32, %c0_i32_0 : i32, i32, i32, i32
  }
  func.func @transform_3(%arg0: i32, %arg1: i32) -> (i32, i32, i32, i32) {
    %c0_i32 = arith.constant 0 : i32
    %c0_i32_0 = arith.constant 0 : i32
    %c0_i32_1 = arith.constant 0 : i32
    return %arg0, %arg1, %c0_i32, %c0_i32_0 : i32, i32, i32, i32
  }
}

module attributes {stable_mosaic.version = 11 : i64} {
  func.func @_bn1_relu_conv2_stats_kernel(%arg0: i32, %arg1: i32, %arg2: memref<1x1x10x18x128xbf16, #tpu.memory_space<vmem>>, %arg3: memref<1x128xf32, #tpu.memory_space<vmem>>, %arg4: memref<1x128xf32, #tpu.memory_space<vmem>>, %arg5: memref<3x384x128xbf16, #tpu.memory_space<vmem>>, %arg6: memref<1x8x16x128xbf16, #tpu.memory_space<vmem>>, %arg7: memref<1x1x2x128xf32, #tpu.memory_space<vmem>>) attributes {dimension_semantics = [#tpu.dimension_semantics<parallel>, #tpu.dimension_semantics<parallel>], iteration_bounds = array<i64: 2, 2>, scalar_prefetch = 0 : i64, scratch_operands = 0 : i64, tpu.core_type = #tpu.core_type<tc>, window_params = [{transform_indices = @transform_0, window_bounds = array<i64: 1, 1, 10, 18, 128>}, {pipeline_mode = #tpu.pipeline_mode<synchronous>, transform_indices = @transform_1, window_bounds = array<i64: 1, 128>}, {pipeline_mode = #tpu.pipeline_mode<synchronous>, transform_indices = @transform_2, window_bounds = array<i64: 1, 128>}, {pipeline_mode = #tpu.pipeline_mode<synchronous>, transform_indices = @transform_3, window_bounds = array<i64: 3, 384, 128>}, {transform_indices = @transform_4, window_bounds = array<i64: 1, 8, 16, 128>}, {transform_indices = @transform_5, window_bounds = array<i64: 1, 1, 2, 128>}]} {
    %c0 = arith.constant 0 : index
    %c0_0 = arith.constant 0 : index
    %c0_1 = arith.constant 0 : index
    %c0_2 = arith.constant 0 : index
    %c0_3 = arith.constant 0 : index
    %0 = vector.load %arg2[%c0, %c0_0, %c0_1, %c0_2, %c0_3] : memref<1x1x10x18x128xbf16, #tpu.memory_space<vmem>>, vector<1x1x10x18x128xbf16>
    %1 = vector.shape_cast %0 : vector<1x1x10x18x128xbf16> to vector<10x18x128xbf16>
    %2 = arith.extf %1 : vector<10x18x128xbf16> to vector<10x18x128xf32>
    %c0_4 = arith.constant 0 : index
    %c0_5 = arith.constant 0 : index
    %3 = vector.load %arg3[%c0_4, %c0_5] : memref<1x128xf32, #tpu.memory_space<vmem>>, vector<1x128xf32>
    %4 = vector.shape_cast %3 : vector<1x128xf32> to vector<1x1x128xf32>
    %5 = vector.broadcast %4 : vector<1x1x128xf32> to vector<10x18x128xf32>
    %6 = arith.mulf %2, %5 : vector<10x18x128xf32>
    %c0_6 = arith.constant 0 : index
    %c0_7 = arith.constant 0 : index
    %7 = vector.load %arg4[%c0_6, %c0_7] : memref<1x128xf32, #tpu.memory_space<vmem>>, vector<1x128xf32>
    %8 = vector.shape_cast %7 : vector<1x128xf32> to vector<1x1x128xf32>
    %9 = vector.broadcast %8 : vector<1x1x128xf32> to vector<10x18x128xf32>
    %10 = arith.addf %6, %9 : vector<10x18x128xf32>
    %cst = arith.constant 0.000000e+00 : f32
    %11 = vector.broadcast %cst : f32 to vector<10x18x128xf32>
    %12 = arith.maximumf %10, %11 : vector<10x18x128xf32>
    %13 = tpu.iota {dimensions = array<i32: 0>} : vector<10x18x1xi32>
    %14 = tpu.iota {dimensions = array<i32: 1>} : vector<10x18x1xi32>
    %c0_i32 = arith.constant 0 : i32
    %15 = vector.broadcast %c0_i32 : i32 to vector<10x18x1xi32>
    %16 = arith.cmpi eq, %14, %15 : vector<10x18x1xi32>
    %c17_i32 = arith.constant 17 : i32
    %17 = vector.broadcast %c17_i32 : i32 to vector<10x18x1xi32>
    %18 = arith.cmpi eq, %14, %17 : vector<10x18x1xi32>
    %19 = arith.ori %16, %18 : vector<10x18x1xi1>
    %c0_i32_8 = arith.constant 0 : i32
    %20 = vector.broadcast %c0_i32_8 : i32 to vector<10x18x1xi32>
    %21 = arith.cmpi eq, %13, %20 : vector<10x18x1xi32>
    %c0_i32_9 = arith.constant 0 : i32
    %22 = arith.cmpi eq, %arg1, %c0_i32_9 : i32
    %23 = vector.broadcast %22 : i1 to vector<10x18x1xi1>
    %24 = arith.andi %21, %23 : vector<10x18x1xi1>
    %25 = arith.ori %19, %24 : vector<10x18x1xi1>
    %c9_i32 = arith.constant 9 : i32
    %26 = vector.broadcast %c9_i32 : i32 to vector<10x18x1xi32>
    %27 = arith.cmpi eq, %13, %26 : vector<10x18x1xi32>
    %c1_i32 = arith.constant 1 : i32
    %28 = arith.cmpi eq, %arg1, %c1_i32 : i32
    %29 = vector.broadcast %28 : i1 to vector<10x18x1xi1>
    %30 = arith.andi %27, %29 : vector<10x18x1xi1>
    %31 = arith.ori %25, %30 : vector<10x18x1xi1>
    %cst_10 = arith.constant 0.000000e+00 : f32
    %32 = vector.shape_cast %31 : vector<10x18x1xi1> to vector<10x18x1xi1>
    %33 = vector.broadcast %32 : vector<10x18x1xi1> to vector<10x18x128xi1>
    %34 = vector.broadcast %cst_10 : f32 to vector<10x18x128xf32>
    %35 = arith.select %33, %34, %12 : vector<10x18x128xi1>, vector<10x18x128xf32>
    %36 = arith.truncf %35 : vector<10x18x128xf32> to vector<10x18x128xbf16>
    %cst_11 = arith.constant 0.000000e+00 : f32
    %37 = vector.broadcast %cst_11 : f32 to vector<128x128xf32>
    %38 = vector.extract_strided_slice %36 {offsets = [0, 0, 0], sizes = [8, 18, 128], strides = [1, 1, 1]} : vector<10x18x128xbf16> to vector<8x18x128xbf16>
    %39 = vector.extract_strided_slice %38 {offsets = [0, 0, 0], sizes = [8, 16, 128], strides = [1, 1, 1]} : vector<8x18x128xbf16> to vector<8x16x128xbf16>
    %40 = vector.extract_strided_slice %38 {offsets = [0, 1, 0], sizes = [8, 16, 128], strides = [1, 1, 1]} : vector<8x18x128xbf16> to vector<8x16x128xbf16>
    %41 = vector.extract_strided_slice %38 {offsets = [0, 2, 0], sizes = [8, 16, 128], strides = [1, 1, 1]} : vector<8x18x128xbf16> to vector<8x16x128xbf16>
    %42 = tpu.concatenate %39, %40, %41 in 2 : vector<8x16x128xbf16>, vector<8x16x128xbf16>, vector<8x16x128xbf16> -> vector<8x16x384xbf16>
    %43 = vector.shape_cast %42 : vector<8x16x384xbf16> to vector<128x384xbf16>
    %c0_12 = arith.constant 0 : index
    %c0_13 = arith.constant 0 : index
    %c0_14 = arith.constant 0 : index
    %44 = vector.load %arg5[%c0_12, %c0_13, %c0_14] : memref<3x384x128xbf16, #tpu.memory_space<vmem>>, vector<1x384x128xbf16>
    %45 = vector.shape_cast %44 : vector<1x384x128xbf16> to vector<384x128xbf16>
    %cst_15 = arith.constant dense<0.000000e+00> : vector<128x128xf32>
    %46 = tpu.matmul %43, %45, %cst_15 {dimension_numbers = #tpu.dot_dimension_numbers<[1], [0], [0], [1], [0, 0, 1, 1], [], []>} : vector<128x384xbf16>, vector<384x128xbf16>, vector<128x128xf32> -> vector<128x128xf32>
    %47 = arith.addf %37, %46 : vector<128x128xf32>
    %48 = vector.extract_strided_slice %36 {offsets = [1, 0, 0], sizes = [8, 18, 128], strides = [1, 1, 1]} : vector<10x18x128xbf16> to vector<8x18x128xbf16>
    %49 = vector.extract_strided_slice %48 {offsets = [0, 0, 0], sizes = [8, 16, 128], strides = [1, 1, 1]} : vector<8x18x128xbf16> to vector<8x16x128xbf16>
    %50 = vector.extract_strided_slice %48 {offsets = [0, 1, 0], sizes = [8, 16, 128], strides = [1, 1, 1]} : vector<8x18x128xbf16> to vector<8x16x128xbf16>
    %51 = vector.extract_strided_slice %48 {offsets = [0, 2, 0], sizes = [8, 16, 128], strides = [1, 1, 1]} : vector<8x18x128xbf16> to vector<8x16x128xbf16>
    %52 = tpu.concatenate %49, %50, %51 in 2 : vector<8x16x128xbf16>, vector<8x16x128xbf16>, vector<8x16x128xbf16> -> vector<8x16x384xbf16>
    %53 = vector.shape_cast %52 : vector<8x16x384xbf16> to vector<128x384xbf16>
    %c1 = arith.constant 1 : index
    %c0_16 = arith.constant 0 : index
    %c0_17 = arith.constant 0 : index
    %54 = vector.load %arg5[%c1, %c0_16, %c0_17] : memref<3x384x128xbf16, #tpu.memory_space<vmem>>, vector<1x384x128xbf16>
    %55 = vector.shape_cast %54 : vector<1x384x128xbf16> to vector<384x128xbf16>
    %cst_18 = arith.constant dense<0.000000e+00> : vector<128x128xf32>
    %56 = tpu.matmul %53, %55, %cst_18 {dimension_numbers = #tpu.dot_dimension_numbers<[1], [0], [0], [1], [0, 0, 1, 1], [], []>} : vector<128x384xbf16>, vector<384x128xbf16>, vector<128x128xf32> -> vector<128x128xf32>
    %57 = arith.addf %47, %56 : vector<128x128xf32>
    %58 = vector.extract_strided_slice %36 {offsets = [2, 0, 0], sizes = [8, 18, 128], strides = [1, 1, 1]} : vector<10x18x128xbf16> to vector<8x18x128xbf16>
    %59 = vector.extract_strided_slice %58 {offsets = [0, 0, 0], sizes = [8, 16, 128], strides = [1, 1, 1]} : vector<8x18x128xbf16> to vector<8x16x128xbf16>
    %60 = vector.extract_strided_slice %58 {offsets = [0, 1, 0], sizes = [8, 16, 128], strides = [1, 1, 1]} : vector<8x18x128xbf16> to vector<8x16x128xbf16>
    %61 = vector.extract_strided_slice %58 {offsets = [0, 2, 0], sizes = [8, 16, 128], strides = [1, 1, 1]} : vector<8x18x128xbf16> to vector<8x16x128xbf16>
    %62 = tpu.concatenate %59, %60, %61 in 2 : vector<8x16x128xbf16>, vector<8x16x128xbf16>, vector<8x16x128xbf16> -> vector<8x16x384xbf16>
    %63 = vector.shape_cast %62 : vector<8x16x384xbf16> to vector<128x384xbf16>
    %c2 = arith.constant 2 : index
    %c0_19 = arith.constant 0 : index
    %c0_20 = arith.constant 0 : index
    %64 = vector.load %arg5[%c2, %c0_19, %c0_20] : memref<3x384x128xbf16, #tpu.memory_space<vmem>>, vector<1x384x128xbf16>
    %65 = vector.shape_cast %64 : vector<1x384x128xbf16> to vector<384x128xbf16>
    %cst_21 = arith.constant dense<0.000000e+00> : vector<128x128xf32>
    %66 = tpu.matmul %63, %65, %cst_21 {dimension_numbers = #tpu.dot_dimension_numbers<[1], [0], [0], [1], [0, 0, 1, 1], [], []>} : vector<128x384xbf16>, vector<384x128xbf16>, vector<128x128xf32> -> vector<128x128xf32>
    %67 = arith.addf %57, %66 : vector<128x128xf32>
    %cst_22 = arith.constant dense<0.000000e+00> : vector<128xf32>
    %68 = vector.multi_reduction <add>, %67, %cst_22 [0] : vector<128x128xf32> to vector<128xf32>
    %69 = vector.shape_cast %68 : vector<128xf32> to vector<1x128xf32>
    %cst_23 = arith.constant 1.280000e+02 : f32
    %70 = vector.broadcast %cst_23 : f32 to vector<1x128xf32>
    %71 = arith.divf %69, %70 : vector<1x128xf32>
    %72 = vector.broadcast %71 : vector<1x128xf32> to vector<128x128xf32>
    %73 = arith.subf %67, %72 : vector<128x128xf32>
    %74 = arith.mulf %73, %73 : vector<128x128xf32>
    %cst_24 = arith.constant dense<0.000000e+00> : vector<128xf32>
    %75 = vector.multi_reduction <add>, %74, %cst_24 [0] : vector<128x128xf32> to vector<128xf32>
    %76 = vector.shape_cast %75 : vector<128xf32> to vector<1x128xf32>
    %77 = tpu.concatenate %69, %76 in 0 : vector<1x128xf32>, vector<1x128xf32> -> vector<2x128xf32>
    %78 = vector.shape_cast %77 : vector<2x128xf32> to vector<1x1x2x128xf32>
    %c0_25 = arith.constant 0 : index
    %c0_26 = arith.constant 0 : index
    %c0_27 = arith.constant 0 : index
    %c0_28 = arith.constant 0 : index
    %79 = vector.load %arg7[%c0_25, %c0_26, %c0_27, %c0_28] : memref<1x1x2x128xf32, #tpu.memory_space<vmem>>, vector<1x1x2x128xf32>
    tpu.vector_store %arg7[%c0_25, %c0_26, %c0_27, %c0_28], %78 {strides = array<i32>} : memref<1x1x2x128xf32, #tpu.memory_space<vmem>>, vector<1x1x2x128xf32>,
    %80 = vector.shape_cast %67 : vector<128x128xf32> to vector<1x8x16x128xf32>
    %81 = arith.truncf %80 : vector<1x8x16x128xf32> to vector<1x8x16x128xbf16>
    %c0_29 = arith.constant 0 : index
    %c0_30 = arith.constant 0 : index
    %c0_31 = arith.constant 0 : index
    %c0_32 = arith.constant 0 : index
    %82 = vector.load %arg6[%c0_29, %c0_30, %c0_31, %c0_32] : memref<1x8x16x128xbf16, #tpu.memory_space<vmem>>, vector<1x8x16x128xbf16>
    tpu.vector_store %arg6[%c0_29, %c0_30, %c0_31, %c0_32], %81 {strides = array<i32>} : memref<1x8x16x128xbf16, #tpu.memory_space<vmem>>, vector<1x8x16x128xbf16>,
    return
  }
  func.func @transform_0(%arg0: i32, %arg1: i32) -> (i32, i32, i32, i32, i32) {
    %c0_i32 = arith.constant 0 : i32
    %c0_i32_0 = arith.constant 0 : i32
    %c0_i32_1 = arith.constant 0 : i32
    %c0_i32_2 = arith.constant 0 : i32
    return %arg0, %arg1, %c0_i32, %c0_i32_0, %c0_i32_1 : i32, i32, i32, i32, i32
  }
  func.func @transform_1(%arg0: i32, %arg1: i32) -> (i32, i32) {
    %c0_i32 = arith.constant 0 : i32
    %c0_i32_0 = arith.constant 0 : i32
    %c0_i32_1 = arith.constant 0 : i32
    return %c0_i32, %c0_i32_0 : i32, i32
  }
  func.func @transform_2(%arg0: i32, %arg1: i32) -> (i32, i32) {
    %c0_i32 = arith.constant 0 : i32
    %c0_i32_0 = arith.constant 0 : i32
    %c0_i32_1 = arith.constant 0 : i32
    return %c0_i32, %c0_i32_0 : i32, i32
  }
  func.func @transform_3(%arg0: i32, %arg1: i32) -> (i32, i32, i32) {
    %c0_i32 = arith.constant 0 : i32
    %c0_i32_0 = arith.constant 0 : i32
    %c0_i32_1 = arith.constant 0 : i32
    %c0_i32_2 = arith.constant 0 : i32
    return %c0_i32, %c0_i32_0, %c0_i32_1 : i32, i32, i32
  }
  func.func @transform_4(%arg0: i32, %arg1: i32) -> (i32, i32, i32, i32) {
    %c0_i32 = arith.constant 0 : i32
    %c0_i32_0 = arith.constant 0 : i32
    %c0_i32_1 = arith.constant 0 : i32
    return %arg0, %arg1, %c0_i32, %c0_i32_0 : i32, i32, i32, i32
  }
  func.func @transform_5(%arg0: i32, %arg1: i32) -> (i32, i32, i32, i32) {
    %c0_i32 = arith.constant 0 : i32
    %c0_i32_0 = arith.constant 0 : i32
    %c0_i32_1 = arith.constant 0 : i32
    return %arg0, %arg1, %c0_i32, %c0_i32_0 : i32, i32, i32, i32
  }
}

</mosaic_0001>

<llo_original>
// kernel: double_conv.2
$region0: #{double_conv.2}
  #allocation0 [shape = 'u32[]', space=smem, size = 0x4, offset = 0x4, fixed_abs, tag = 'smem constant byte address 0x4 - core index']
  #allocation1 [shape = 'u32[144,128]{1,0:T(1,128)}', space=vmem, size = 0x12000, scoped, tag = 'internal scratch']
  %s0 = inlined_call_operand.vmem [shape: bf16[2,2,10,18,4], index: 0, kind: input, shape index: {}]
  %s1 = inlined_call_operand.vmem [shape: bf16[3,12,128], index: 1, kind: input, shape index: {}]
  %s2 = inlined_call_operand.vmem [shape: bf16[2,16,16,128], index: 2, kind: output, shape index: {0}]
  %s3 = inlined_call_operand.vmem [shape: f32[2,2,2,128], index: 3, kind: output, shape index: {1}]
  %4 = xla_tuple %s2, %s3
  %s5 = sld [smem:[#allocation0]]
  $region49: #{double_conv.2} parent=0
    _
  %s7 = ssub.s32 1, %s5
  %s8 = scalar_select 0, %s7, %s5
  loop: start=0, step=1, limit=6
  $region2: #{double_conv.2} parent=0 // loop_pre_header
    _
  $region3: #{double_conv.2} parent=0 // loop_header
    %s10 = sphi 0, %s14
    %p11 = scmp.ge.s32.totalorder %s10, 6
    %s17 = sphi 0, %s29
    %s18 = sphi 0, %s25
    %s19 = sphi 0, %s17
    %s20 = sphi 0, %s18
    %s21 = sphi 0, %s19
    %s22 = sphi 0, %s20
    %s34 = sphi 0, %s36
    %s37 = sphi 0, %s34
    %s38 = sphi 0, %s37
    %s54 = sphi 0, %s38
    %s58 = sphi 0, %s58
    %s60 = sphi 0, %s58
    %s61 = sphi 0, %s60
    %s75 = sphi 0, %s61
    %s83 = sphi 0, %s85
    %s86 = sphi 0, %s83
    %s87 = sphi 0, %s86
    %s103 = sphi 0, %s87
    %s111 = sphi 0, %s113
    %s114 = sphi 0, %s111
    %s115 = sphi 0, %s114
    %s131 = sphi 0, %s115
  $region4: #{double_conv.2} parent=0 // loop_header_branch
    %13 = sbr.rel (%p11) target = $region8
  $region5: #{double_conv.2} parent=0 // loop_body
    %s15 = ssub.s32 %s10, 1
    %s16 = ssub.s32 %s10, 2
    %s23 = sadd.s32 1, %s18
    %p24 = scmp.ge.s32.totalorder %s23, 2
    %s25 = scalar_select %p24, 0, %s23
    %s26 = sadd.s32 1, %s17
    %s27 = scalar_select %p24, %s26, %s17
    %p28 = scmp.ge.s32.totalorder %s27, 2
    %s29 = scalar_select %p28, 0, %s27
    %s30 = ssub.s32 %s17, %s29
    %s31 = ssub.s32 %s18, %s25
    %s32 = sor.u32 %s30, %s31
    %p33 = scmp.eq.s32.totalorder %s32, 0
    %s35 = sadd.s32 %s34, 1
    %s36 = scalar_select %p33, %s34, %s35
    %p39 = pneg %p33
    %p40 = scmp.eq.s32.totalorder %s10, 3
    %p41 = por %p39, %p40
    %p42 = scmp.ne.s32.totalorder %s34, %s37
    %p43 = scmp.eq.s32.totalorder %s10, 0
    %p44 = por %p42, %p43
    %p45 = scmp.ne.s32.totalorder %s34, %s37
    %p46 = scmp.eq.s32.totalorder %s15, 3
    %p47 = por %p45, %p46
    %p48 = scmp.ne.s32.totalorder %s37, %s38
    %p49 = scmp.eq.s32.totalorder %s15, 0
    %p50 = por %p48, %p49
    %p51 = scmp.ne.s32.totalorder %s37, %s38
    %p52 = scmp.eq.s32.totalorder %s16, 3
    %p53 = por %p51, %p52
    %p55 = scmp.ne.s32.totalorder %s38, %s54
    %p56 = scmp.eq.s32.totalorder %s16, 0
    %p57 = por %p55, %p56
    %s59 = sadd.s32 %s58, 1
    %p62 = scmp.eq.s32.totalorder %s10, 3
    %p63 = scmp.ne.s32.totalorder %s58, %s60
    %p64 = scmp.eq.s32.totalorder %s10, 0
    %p65 = por %p63, %p64
    %p66 = scmp.ne.s32.totalorder %s58, %s60
    %p67 = scmp.eq.s32.totalorder %s15, 3
    %p68 = por %p66, %p67
    %p69 = scmp.ne.s32.totalorder %s60, %s61
    %p70 = scmp.eq.s32.totalorder %s15, 0
    %p71 = por %p69, %p70
    %p72 = scmp.ne.s32.totalorder %s60, %s61
    %p73 = scmp.eq.s32.totalorder %s16, 3
    %p74 = por %p72, %p73
    %p76 = scmp.ne.s32.totalorder %s61, %s75
    %p77 = scmp.eq.s32.totalorder %s16, 0
    %p78 = por %p76, %p77
    %s79 = ssub.s32 %s17, %s29
    %s80 = ssub.s32 %s18, %s25
    %s81 = sor.u32 %s79, %s80
    %p82 = scmp.eq.s32.totalorder %s81, 0
    %s84 = sadd.s32 %s83, 1
    %s85 = scalar_select %p82, %s83, %s84
    %p88 = pneg %p82
    %p89 = scmp.eq.s32.totalorder %s10, 3
    %p90 = por %p88, %p89
    %p91 = scmp.ne.s32.totalorder %s83, %s86
    %p92 = scmp.eq.s32.totalorder %s10, 0
    %p93 = por %p91, %p92
    %p94 = scmp.ne.s32.totalorder %s83, %s86
    %p95 = scmp.eq.s32.totalorder %s15, 3
    %p96 = por %p94, %p95
    %p97 = scmp.ne.s32.totalorder %s86, %s87
    %p98 = scmp.eq.s32.totalorder %s15, 0
    %p99 = por %p97, %p98
    %p100 = scmp.ne.s32.totalorder %s86, %s87
    %p101 = scmp.eq.s32.totalorder %s16, 3
    %p102 = por %p100, %p101
    %p104 = scmp.ne.s32.totalorder %s87, %s103
    %p105 = scmp.eq.s32.totalorder %s16, 0
    %p106 = por %p104, %p105
    %s107 = ssub.s32 %s17, %s29
    %s108 = ssub.s32 %s18, %s25
    %s109 = sor.u32 %s107, %s108
    %p110 = scmp.eq.s32.totalorder %s109, 0
    %s112 = sadd.s32 %s111, 1
    %s113 = scalar_select %p110, %s111, %s112
    %p116 = pneg %p110
    %p117 = scmp.eq.s32.totalorder %s10, 3
    %p118 = por %p116, %p117
    %p119 = scmp.ne.s32.totalorder %s111, %s114
    %p120 = scmp.eq.s32.totalorder %s10, 0
    %p121 = por %p119, %p120
    %p122 = scmp.ne.s32.totalorder %s111, %s114
    %p123 = scmp.eq.s32.totalorder %s15, 3
    %p124 = por %p122, %p123
    %p125 = scmp.ne.s32.totalorder %s114, %s115
    %p126 = scmp.eq.s32.totalorder %s15, 0
    %p127 = por %p125, %p126
    %p128 = scmp.ne.s32.totalorder %s114, %s115
    %p129 = scmp.eq.s32.totalorder %s16, 3
    %p130 = por %p128, %p129
    %p132 = scmp.ne.s32.totalorder %s115, %s131
    %p133 = scmp.eq.s32.totalorder %s16, 0
    %p134 = por %p132, %p133
    %p135 = scmp.le.s32.totalorder 1, %s10
    %p136 = scmp.lt.s32.totalorder %s10, 5
    %p137 = pnand %p135, %p136
    %p138 = pneg %p137
    // Predicated region
    $region9: #{double_conv.2} parent=5 // pred_check
      _
    $region10: #{double_conv.2} parent=5 // pred_check_branch
      %140 = sbr.rel (%p137) target = $region12
    $region11: #{double_conv.2} parent=5 // pred_region
      %s141 = ssub.s32 %s10, 1
      // Predicated region
      $region13: #{double_conv.2} parent=11 // pred_check
        %p142 = pneg %p71
      $region14: #{double_conv.2} parent=11 // pred_check_branch
        %144 = sbr.rel (%p142) target = $region16
      $region15: #{double_conv.2} parent=11 // pred_region
        _
      $region16: #{double_conv.2} parent=11 // pred_fallthru
        _
    $region12: #{double_conv.2} parent=5 // pred_fallthru
      _
    %p145 = scmp.lt.s32.totalorder %s10, 4
    // Predicated region
    $region17: #{double_conv.2} parent=5 // pred_check
      %p146 = pneg %p145
    $region18: #{double_conv.2} parent=5 // pred_check_branch
      %148 = sbr.rel (%p146) target = $region20
    $region19: #{double_conv.2} parent=5 // pred_region
      // Predicated region
      $region21: #{double_conv.2} parent=19 // pred_check
        %p149 = pneg %p44
      $region22: #{double_conv.2} parent=19 // pred_check_branch
        %151 = sbr.rel (%p149) target = $region24
      $region23: #{double_conv.2} parent=19 // pred_region
        %p152 = scmp.lt.s32.totalorder %s17, 1
        %s153 = scalar_select %p152, %s17, 1
        %p154 = scmp.lt.s32.totalorder %s18, 1
        %s155 = scalar_select %p154, %s18, 1
        %s156 = smul.addr %s155, 30
        %s157 = smul.addr %s153, 60
        %s158 = sadd.s32 %s156, %s157
        %s159 = smul.addr %s158, 4
        %s160 = scalar_lea.vmem %s0, %s159
      $region24: #{double_conv.2} parent=19 // pred_fallthru
        _
    $region20: #{double_conv.2} parent=5 // pred_fallthru
      _
    %p161 = scmp.le.s32.totalorder 1, %s10
    %p162 = scmp.lt.s32.totalorder %s10, 5
    %p163 = pnand %p161, %p162
    %p164 = pneg %p163
    // Predicated region
    $region25: #{double_conv.2} parent=5 // pred_check
      _
    $region26: #{double_conv.2} parent=5 // pred_check_branch
      %166 = sbr.rel (%p163) target = $region28
    $region27: #{double_conv.2} parent=5 // pred_region
      %s167 = ssub.s32 %s10, 1
      %p168 = scmp.lt.s32.totalorder %s19, 1
      %s169 = scalar_select %p168, %s19, 1
      %p170 = scmp.lt.s32.totalorder %s20, 1
      %s171 = scalar_select %p170, %s20, 1
      %s172 = smul.addr %s171, 30
      %s173 = smul.addr %s169, 60
      %s174 = sadd.s32 %s172, %s173
      %s175 = smul.addr %s174, 4
      %s176 = scalar_lea.vmem %s0, %s175
      %p177 = pneg %p50
      %p178 = pneg %p47
      %p179 = pneg %p71
      %p180 = pneg %p68
      %p181 = pneg %p99
      %p182 = pneg %p96
      %s183 = smul.u32 8, %s20
      %p184 = scmp.lt.s32.totalorder %s19, 1
      %s185 = scalar_select %p184, %s19, 1
      %p186 = scmp.lt.s32.totalorder %s183, 15
      %s187 = scalar_select %p186, %s183, 15
      %s188 = smul.addr %s187, 2
      %s189 = smul.addr %s185, 32
      %s190 = sadd.s32 %s188, %s189
      %s191 = smul.addr %s190, 4
      %s192 = scalar_lea.vmem %s2, %s191
      %p193 = pneg %p127
      %p194 = pneg %p124
      %p195 = scmp.lt.s32.totalorder %s19, 1
      %s196 = scalar_select %p195, %s19, 1
      %p197 = scmp.lt.s32.totalorder %s20, 1
      %s198 = scalar_select %p197, %s20, 1
      %s199 = smul.addr %s196, 2
      %s200 = sadd.s32 %s198, %s199
      %s201 = smul.addr %s200, 2
      %s202 = scalar_lea.vmem %s3, %s201
      %p203 = scmp.lt.s32.totalorder %s19, 1
      %s204 = scalar_select %p203, %s19, 1
      %p205 = scmp.lt.s32.totalorder %s20, 1
      %s206 = scalar_select %p205, %s20, 1
      %s207 = smul.addr %s206, 30
      %s208 = smul.addr %s204, 60
      %s209 = sadd.s32 %s207, %s208
      %s210 = smul.addr %s209, 4
      %s211 = scalar_lea.vmem %s0, %s210
      %s212 = smul.u32 8, %s20
      %p213 = scmp.lt.s32.totalorder %s19, 1
      %s214 = scalar_select %p213, %s19, 1
      %p215 = scmp.lt.s32.totalorder %s212, 15
      %s216 = scalar_select %p215, %s212, 15
      %s217 = smul.addr %s216, 2
      %s218 = smul.addr %s214, 32
      %s219 = sadd.s32 %s217, %s218
      %s220 = smul.addr %s219, 4
      %s221 = scalar_lea.vmem %s2, %s220
      %s222 = smul.u32 8, %s20
      %p223 = scmp.lt.s32.totalorder %s19, 1
      %s224 = scalar_select %p223, %s19, 1
      %p225 = scmp.lt.s32.totalorder %s20, 1
      %s226 = scalar_select %p225, %s20, 1
      %s227 = smul.addr %s224, 2
      %s228 = sadd.s32 %s226, %s227
      %s229 = smul.addr %s228, 2
      %s230 = scalar_lea.vmem %s3, %s229
      %v232 = vld [vmem:[%s211] sm:$0xf]
      %v233 = vld [vmem:[%s211 + $0x4] sm:$0xf]
      %v234 = vld [vmem:[%s211 + $0x8] sm:$0x1]
      %v235 = vld [vmem:[%s211 + $0xc] sm:$0xf]
      %v236 = vld [vmem:[%s211 + $0x10] sm:$0xf]
      %v237 = vld [vmem:[%s211 + $0x14] sm:$0x1]
      %v238 = vld [vmem:[%s211 + $0x18] sm:$0xf]
      %v239 = vld [vmem:[%s211 + $0x1c] sm:$0xf]
      %v240 = vld [vmem:[%s211 + $0x20] sm:$0x1]
      %v241 = vld [vmem:[%s211 + $0x24] sm:$0xf]
      %v242 = vld [vmem:[%s211 + $0x28] sm:$0xf]
      %v243 = vld [vmem:[%s211 + $0x2c] sm:$0x1]
      %v244 = vld [vmem:[%s211 + $0x30] sm:$0xf]
      %v245 = vld [vmem:[%s211 + $0x34] sm:$0xf]
      %v246 = vld [vmem:[%s211 + $0x38] sm:$0x1]
      %v247 = vld [vmem:[%s211 + $0x3c] sm:$0xf]
      %v248 = vld [vmem:[%s211 + $0x40] sm:$0xf]
      %v249 = vld [vmem:[%s211 + $0x44] sm:$0x1]
      %v250 = vld [vmem:[%s211 + $0x48] sm:$0xf]
      %v251 = vld [vmem:[%s211 + $0x4c] sm:$0xf]
      %v252 = vld [vmem:[%s211 + $0x50] sm:$0x1]
      %v253 = vld [vmem:[%s211 + $0x54] sm:$0xf]
      %v254 = vld [vmem:[%s211 + $0x58] sm:$0xf]
      %v255 = vld [vmem:[%s211 + $0x5c] sm:$0x1]
      %v256 = vld [vmem:[%s211 + $0x60] sm:$0xf]
      %v257 = vld [vmem:[%s211 + $0x64] sm:$0xf]
      %v258 = vld [vmem:[%s211 + $0x68] sm:$0x1]
      %v259 = vld [vmem:[%s211 + $0x6c] sm:$0xf]
      %v260 = vld [vmem:[%s211 + $0x70] sm:$0xf]
      %v261 = vld [vmem:[%s211 + $0x74] sm:$0x1]
      %v278 = vunpack.c.l.b16 %v232
      %v279 = vunpack.c.l.b16 %v233
      %v280 = vunpack.c.l.b16 %v235
      %v281 = vunpack.c.l.b16 %v236
      %v282 = vunpack.c.l.b16 %v238
      %v283 = vunpack.c.l.b16 %v239
      %v284 = vunpack.c.l.b16 %v241
      %v285 = vunpack.c.l.b16 %v242
      %v286 = vunpack.c.l.b16 %v244
      %v287 = vunpack.c.l.b16 %v245
      %v288 = vunpack.c.l.b16 %v247
      %v289 = vunpack.c.l.b16 %v248
      %v290 = vunpack.c.l.b16 %v250
      %v291 = vunpack.c.l.b16 %v251
      %v292 = vunpack.c.l.b16 %v253
      %v293 = vunpack.c.l.b16 %v254
      %v294 = vpack.c.b16 %v279, %v278
      %v295 = vpack.c.b16 %v281, %v280
      %v296 = vpack.c.b16 %v283, %v282
      %v297 = vpack.c.b16 %v285, %v284
      %v298 = vpack.c.b16 %v287, %v286
      %v299 = vpack.c.b16 %v289, %v288
      %v300 = vpack.c.b16 %v291, %v290
      %v301 = vpack.c.b16 %v293, %v292
      %v310 = vunpack.c.l.b16 %v234
      %v311 = vunpack.c.l.b16 %v237
      %v312 = vunpack.c.l.b16 %v240
      %v313 = vunpack.c.l.b16 %v243
      %v314 = vunpack.c.l.b16 %v246
      %v315 = vunpack.c.l.b16 %v249
      %v316 = vunpack.c.l.b16 %v252
      %v317 = vunpack.c.l.b16 %v255
      %v318 = vpack.c.b16 %v310, %v310
      %v319 = vpack.c.b16 %v311, %v311
      %v320 = vpack.c.b16 %v312, %v312
      %v321 = vpack.c.b16 %v313, %v313
      %v322 = vpack.c.b16 %v314, %v314
      %v323 = vpack.c.b16 %v315, %v315
      %v324 = vpack.c.b16 %v316, %v316
      %v325 = vpack.c.b16 %v317, %v317
      %vm326 = vsmask.f32 7424
      %v328 = vshrl.u32 %v294, 16
      %v330 = vshll.u32 %v294, 16
      %v332 = vrot.slane %v330, 1
      %v333 = vor.u32 %v328, %v332
      %v335 = vshll.u32 %v318, 16
      %v337 = vrot.slane %v335, 1
      %v338 = vsel %vm326, %v333, %v337
      %v340 = vshrl.u32 %v295, 16
      %v342 = vshll.u32 %v295, 16
      %v344 = vrot.slane %v342, 1
      %v345 = vor.u32 %v340, %v344
      %v347 = vshll.u32 %v319, 16
      %v349 = vrot.slane %v347, 1
      %v350 = vsel %vm326, %v345, %v349
      %v352 = vshrl.u32 %v296, 16
      %v354 = vshll.u32 %v296, 16
      %v356 = vrot.slane %v354, 1
      %v357 = vor.u32 %v352, %v356
      %v359 = vshll.u32 %v320, 16
      %v361 = vrot.slane %v359, 1
      %v362 = vsel %vm326, %v357, %v361
      %v364 = vshrl.u32 %v297, 16
      %v366 = vshll.u32 %v297, 16
      %v368 = vrot.slane %v366, 1
      %v369 = vor.u32 %v364, %v368
      %v371 = vshll.u32 %v321, 16
      %v373 = vrot.slane %v371, 1
      %v374 = vsel %vm326, %v369, %v373
      %v376 = vshrl.u32 %v298, 16
      %v378 = vshll.u32 %v298, 16
      %v380 = vrot.slane %v378, 1
      %v381 = vor.u32 %v376, %v380
      %v383 = vshll.u32 %v322, 16
      %v385 = vrot.slane %v383, 1
      %v386 = vsel %vm326, %v381, %v385
      %v388 = vshrl.u32 %v299, 16
      %v390 = vshll.u32 %v299, 16
      %v392 = vrot.slane %v390, 1
      %v393 = vor.u32 %v388, %v392
      %v395 = vshll.u32 %v323, 16
      %v397 = vrot.slane %v395, 1
      %v398 = vsel %vm326, %v393, %v397
      %v400 = vshrl.u32 %v300, 16
      %v402 = vshll.u32 %v300, 16
      %v404 = vrot.slane %v402, 1
      %v405 = vor.u32 %v400, %v404
      %v407 = vshll.u32 %v324, 16
      %v409 = vrot.slane %v407, 1
      %v410 = vsel %vm326, %v405, %v409
      %v412 = vshrl.u32 %v301, 16
      %v414 = vshll.u32 %v301, 16
      %v416 = vrot.slane %v414, 1
      %v417 = vor.u32 %v412, %v416
      %v419 = vshll.u32 %v325, 16
      %v421 = vrot.slane %v419, 1
      %v422 = vsel %vm326, %v417, %v421
      %423 = vrot.lane.b32.xlu0 %v338, 4
      %v424 = vpop.permute.xlu0 %423
      %425 = vrot.lane.b32.xlu0 %v350, 4
      %v426 = vpop.permute.xlu0 %425
      %427 = vrot.lane.b32.xlu0 %v362, 4
      %v428 = vpop.permute.xlu0 %427
      %429 = vrot.lane.b32.xlu0 %v374, 4
      %v430 = vpop.permute.xlu0 %429
      %431 = vrot.lane.b32.xlu0 %v386, 4
      %v432 = vpop.permute.xlu0 %431
      %433 = vrot.lane.b32.xlu0 %v398, 4
      %v434 = vpop.permute.xlu0 %433
      %435 = vrot.lane.b32.xlu0 %v410, 4
      %v436 = vpop.permute.xlu0 %435
      %437 = vrot.lane.b32.xlu0 %v422, 4
      %v438 = vpop.permute.xlu0 %437
      %vm439 = vcmask 1046528
      %v440 = vrot.slane %v294, 1
      %v441 = vrot.slane %v318, 1
      %v442 = vsel %vm439, %v440, %v441
      %v443 = vrot.slane %v295, 1
      %v444 = vrot.slane %v319, 1
      %v445 = vsel %vm439, %v443, %v444
      %v446 = vrot.slane %v296, 1
      %v447 = vrot.slane %v320, 1
      %v448 = vsel %vm439, %v446, %v447
      %v449 = vrot.slane %v297, 1
      %v450 = vrot.slane %v321, 1
      %v451 = vsel %vm439, %v449, %v450
      %v452 = vrot.slane %v298, 1
      %v453 = vrot.slane %v322, 1
      %v454 = vsel %vm439, %v452, %v453
      %v455 = vrot.slane %v299, 1
      %v456 = vrot.slane %v323, 1
      %v457 = vsel %vm439, %v455, %v456
      %v458 = vrot.slane %v300, 1
      %v459 = vrot.slane %v324, 1
      %v460 = vsel %vm439, %v458, %v459
      %v461 = vrot.slane %v301, 1
      %v462 = vrot.slane %v325, 1
      %v463 = vsel %vm439, %v461, %v462
      %464 = vrot.lane.b32.xlu0 %v442, 8
      %v465 = vpop.permute.xlu0 %464
      %466 = vrot.lane.b32.xlu0 %v445, 8
      %v467 = vpop.permute.xlu0 %466
      %468 = vrot.lane.b32.xlu0 %v448, 8
      %v469 = vpop.permute.xlu0 %468
      %470 = vrot.lane.b32.xlu0 %v451, 8
      %v471 = vpop.permute.xlu0 %470
      %472 = vrot.lane.b32.xlu0 %v454, 8
      %v473 = vpop.permute.xlu0 %472
      %474 = vrot.lane.b32.xlu0 %v457, 8
      %v475 = vpop.permute.xlu0 %474
      %476 = vrot.lane.b32.xlu0 %v460, 8
      %v477 = vpop.permute.xlu0 %476
      %478 = vrot.lane.b32.xlu0 %v463, 8
      %v479 = vpop.permute.xlu0 %478
      %vm480 = vcmask 31744
      %v482 = vsel %vm480, %v294, %v424
      %v484 = vsel %vm480, %v295, %v426
      %v486 = vsel %vm480, %v296, %v428
      %v488 = vsel %vm480, %v297, %v430
      %v490 = vsel %vm480, %v298, %v432
      %v492 = vsel %vm480, %v299, %v434
      %v494 = vsel %vm480, %v300, %v436
      %v496 = vsel %vm480, %v301, %v438
      %vm497 = vcmask 64512
      %v499 = vsel %vm497, %v482, %v465
      %v501 = vsel %vm497, %v484, %v467
      %v503 = vsel %vm497, %v486, %v469
      %v505 = vsel %vm497, %v488, %v471
      %v507 = vsel %vm497, %v490, %v473
      %v509 = vsel %vm497, %v492, %v475
      %v511 = vsel %vm497, %v494, %v477
      %v513 = vsel %vm497, %v496, %v479
      %v514 = vld [vmem:[%s1] sm:$0xf]
      %v515 = vld [vmem:[%s1 + $0x4] sm:$0x3]
      %v518 = vunpack.c.l.b16 %v256
      %v519 = vunpack.c.l.b16 %v257
      %v520 = vpack.c.b16 %v519, %v518
      %v522 = vunpack.c.l.b16 %v258
      %v523 = vpack.c.b16 %v522, %v522
      %v525 = vshrl.u32 %v520, 16
      %v527 = vshll.u32 %v520, 16
      %v529 = vrot.slane %v527, 1
      %v530 = vor.u32 %v525, %v529
      %v532 = vshll.u32 %v523, 16
      %v534 = vrot.slane %v532, 1
      %v535 = vsel %vm326, %v530, %v534
      %536 = vrot.lane.b32.xlu0 %v535, 4
      %v537 = vpop.permute.xlu0 %536
      %v538 = vrot.slane %v520, 1
      %v539 = vrot.slane %v523, 1
      %v540 = vsel %vm439, %v538, %v539
      %541 = vrot.lane.b32.xlu0 %v540, 8
      %v542 = vpop.permute.xlu0 %541
      %v544 = vsel %vm480, %v520, %v537
      %v546 = vsel %vm497, %v544, %v542
      %s547 = scalar_lea.vmem %s1, 8
      %v548 = vld [vmem:[%s547] sm:$0xf]
      %v549 = vld [vmem:[%s547 + $0x4] sm:$0x3]
      %v552 = vunpack.c.l.b16 %v548
      %v553 = vunpack.c.l.b16 %v549
      %v554 = vpack.c.b16 %v553, %v552
      %vm555 = vcmask 97280
      %v556 = vsel %vm555, %v501, 0
      %v558 = vsel %vm555, %v503, 0
      %v560 = vsel %vm555, %v505, 0
      %v562 = vsel %vm555, %v507, 0
      %v564 = vsel %vm555, %v509, 0
      %v566 = vsel %vm555, %v511, 0
      %v568 = vsel %vm555, %v513, 0
      %v570 = vsel %vm555, %v546, 0
      %vm572 = vcmask 1045504
      %v574 = vsel %vm572, %v554, 0
      %576 = vmatprep.subr.bf16.mxu0 0
      %577 = vmatpush1.bf16.msra.mxu0 0
      %578 = vmatprep.subr.bf16.mxu0 0
      %579 = vmatpush1.bf16.msra.mxu0 0
      %580 = vmatprep.subr.bf16.mxu0 0
      %581 = vmatpush1.bf16.msra.mxu0 0
      %582 = vmatprep.subr.bf16.mxu0 0
      %583 = vmatpush1.bf16.msra.mxu0 0
      %584 = vmatprep.subr.bf16.mxu0 0
      %585 = vmatpush1.bf16.msra.mxu0 0
      %586 = vmatprep.subr.bf16.mxu0 0
      %587 = vmatpush1.bf16.msra.mxu0 0
      %588 = vmatprep.subr.bf16.mxu0 0
      %589 = vmatpush1.bf16.msra.mxu0 0
      %590 = vmatprep.subr.bf16.mxu0 0
      %591 = vmatpush1.bf16.msra.mxu0 %v574
      %592 = vmatprep.subr.bf16.mxu0 0
      %593 = vmatpush2.bf16.msra.mxu0 0
      %594 = vmatprep.subr.bf16.mxu0 0
      %595 = vmatpush2.bf16.msra.mxu0 0
      %596 = vmatprep.subr.bf16.mxu0 0
      %597 = vmatpush2.bf16.msra.mxu0 0
      %598 = vmatprep.subr.bf16.mxu0 0
      %599 = vmatpush2.bf16.msra.mxu0 0
      %600 = vmatprep.subr.bf16.mxu0 0
      %601 = vmatpush2.bf16.msra.mxu0 0
      %602 = vmatprep.subr.bf16.mxu0 0
      %603 = vmatpush2.bf16.msra.mxu0 0
      %604 = vmatprep.subr.bf16.mxu0 0
      %605 = vmatpush2.bf16.msra.mxu0 0
      %606 = vmatprep.subr.bf16.mxu0 0
      %607 = vmatpush2.bf16.msra.mxu0 0
      %608 = vmatprep.mubr.bf16.mxu0 0
      %609 = vmatmul.mubr.bf16.gmra.mxu0 %v556
      %v610 = vpop.f32.mrf.mxu0
      %v611 = vadd.f32 0.0, %v610
      %v612 = vpop.f32.mrf.mxu0
      %v613 = vpop.f32.mrf.mxu0
      %v614 = vadd.f32 0.0, %v613
      %v615 = vpop.f32.mrf.mxu0
      %616 = vmatprep.mubr.bf16.mxu0 0
      %617 = vmatmul.mubr.bf16.gmra.mxu0 %v558
      %v618 = vpop.f32.mrf.mxu0
      %v619 = vadd.f32 0.0, %v618
      %v620 = vpop.f32.mrf.mxu0
      %v621 = vpop.f32.mrf.mxu0
      %v622 = vadd.f32 0.0, %v621
      %v623 = vpop.f32.mrf.mxu0
      %624 = vmatprep.mubr.bf16.mxu0 0
      %625 = vmatmul.mubr.bf16.gmra.mxu0 %v560
      %v626 = vpop.f32.mrf.mxu0
      %v627 = vadd.f32 0.0, %v626
      %v628 = vpop.f32.mrf.mxu0
      %v629 = vpop.f32.mrf.mxu0
      %v630 = vadd.f32 0.0, %v629
      %v631 = vpop.f32.mrf.mxu0
      %632 = vmatprep.mubr.bf16.mxu0 0
      %633 = vmatmul.mubr.bf16.gmra.mxu0 %v562
      %v634 = vpop.f32.mrf.mxu0
      %v635 = vadd.f32 0.0, %v634
      %v636 = vpop.f32.mrf.mxu0
      %v637 = vpop.f32.mrf.mxu0
      %v638 = vadd.f32 0.0, %v637
      %v639 = vpop.f32.mrf.mxu0
      %640 = vmatprep.mubr.bf16.mxu0 0
      %641 = vmatmul.mubr.bf16.gmra.mxu0 %v564
      %v642 = vpop.f32.mrf.mxu0
      %v643 = vadd.f32 0.0, %v642
      %v644 = vpop.f32.mrf.mxu0
      %v645 = vpop.f32.mrf.mxu0
      %v646 = vadd.f32 0.0, %v645
      %v647 = vpop.f32.mrf.mxu0
      %648 = vmatprep.mubr.bf16.mxu0 0
      %649 = vmatmul.mubr.bf16.gmra.mxu0 %v566
      %v650 = vpop.f32.mrf.mxu0
      %v651 = vadd.f32 0.0, %v650
      %v652 = vpop.f32.mrf.mxu0
      %v653 = vpop.f32.mrf.mxu0
      %v654 = vadd.f32 0.0, %v653
      %v655 = vpop.f32.mrf.mxu0
      %656 = vmatprep.mubr.bf16.mxu0 0
      %657 = vmatmul.mubr.bf16.gmra.mxu0 %v568
      %v658 = vpop.f32.mrf.mxu0
      %v659 = vadd.f32 0.0, %v658
      %v660 = vpop.f32.mrf.mxu0
      %v661 = vpop.f32.mrf.mxu0
      %v662 = vadd.f32 0.0, %v661
      %v663 = vpop.f32.mrf.mxu0
      %664 = vmatprep.mubr.bf16.mxu0 0
      %665 = vmatmul.mubr.bf16.gmra.mxu0 %v570
      %v666 = vpop.f32.mrf.mxu0
      %v667 = vadd.f32 0.0, %v666
      %v668 = vpop.f32.mrf.mxu0
      %v669 = vpop.f32.mrf.mxu0
      %v670 = vadd.f32 0.0, %v669
      %v671 = vpop.f32.mrf.mxu0
      %672 = vdwg.mxu0
      %v675 = vunpack.c.l.b16 %v514
      %v676 = vunpack.c.l.b16 %v515
      %v677 = vpack.c.b16 %v676, %v675
      %v678 = vsel %vm555, %v499, 0
      %v681 = vsel %vm572, %v677, 0
      %683 = vmatprep.subr.bf16.mxu0 0
      %684 = vmatpush1.bf16.msra.mxu0 0
      %685 = vmatprep.subr.bf16.mxu0 0
      %686 = vmatpush1.bf16.msra.mxu0 0
      %687 = vmatprep.subr.bf16.mxu0 0
      %688 = vmatpush1.bf16.msra.mxu0 0
      %689 = vmatprep.subr.bf16.mxu0 0
      %690 = vmatpush1.bf16.msra.mxu0 0
      %691 = vmatprep.subr.bf16.mxu0 0
      %692 = vmatpush1.bf16.msra.mxu0 0
      %693 = vmatprep.subr.bf16.mxu0 0
      %694 = vmatpush1.bf16.msra.mxu0 0
      %695 = vmatprep.subr.bf16.mxu0 0
      %696 = vmatpush1.bf16.msra.mxu0 0
      %697 = vmatprep.subr.bf16.mxu0 0
      %698 = vmatpush1.bf16.msra.mxu0 %v681
      %699 = vmatprep.subr.bf16.mxu0 0
      %700 = vmatpush2.bf16.msra.mxu0 0
      %701 = vmatprep.subr.bf16.mxu0 0
      %702 = vmatpush2.bf16.msra.mxu0 0
      %703 = vmatprep.subr.bf16.mxu0 0
      %704 = vmatpush2.bf16.msra.mxu0 0
      %705 = vmatprep.subr.bf16.mxu0 0
      %706 = vmatpush2.bf16.msra.mxu0 0
      %707 = vmatprep.subr.bf16.mxu0 0
      %708 = vmatpush2.bf16.msra.mxu0 0
      %709 = vmatprep.subr.bf16.mxu0 0
      %710 = vmatpush2.bf16.msra.mxu0 0
      %711 = vmatprep.subr.bf16.mxu0 0
      %712 = vmatpush2.bf16.msra.mxu0 0
      %713 = vmatprep.subr.bf16.mxu0 0
      %714 = vmatpush2.bf16.msra.mxu0 0
      %715 = vmatprep.mubr.bf16.mxu0 0
      %716 = vmatmul.mubr.bf16.gmra.mxu0 %v678
      %v717 = vpop.f32.mrf.mxu0
      %v718 = vadd.f32 %v611, %v717
      %v719 = vpop.f32.mrf.mxu0
      %v720 = vpop.f32.mrf.mxu0
      %v721 = vadd.f32 %v614, %v720
      %v722 = vpop.f32.mrf.mxu0
      %723 = vmatprep.mubr.bf16.mxu0 0
      %724 = vmatmul.mubr.bf16.gmra.mxu0 %v556
      %v725 = vpop.f32.mrf.mxu0
      %v726 = vadd.f32 %v619, %v725
      %v727 = vpop.f32.mrf.mxu0
      %v728 = vpop.f32.mrf.mxu0
      %v729 = vadd.f32 %v622, %v728
      %v730 = vpop.f32.mrf.mxu0
      %731 = vmatprep.mubr.bf16.mxu0 0
      %732 = vmatmul.mubr.bf16.gmra.mxu0 %v558
      %v733 = vpop.f32.mrf.mxu0
      %v734 = vadd.f32 %v627, %v733
      %v735 = vpop.f32.mrf.mxu0
      %v736 = vpop.f32.mrf.mxu0
      %v737 = vadd.f32 %v630, %v736
      %v738 = vpop.f32.mrf.mxu0
      %739 = vmatprep.mubr.bf16.mxu0 0
      %740 = vmatmul.mubr.bf16.gmra.mxu0 %v560
      %v741 = vpop.f32.mrf.mxu0
      %v742 = vadd.f32 %v635, %v741
      %v743 = vpop.f32.mrf.mxu0
      %v744 = vpop.f32.mrf.mxu0
      %v745 = vadd.f32 %v638, %v744
      %v746 = vpop.f32.mrf.mxu0
      %747 = vmatprep.mubr.bf16.mxu0 0
      %748 = vmatmul.mubr.bf16.gmra.mxu0 %v562
      %v749 = vpop.f32.mrf.mxu0
      %v750 = vadd.f32 %v643, %v749
      %v751 = vpop.f32.mrf.mxu0
      %v752 = vpop.f32.mrf.mxu0
      %v753 = vadd.f32 %v646, %v752
      %v754 = vpop.f32.mrf.mxu0
      %755 = vmatprep.mubr.bf16.mxu0 0
      %756 = vmatmul.mubr.bf16.gmra.mxu0 %v564
      %v757 = vpop.f32.mrf.mxu0
      %v758 = vadd.f32 %v651, %v757
      %v759 = vpop.f32.mrf.mxu0
      %v760 = vpop.f32.mrf.mxu0
      %v761 = vadd.f32 %v654, %v760
      %v762 = vpop.f32.mrf.mxu0
      %763 = vmatprep.mubr.bf16.mxu0 0
      %764 = vmatmul.mubr.bf16.gmra.mxu0 %v566
      %v765 = vpop.f32.mrf.mxu0
      %v766 = vadd.f32 %v659, %v765
      %v767 = vpop.f32.mrf.mxu0
      %v768 = vpop.f32.mrf.mxu0
      %v769 = vadd.f32 %v662, %v768
      %v770 = vpop.f32.mrf.mxu0
      %771 = vmatprep.mubr.bf16.mxu0 0
      %772 = vmatmul.mubr.bf16.gmra.mxu0 %v568
      %v773 = vpop.f32.mrf.mxu0
      %v774 = vadd.f32 %v667, %v773
      %v775 = vpop.f32.mrf.mxu0
      %v776 = vpop.f32.mrf.mxu0
      %v777 = vadd.f32 %v670, %v776
      %v778 = vpop.f32.mrf.mxu0
      %779 = vdwg.mxu0
      %v782 = vunpack.c.l.b16 %v259
      %v783 = vunpack.c.l.b16 %v260
      %v784 = vpack.c.b16 %v783, %v782
      %v786 = vunpack.c.l.b16 %v261
      %v787 = vpack.c.b16 %v786, %v786
      %v789 = vshrl.u32 %v784, 16
      %v791 = vshll.u32 %v784, 16
      %v793 = vrot.slane %v791, 1
      %v794 = vor.u32 %v789, %v793
      %v796 = vshll.u32 %v787, 16
      %v798 = vrot.slane %v796, 1
      %v799 = vsel %vm326, %v794, %v798
      %800 = vrot.lane.b32.xlu0 %v799, 4
      %v801 = vpop.permute.xlu0 %800
      %v802 = vrot.slane %v784, 1
      %v803 = vrot.slane %v787, 1
      %v804 = vsel %vm439, %v802, %v803
      %805 = vrot.lane.b32.xlu0 %v804, 8
      %v806 = vpop.permute.xlu0 %805
      %v808 = vsel %vm480, %v784, %v801
      %v810 = vsel %vm497, %v808, %v806
      %s811 = scalar_lea.vmem %s1, 16
      %v812 = vld [vmem:[%s811] sm:$0xf]
      %v813 = vld [vmem:[%s811 + $0x4] sm:$0x3]
      %v816 = vunpack.c.l.b16 %v812
      %v817 = vunpack.c.l.b16 %v813
      %v818 = vpack.c.b16 %v817, %v816
      %v819 = vsel %vm555, %v810, 0
      %v822 = vsel %vm572, %v818, 0
      %824 = vmatprep.subr.bf16.mxu0 0
      %825 = vmatpush1.bf16.msra.mxu0 0
      %826 = vmatprep.subr.bf16.mxu0 0
      %827 = vmatpush1.bf16.msra.mxu0 0
      %828 = vmatprep.subr.bf16.mxu0 0
      %829 = vmatpush1.bf16.msra.mxu0 0
      %830 = vmatprep.subr.bf16.mxu0 0
      %831 = vmatpush1.bf16.msra.mxu0 0
      %832 = vmatprep.subr.bf16.mxu0 0
      %833 = vmatpush1.bf16.msra.mxu0 0
      %834 = vmatprep.subr.bf16.mxu0 0
      %835 = vmatpush1.bf16.msra.mxu0 0
      %836 = vmatprep.subr.bf16.mxu0 0
      %837 = vmatpush1.bf16.msra.mxu0 0
      %838 = vmatprep.subr.bf16.mxu0 0
      %839 = vmatpush1.bf16.msra.mxu0 %v822
      %840 = vmatprep.subr.bf16.mxu0 0
      %841 = vmatpush2.bf16.msra.mxu0 0
      %842 = vmatprep.subr.bf16.mxu0 0
      %843 = vmatpush2.bf16.msra.mxu0 0
      %844 = vmatprep.subr.bf16.mxu0 0
      %845 = vmatpush2.bf16.msra.mxu0 0
      %846 = vmatprep.subr.bf16.mxu0 0
      %847 = vmatpush2.bf16.msra.mxu0 0
      %848 = vmatprep.subr.bf16.mxu0 0
      %849 = vmatpush2.bf16.msra.mxu0 0
      %850 = vmatprep.subr.bf16.mxu0 0
      %851 = vmatpush2.bf16.msra.mxu0 0
      %852 = vmatprep.subr.bf16.mxu0 0
      %853 = vmatpush2.bf16.msra.mxu0 0
      %854 = vmatprep.subr.bf16.mxu0 0
      %855 = vmatpush2.bf16.msra.mxu0 0
      %856 = vmatprep.mubr.bf16.mxu0 0
      %857 = vmatmul.mubr.bf16.gmra.mxu0 %v558
      %v858 = vpop.f32.mrf.mxu0
      %v859 = vadd.f32 0.0, %v858
      %v860 = vpop.f32.mrf.mxu0
      %v861 = vpop.f32.mrf.mxu0
      %v862 = vadd.f32 0.0, %v861
      %v863 = vpop.f32.mrf.mxu0
      %864 = vmatprep.mubr.bf16.mxu0 0
      %865 = vmatmul.mubr.bf16.gmra.mxu0 %v560
      %v866 = vpop.f32.mrf.mxu0
      %v867 = vadd.f32 0.0, %v866
      %v868 = vpop.f32.mrf.mxu0
      %v869 = vpop.f32.mrf.mxu0
      %v870 = vadd.f32 0.0, %v869
      %v871 = vpop.f32.mrf.mxu0
      %872 = vmatprep.mubr.bf16.mxu0 0
      %873 = vmatmul.mubr.bf16.gmra.mxu0 %v562
      %v874 = vpop.f32.mrf.mxu0
      %v875 = vadd.f32 0.0, %v874
      %v876 = vpop.f32.mrf.mxu0
      %v877 = vpop.f32.mrf.mxu0
      %v878 = vadd.f32 0.0, %v877
      %v879 = vpop.f32.mrf.mxu0
      %880 = vmatprep.mubr.bf16.mxu0 0
      %881 = vmatmul.mubr.bf16.gmra.mxu0 %v564
      %v882 = vpop.f32.mrf.mxu0
      %v883 = vadd.f32 0.0, %v882
      %v884 = vpop.f32.mrf.mxu0
      %v885 = vpop.f32.mrf.mxu0
      %v886 = vadd.f32 0.0, %v885
      %v887 = vpop.f32.mrf.mxu0
      %888 = vmatprep.mubr.bf16.mxu0 0
      %889 = vmatmul.mubr.bf16.gmra.mxu0 %v566
      %v890 = vpop.f32.mrf.mxu0
      %v891 = vadd.f32 0.0, %v890
      %v892 = vpop.f32.mrf.mxu0
      %v893 = vpop.f32.mrf.mxu0
      %v894 = vadd.f32 0.0, %v893
      %v895 = vpop.f32.mrf.mxu0
      %896 = vmatprep.mubr.bf16.mxu0 0
      %897 = vmatmul.mubr.bf16.gmra.mxu0 %v568
      %v898 = vpop.f32.mrf.mxu0
      %v899 = vadd.f32 0.0, %v898
      %v900 = vpop.f32.mrf.mxu0
      %v901 = vpop.f32.mrf.mxu0
      %v902 = vadd.f32 0.0, %v901
      %v903 = vpop.f32.mrf.mxu0
      %904 = vmatprep.mubr.bf16.mxu0 0
      %905 = vmatmul.mubr.bf16.gmra.mxu0 %v570
      %v906 = vpop.f32.mrf.mxu0
      %v907 = vadd.f32 0.0, %v906
      %v908 = vpop.f32.mrf.mxu0
      %v909 = vpop.f32.mrf.mxu0
      %v910 = vadd.f32 0.0, %v909
      %v911 = vpop.f32.mrf.mxu0
      %912 = vmatprep.mubr.bf16.mxu0 0
      %913 = vmatmul.mubr.bf16.gmra.mxu0 %v819
      %v914 = vpop.f32.mrf.mxu0
      %v915 = vadd.f32 0.0, %v914
      %v916 = vpop.f32.mrf.mxu0
      %v917 = vpop.f32.mrf.mxu0
      %v918 = vadd.f32 0.0, %v917
      %v919 = vpop.f32.mrf.mxu0
      %920 = vdwg.mxu0
      %v921 = vadd.f32 %v718, %v859
      %v922 = vadd.f32 %v721, %v862
      %v923 = vadd.f32 %v726, %v867
      %v924 = vadd.f32 %v729, %v870
      %v925 = vadd.f32 %v734, %v875
      %v926 = vadd.f32 %v737, %v878
      %v927 = vadd.f32 %v742, %v883
      %v928 = vadd.f32 %v745, %v886
      %v929 = vadd.f32 %v750, %v891
      %v930 = vadd.f32 %v753, %v894
      %v931 = vadd.f32 %v758, %v899
      %v932 = vadd.f32 %v761, %v902
      %v933 = vadd.f32 %v766, %v907
      %v934 = vadd.f32 %v769, %v910
      %v935 = vadd.f32 %v774, %v915
      %v936 = vadd.f32 %v777, %v918
      %v937 = vadd.f32 %v921, %v922
      %v938 = vadd.f32 %v937, %v923
      %v939 = vadd.f32 %v938, %v924
      %v940 = vadd.f32 %v939, %v925
      %v941 = vadd.f32 %v940, %v926
      %v942 = vadd.f32 %v941, %v927
      %v943 = vadd.f32 %v942, %v928
      %v944 = vadd.f32 %v943, %v929
      %v945 = vadd.f32 %v944, %v930
      %v946 = vadd.f32 %v945, %v931
      %v947 = vadd.f32 %v946, %v932
      %v948 = vadd.f32 %v947, %v933
      %v949 = vadd.f32 %v948, %v934
      %v950 = vadd.f32 %v949, %v935
      %v951 = vadd.f32 %v950, %v936
      %v952 = vrot.slane %v951, 4
      %v953 = vadd.f32 %v951, %v952
      %v954 = vrot.slane %v953, 2
      %v955 = vadd.f32 %v953, %v954
      %v956 = vrot.slane %v955, 1
      %v957 = vadd.f32 %v955, %v956
      %v958 = vrcp.pop 128.0
      %v959 = vmul.f32 %v957, %v958
      %v960 = vsub.f32 %v921, %v959
      %v961 = vsub.f32 %v922, %v959
      %v962 = vsub.f32 %v923, %v959
      %v963 = vsub.f32 %v924, %v959
      %v964 = vsub.f32 %v925, %v959
      %v965 = vsub.f32 %v926, %v959
      %v966 = vsub.f32 %v927, %v959
      %v967 = vsub.f32 %v928, %v959
      %v968 = vsub.f32 %v929, %v959
      %v969 = vsub.f32 %v930, %v959
      %v970 = vsub.f32 %v931, %v959
      %v971 = vsub.f32 %v932, %v959
      %v972 = vsub.f32 %v933, %v959
      %v973 = vsub.f32 %v934, %v959
      %v974 = vsub.f32 %v935, %v959
      %v975 = vsub.f32 %v936, %v959
      %v976 = vmul.f32 %v960, %v960
      %v977 = vmul.f32 %v961, %v961
      %v978 = vmul.f32 %v962, %v962
      %v979 = vmul.f32 %v963, %v963
      %v980 = vmul.f32 %v964, %v964
      %v981 = vmul.f32 %v965, %v965
      %v982 = vmul.f32 %v966, %v966
      %v983 = vmul.f32 %v967, %v967
      %v984 = vmul.f32 %v968, %v968
      %v985 = vmul.f32 %v969, %v969
      %v986 = vmul.f32 %v970, %v970
      %v987 = vmul.f32 %v971, %v971
      %v988 = vmul.f32 %v972, %v972
      %v989 = vmul.f32 %v973, %v973
      %v990 = vmul.f32 %v974, %v974
      %v991 = vmul.f32 %v975, %v975
      %v992 = vadd.f32 %v976, %v977
      %v993 = vadd.f32 %v992, %v978
      %v994 = vadd.f32 %v993, %v979
      %v995 = vadd.f32 %v994, %v980
      %v996 = vadd.f32 %v995, %v981
      %v997 = vadd.f32 %v996, %v982
      %v998 = vadd.f32 %v997, %v983
      %v999 = vadd.f32 %v998, %v984
      %v1000 = vadd.f32 %v999, %v985
      %v1001 = vadd.f32 %v1000, %v986
      %v1002 = vadd.f32 %v1001, %v987
      %v1003 = vadd.f32 %v1002, %v988
      %v1004 = vadd.f32 %v1003, %v989
      %v1005 = vadd.f32 %v1004, %v990
      %v1006 = vadd.f32 %v1005, %v991
      %v1007 = vrot.slane %v1006, 4
      %v1008 = vadd.f32 %v1006, %v1007
      %v1009 = vrot.slane %v1008, 2
      %v1010 = vadd.f32 %v1008, %v1009
      %v1011 = vrot.slane %v1010, 1
      %v1012 = vadd.f32 %v1010, %v1011
      %vm1013 = vcmask 1040384
      %v1014 = vsel %vm1013, %v957, %v1012
      %1015 = vst [vmem:[%s230] sm:$0x3] %v1014
      %v1016 = vpack.c.bf16 %v922, %v921
      %v1017 = vpack.c.bf16 %v924, %v923
      %v1018 = vpack.c.bf16 %v926, %v925
      %v1019 = vpack.c.bf16 %v928, %v927
      %v1020 = vpack.c.bf16 %v930, %v929
      %v1021 = vpack.c.bf16 %v932, %v931
      %v1022 = vpack.c.bf16 %v934, %v933
      %v1023 = vpack.c.bf16 %v936, %v935
      %v1032 = vunpack.c.l.b16 %v1016
      %v1033 = vunpack.c.h.b16 %v1016
      %v1034 = vunpack.c.l.b16 %v1017
      %v1035 = vunpack.c.h.b16 %v1017
      %v1036 = vunpack.c.l.b16 %v1018
      %v1037 = vunpack.c.h.b16 %v1018
      %v1038 = vunpack.c.l.b16 %v1019
      %v1039 = vunpack.c.h.b16 %v1019
      %v1040 = vunpack.c.l.b16 %v1020
      %v1041 = vunpack.c.h.b16 %v1020
      %v1042 = vunpack.c.l.b16 %v1021
      %v1043 = vunpack.c.h.b16 %v1021
      %v1044 = vunpack.c.l.b16 %v1022
      %v1045 = vunpack.c.h.b16 %v1022
      %v1046 = vunpack.c.l.b16 %v1023
      %v1047 = vunpack.c.h.b16 %v1023
      %v1048 = vpack.c.b16 %v1032, %v1032
      %v1049 = vpack.c.b16 %v1033, %v1033
      %v1050 = vpack.c.b16 %v1034, %v1034
      %v1051 = vpack.c.b16 %v1035, %v1035
      %v1052 = vpack.c.b16 %v1036, %v1036
      %v1053 = vpack.c.b16 %v1037, %v1037
      %v1054 = vpack.c.b16 %v1038, %v1038
      %v1055 = vpack.c.b16 %v1039, %v1039
      %v1056 = vpack.c.b16 %v1040, %v1040
      %v1057 = vpack.c.b16 %v1041, %v1041
      %v1058 = vpack.c.b16 %v1042, %v1042
      %v1059 = vpack.c.b16 %v1043, %v1043
      %v1060 = vpack.c.b16 %v1044, %v1044
      %v1061 = vpack.c.b16 %v1045, %v1045
      %v1062 = vpack.c.b16 %v1046, %v1046
      %v1063 = vpack.c.b16 %v1047, %v1047
      %1080 = vst [vmem:[%s221] sm:$0xf] %v1048
      %1081 = vst [vmem:[%s221 + $0x4] sm:$0xf] %v1049
      %1082 = vst [vmem:[%s221 + $0x8] sm:$0xf] %v1050
      %1083 = vst [vmem:[%s221 + $0xc] sm:$0xf] %v1051
      %1084 = vst [vmem:[%s221 + $0x10] sm:$0xf] %v1052
      %1085 = vst [vmem:[%s221 + $0x14] sm:$0xf] %v1053
      %1086 = vst [vmem:[%s221 + $0x18] sm:$0xf] %v1054
      %1087 = vst [vmem:[%s221 + $0x1c] sm:$0xf] %v1055
      %1088 = vst [vmem:[%s221 + $0x20] sm:$0xf] %v1056
      %1089 = vst [vmem:[%s221 + $0x24] sm:$0xf] %v1057
      %1090 = vst [vmem:[%s221 + $0x28] sm:$0xf] %v1058
      %1091 = vst [vmem:[%s221 + $0x2c] sm:$0xf] %v1059
      %1092 = vst [vmem:[%s221 + $0x30] sm:$0xf] %v1060
      %1093 = vst [vmem:[%s221 + $0x34] sm:$0xf] %v1061
      %1094 = vst [vmem:[%s221 + $0x38] sm:$0xf] %v1062
      %1095 = vst [vmem:[%s221 + $0x3c] sm:$0xf] %v1063
      %s1096 = smul.u32 8, %s20
      %p1097 = scmp.lt.s32.totalorder %s19, 1
      %s1098 = scalar_select %p1097, %s19, 1
      %p1099 = scmp.lt.s32.totalorder %s1096, 15
      %s1100 = scalar_select %p1099, %s1096, 15
      %s1101 = smul.addr %s1100, 2
      %s1102 = smul.addr %s1098, 32
      %s1103 = sadd.s32 %s1101, %s1102
      %s1104 = smul.addr %s1103, 4
      %s1105 = scalar_lea.vmem %s2, %s1104
      %p1106 = scmp.lt.s32.totalorder %s19, 1
      %s1107 = scalar_select %p1106, %s19, 1
      %p1108 = scmp.lt.s32.totalorder %s20, 1
      %s1109 = scalar_select %p1108, %s20, 1
      %s1110 = smul.addr %s1107, 2
      %s1111 = sadd.s32 %s1109, %s1110
      %s1112 = smul.addr %s1111, 2
      %s1113 = scalar_lea.vmem %s3, %s1112
      // Predicated region
      $region29: #{double_conv.2} parent=27 // pred_check
        %p1114 = pneg %p96
      $region30: #{double_conv.2} parent=27 // pred_check_branch
        %1116 = sbr.rel (%p1114) target = $region32
      $region31: #{double_conv.2} parent=27 // pred_region
        %s1117 = smul.u32 8, %s20
      $region32: #{double_conv.2} parent=27 // pred_fallthru
        _
      // Predicated region
      $region33: #{double_conv.2} parent=27 // pred_check
        %p1118 = pneg %p124
      $region34: #{double_conv.2} parent=27 // pred_check_branch
        %1120 = sbr.rel (%p1118) target = $region36
      $region35: #{double_conv.2} parent=27 // pred_region
        _
      $region36: #{double_conv.2} parent=27 // pred_fallthru
        _
    $region28: #{double_conv.2} parent=5 // pred_fallthru
      _
    %p1121 = scmp.le.s32.totalorder 2, %s10
    // Predicated region
    $region37: #{double_conv.2} parent=5 // pred_check
      %p1122 = pneg %p1121
    $region38: #{double_conv.2} parent=5 // pred_check_branch
      %1124 = sbr.rel (%p1122) target = $region40
    $region39: #{double_conv.2} parent=5 // pred_region
      %s1125 = ssub.s32 %s10, 2
      // Predicated region
      $region41: #{double_conv.2} parent=39 // pred_check
        %p1126 = pneg %p102
      $region42: #{double_conv.2} parent=39 // pred_check_branch
        %1128 = sbr.rel (%p1126) target = $region44
      $region43: #{double_conv.2} parent=39 // pred_region
        %s1129 = smul.u32 8, %s22
        %p1130 = scmp.lt.s32.totalorder %s21, 1
        %s1131 = scalar_select %p1130, %s21, 1
        %p1132 = scmp.lt.s32.totalorder %s1129, 15
        %s1133 = scalar_select %p1132, %s1129, 15
        %s1134 = smul.addr %s1133, 2
        %s1135 = smul.addr %s1131, 32
        %s1136 = sadd.s32 %s1134, %s1135
        %s1137 = smul.addr %s1136, 4
        %s1138 = scalar_lea.vmem %s2, %s1137
      $region44: #{double_conv.2} parent=39 // pred_fallthru
        _
      // Predicated region
      $region45: #{double_conv.2} parent=39 // pred_check
        %p1139 = pneg %p130
      $region46: #{double_conv.2} parent=39 // pred_check_branch
        %1141 = sbr.rel (%p1139) target = $region48
      $region47: #{double_conv.2} parent=39 // pred_region
        %p1142 = scmp.lt.s32.totalorder %s21, 1
        %s1143 = scalar_select %p1142, %s21, 1
        %p1144 = scmp.lt.s32.totalorder %s22, 1
        %s1145 = scalar_select %p1144, %s22, 1
        %s1146 = smul.addr %s1143, 2
        %s1147 = sadd.s32 %s1145, %s1146
        %s1148 = smul.addr %s1147, 2
        %s1149 = scalar_lea.vmem %s3, %s1148
      $region48: #{double_conv.2} parent=39 // pred_fallthru
        _
    $region40: #{double_conv.2} parent=5 // pred_fallthru
      _
  $region6: #{double_conv.2} parent=0 // loop_footer
    %s14 = sadd.s32 1, %s10
  $region7: #{double_conv.2} parent=0 // loop_footer_branch
    %9 = sbr.rel target = $region3
  $region8: #{double_conv.2} parent=0 // loop_exit
    _

// kernel: double_conv.3
$region0: #{double_conv.3}
  #allocation0 [shape = 'u32[]', space=smem, size = 0x4, offset = 0x4, fixed_abs, tag = 'smem constant byte address 0x4 - core index']
  #allocation1 [shape = 'u32[144,128]{1,0:T(1,128)}', space=vmem, size = 0x12000, scoped, tag = 'internal scratch']
  %s0 = inlined_call_operand.vmem [shape: bf16[2,2,10,18,128], index: 0, kind: input, shape index: {}]
  %s1 = inlined_call_operand.vmem [shape: f32[1,128], index: 1, kind: input, shape index: {}]
  %s2 = inlined_call_operand.vmem [shape: f32[1,128], index: 2, kind: input, shape index: {}]
  %s3 = inlined_call_operand.vmem [shape: bf16[3,384,128], index: 3, kind: input, shape index: {}]
  %s4 = inlined_call_operand.vmem [shape: bf16[2,16,16,128], index: 4, kind: output, shape index: {0}]
  %s5 = inlined_call_operand.vmem [shape: f32[2,2,2,128], index: 5, kind: output, shape index: {1}]
  %6 = xla_tuple %s4, %s5
  %s7 = sld [smem:[#allocation0]]
  $region57: #{double_conv.3} parent=0
    _
  %s9 = ssub.s32 1, %s7
  %s10 = scalar_select 0, %s9, %s7
  loop: start=0, step=1, limit=6
  $region2: #{double_conv.3} parent=0 // loop_pre_header
    _
  $region3: #{double_conv.3} parent=0 // loop_header
    %s12 = sphi 0, %s16
    %p13 = scmp.ge.s32.totalorder %s12, 6
    %s19 = sphi 0, %s31
    %s20 = sphi 0, %s27
    %s21 = sphi 0, %s19
    %s22 = sphi 0, %s20
    %s23 = sphi 0, %s21
    %s24 = sphi 0, %s22
    %s36 = sphi 0, %s38
    %s39 = sphi 0, %s36
    %s40 = sphi 0, %s39
    %s56 = sphi 0, %s40
    %s60 = sphi 0, %s60
    %s62 = sphi 0, %s60
    %s63 = sphi 0, %s62
    %s77 = sphi 0, %s63
    %s81 = sphi 0, %s81
    %s83 = sphi 0, %s81
    %s84 = sphi 0, %s83
    %s98 = sphi 0, %s84
    %s102 = sphi 0, %s102
    %s104 = sphi 0, %s102
    %s105 = sphi 0, %s104
    %s119 = sphi 0, %s105
    %s127 = sphi 0, %s129
    %s130 = sphi 0, %s127
    %s131 = sphi 0, %s130
    %s147 = sphi 0, %s131
    %s155 = sphi 0, %s157
    %s158 = sphi 0, %s155
    %s159 = sphi 0, %s158
    %s175 = sphi 0, %s159
  $region4: #{double_conv.3} parent=0 // loop_header_branch
    %15 = sbr.rel (%p13) target = $region8
  $region5: #{double_conv.3} parent=0 // loop_body
    %s17 = ssub.s32 %s12, 1
    %s18 = ssub.s32 %s12, 2
    %s25 = sadd.s32 1, %s20
    %p26 = scmp.ge.s32.totalorder %s25, 2
    %s27 = scalar_select %p26, 0, %s25
    %s28 = sadd.s32 1, %s19
    %s29 = scalar_select %p26, %s28, %s19
    %p30 = scmp.ge.s32.totalorder %s29, 2
    %s31 = scalar_select %p30, 0, %s29
    %s32 = ssub.s32 %s19, %s31
    %s33 = ssub.s32 %s20, %s27
    %s34 = sor.u32 %s32, %s33
    %p35 = scmp.eq.s32.totalorder %s34, 0
    %s37 = sadd.s32 %s36, 1
    %s38 = scalar_select %p35, %s36, %s37
    %p41 = pneg %p35
    %p42 = scmp.eq.s32.totalorder %s12, 3
    %p43 = por %p41, %p42
    %p44 = scmp.ne.s32.totalorder %s36, %s39
    %p45 = scmp.eq.s32.totalorder %s12, 0
    %p46 = por %p44, %p45
    %p47 = scmp.ne.s32.totalorder %s36, %s39
    %p48 = scmp.eq.s32.totalorder %s17, 3
    %p49 = por %p47, %p48
    %p50 = scmp.ne.s32.totalorder %s39, %s40
    %p51 = scmp.eq.s32.totalorder %s17, 0
    %p52 = por %p50, %p51
    %p53 = scmp.ne.s32.totalorder %s39, %s40
    %p54 = scmp.eq.s32.totalorder %s18, 3
    %p55 = por %p53, %p54
    %p57 = scmp.ne.s32.totalorder %s40, %s56
    %p58 = scmp.eq.s32.totalorder %s18, 0
    %p59 = por %p57, %p58
    %s61 = sadd.s32 %s60, 1
    %p64 = scmp.eq.s32.totalorder %s12, 3
    %p65 = scmp.ne.s32.totalorder %s60, %s62
    %p66 = scmp.eq.s32.totalorder %s12, 0
    %p67 = por %p65, %p66
    %p68 = scmp.ne.s32.totalorder %s60, %s62
    %p69 = scmp.eq.s32.totalorder %s17, 3
    %p70 = por %p68, %p69
    %p71 = scmp.ne.s32.totalorder %s62, %s63
    %p72 = scmp.eq.s32.totalorder %s17, 0
    %p73 = por %p71, %p72
    %p74 = scmp.ne.s32.totalorder %s62, %s63
    %p75 = scmp.eq.s32.totalorder %s18, 3
    %p76 = por %p74, %p75
    %p78 = scmp.ne.s32.totalorder %s63, %s77
    %p79 = scmp.eq.s32.totalorder %s18, 0
    %p80 = por %p78, %p79
    %s82 = sadd.s32 %s81, 1
    %p85 = scmp.eq.s32.totalorder %s12, 3
    %p86 = scmp.ne.s32.totalorder %s81, %s83
    %p87 = scmp.eq.s32.totalorder %s12, 0
    %p88 = por %p86, %p87
    %p89 = scmp.ne.s32.totalorder %s81, %s83
    %p90 = scmp.eq.s32.totalorder %s17, 3
    %p91 = por %p89, %p90
    %p92 = scmp.ne.s32.totalorder %s83, %s84
    %p93 = scmp.eq.s32.totalorder %s17, 0
    %p94 = por %p92, %p93
    %p95 = scmp.ne.s32.totalorder %s83, %s84
    %p96 = scmp.eq.s32.totalorder %s18, 3
    %p97 = por %p95, %p96
    %p99 = scmp.ne.s32.totalorder %s84, %s98
    %p100 = scmp.eq.s32.totalorder %s18, 0
    %p101 = por %p99, %p100
    %s103 = sadd.s32 %s102, 1
    %p106 = scmp.eq.s32.totalorder %s12, 3
    %p107 = scmp.ne.s32.totalorder %s102, %s104
    %p108 = scmp.eq.s32.totalorder %s12, 0
    %p109 = por %p107, %p108
    %p110 = scmp.ne.s32.totalorder %s102, %s104
    %p111 = scmp.eq.s32.totalorder %s17, 3
    %p112 = por %p110, %p111
    %p113 = scmp.ne.s32.totalorder %s104, %s105
    %p114 = scmp.eq.s32.totalorder %s17, 0
    %p115 = por %p113, %p114
    %p116 = scmp.ne.s32.totalorder %s104, %s105
    %p117 = scmp.eq.s32.totalorder %s18, 3
    %p118 = por %p116, %p117
    %p120 = scmp.ne.s32.totalorder %s105, %s119
    %p121 = scmp.eq.s32.totalorder %s18, 0
    %p122 = por %p120, %p121
    %s123 = ssub.s32 %s19, %s31
    %s124 = ssub.s32 %s20, %s27
    %s125 = sor.u32 %s123, %s124
    %p126 = scmp.eq.s32.totalorder %s125, 0
    %s128 = sadd.s32 %s127, 1
    %s129 = scalar_select %p126, %s127, %s128
    %p132 = pneg %p126
    %p133 = scmp.eq.s32.totalorder %s12, 3
    %p134 = por %p132, %p133
    %p135 = scmp.ne.s32.totalorder %s127, %s130
    %p136 = scmp.eq.s32.totalorder %s12, 0
    %p137 = por %p135, %p136
    %p138 = scmp.ne.s32.totalorder %s127, %s130
    %p139 = scmp.eq.s32.totalorder %s17, 3
    %p140 = por %p138, %p139
    %p141 = scmp.ne.s32.totalorder %s130, %s131
    %p142 = scmp.eq.s32.totalorder %s17, 0
    %p143 = por %p141, %p142
    %p144 = scmp.ne.s32.totalorder %s130, %s131
    %p145 = scmp.eq.s32.totalorder %s18, 3
    %p146 = por %p144, %p145
    %p148 = scmp.ne.s32.totalorder %s131, %s147
    %p149 = scmp.eq.s32.totalorder %s18, 0
    %p150 = por %p148, %p149
    %s151 = ssub.s32 %s19, %s31
    %s152 = ssub.s32 %s20, %s27
    %s153 = sor.u32 %s151, %s152
    %p154 = scmp.eq.s32.totalorder %s153, 0
    %s156 = sadd.s32 %s155, 1
    %s157 = scalar_select %p154, %s155, %s156
    %p160 = pneg %p154
    %p161 = scmp.eq.s32.totalorder %s12, 3
    %p162 = por %p160, %p161
    %p163 = scmp.ne.s32.totalorder %s155, %s158
    %p164 = scmp.eq.s32.totalorder %s12, 0
    %p165 = por %p163, %p164
    %p166 = scmp.ne.s32.totalorder %s155, %s158
    %p167 = scmp.eq.s32.totalorder %s17, 3
    %p168 = por %p166, %p167
    %p169 = scmp.ne.s32.totalorder %s158, %s159
    %p170 = scmp.eq.s32.totalorder %s17, 0
    %p171 = por %p169, %p170
    %p172 = scmp.ne.s32.totalorder %s158, %s159
    %p173 = scmp.eq.s32.totalorder %s18, 3
    %p174 = por %p172, %p173
    %p176 = scmp.ne.s32.totalorder %s159, %s175
    %p177 = scmp.eq.s32.totalorder %s18, 0
    %p178 = por %p176, %p177
    %p179 = scmp.le.s32.totalorder 1, %s12
    %p180 = scmp.lt.s32.totalorder %s12, 5
    %p181 = pnand %p179, %p180
    %p182 = pneg %p181
    // Predicated region
    $region9: #{double_conv.3} parent=5 // pred_check
      _
    $region10: #{double_conv.3} parent=5 // pred_check_branch
      %184 = sbr.rel (%p181) target = $region12
    $region11: #{double_conv.3} parent=5 // pred_region
      %s185 = ssub.s32 %s12, 1
      // Predicated region
      $region13: #{double_conv.3} parent=11 // pred_check
        %p186 = pneg %p73
      $region14: #{double_conv.3} parent=11 // pred_check_branch
        %188 = sbr.rel (%p186) target = $region16
      $region15: #{double_conv.3} parent=11 // pred_region
        _
      $region16: #{double_conv.3} parent=11 // pred_fallthru
        _
      // Predicated region
      $region17: #{double_conv.3} parent=11 // pred_check
        %p189 = pneg %p94
      $region18: #{double_conv.3} parent=11 // pred_check_branch
        %191 = sbr.rel (%p189) target = $region20
      $region19: #{double_conv.3} parent=11 // pred_region
        _
      $region20: #{double_conv.3} parent=11 // pred_fallthru
        _
      // Predicated region
      $region21: #{double_conv.3} parent=11 // pred_check
        %p192 = pneg %p115
      $region22: #{double_conv.3} parent=11 // pred_check_branch
        %194 = sbr.rel (%p192) target = $region24
      $region23: #{double_conv.3} parent=11 // pred_region
        _
      $region24: #{double_conv.3} parent=11 // pred_fallthru
        _
    $region12: #{double_conv.3} parent=5 // pred_fallthru
      _
    %p195 = scmp.lt.s32.totalorder %s12, 4
    // Predicated region
    $region25: #{double_conv.3} parent=5 // pred_check
      %p196 = pneg %p195
    $region26: #{double_conv.3} parent=5 // pred_check_branch
      %198 = sbr.rel (%p196) target = $region28
    $region27: #{double_conv.3} parent=5 // pred_region
      // Predicated region
      $region29: #{double_conv.3} parent=27 // pred_check
        %p199 = pneg %p46
      $region30: #{double_conv.3} parent=27 // pred_check_branch
        %201 = sbr.rel (%p199) target = $region32
      $region31: #{double_conv.3} parent=27 // pred_region
        %p202 = scmp.lt.s32.totalorder %s19, 1
        %s203 = scalar_select %p202, %s19, 1
        %p204 = scmp.lt.s32.totalorder %s20, 1
        %s205 = scalar_select %p204, %s20, 1
        %s206 = smul.addr %s205, 30
        %s207 = smul.addr %s203, 60
        %s208 = sadd.s32 %s206, %s207
        %s209 = smul.addr %s208, 4
        %s210 = scalar_lea.vmem %s0, %s209
      $region32: #{double_conv.3} parent=27 // pred_fallthru
        _
    $region28: #{double_conv.3} parent=5 // pred_fallthru
      _
    %p211 = scmp.le.s32.totalorder 1, %s12
    %p212 = scmp.lt.s32.totalorder %s12, 5
    %p213 = pnand %p211, %p212
    %p214 = pneg %p213
    // Predicated region
    $region33: #{double_conv.3} parent=5 // pred_check
      _
    $region34: #{double_conv.3} parent=5 // pred_check_branch
      %216 = sbr.rel (%p213) target = $region36
    $region35: #{double_conv.3} parent=5 // pred_region
      %s217 = ssub.s32 %s12, 1
      %p218 = scmp.lt.s32.totalorder %s21, 1
      %s219 = scalar_select %p218, %s21, 1
      %p220 = scmp.lt.s32.totalorder %s22, 1
      %s221 = scalar_select %p220, %s22, 1
      %s222 = smul.addr %s221, 30
      %s223 = smul.addr %s219, 60
      %s224 = sadd.s32 %s222, %s223
      %s225 = smul.addr %s224, 4
      %s226 = scalar_lea.vmem %s0, %s225
      %p227 = pneg %p52
      %p228 = pneg %p49
      %p229 = pneg %p73
      %p230 = pneg %p70
      %p231 = pneg %p94
      %p232 = pneg %p91
      %p233 = pneg %p115
      %p234 = pneg %p112
      %p235 = pneg %p143
      %p236 = pneg %p140
      %s237 = smul.u32 8, %s22
      %p238 = scmp.lt.s32.totalorder %s21, 1
      %s239 = scalar_select %p238, %s21, 1
      %p240 = scmp.lt.s32.totalorder %s237, 15
      %s241 = scalar_select %p240, %s237, 15
      %s242 = smul.addr %s241, 2
      %s243 = smul.addr %s239, 32
      %s244 = sadd.s32 %s242, %s243
      %s245 = smul.addr %s244, 4
      %s246 = scalar_lea.vmem %s4, %s245
      %p247 = pneg %p171
      %p248 = pneg %p168
      %p249 = scmp.lt.s32.totalorder %s21, 1
      %s250 = scalar_select %p249, %s21, 1
      %p251 = scmp.lt.s32.totalorder %s22, 1
      %s252 = scalar_select %p251, %s22, 1
      %s253 = smul.addr %s250, 2
      %s254 = sadd.s32 %s252, %s253
      %s255 = smul.addr %s254, 2
      %s256 = scalar_lea.vmem %s5, %s255
      %p257 = scmp.lt.s32.totalorder %s21, 1
      %s258 = scalar_select %p257, %s21, 1
      %p259 = scmp.lt.s32.totalorder %s22, 1
      %s260 = scalar_select %p259, %s22, 1
      %s261 = smul.addr %s260, 30
      %s262 = smul.addr %s258, 60
      %s263 = sadd.s32 %s261, %s262
      %s264 = smul.addr %s263, 4
      %s265 = scalar_lea.vmem %s0, %s264
      %s266 = smul.u32 8, %s22
      %p267 = scmp.lt.s32.totalorder %s21, 1
      %s268 = scalar_select %p267, %s21, 1
      %p269 = scmp.lt.s32.totalorder %s266, 15
      %s270 = scalar_select %p269, %s266, 15
      %s271 = smul.addr %s270, 2
      %s272 = smul.addr %s268, 32
      %s273 = sadd.s32 %s271, %s272
      %s274 = smul.addr %s273, 4
      %s275 = scalar_lea.vmem %s4, %s274
      %s276 = smul.u32 8, %s22
      %p277 = scmp.lt.s32.totalorder %s21, 1
      %s278 = scalar_select %p277, %s21, 1
      %p279 = scmp.lt.s32.totalorder %s22, 1
      %s280 = scalar_select %p279, %s22, 1
      %s281 = smul.addr %s278, 2
      %s282 = sadd.s32 %s280, %s281
      %s283 = smul.addr %s282, 2
      %s284 = scalar_lea.vmem %s5, %s283
      %v286 = vld [vmem:[%s265] sm:$0xf]
      %v287 = vld [vmem:[%s265 + $0x4] sm:$0xf]
      %v288 = vld [vmem:[%s265 + $0x8] sm:$0x1]
      %v289 = vld [vmem:[%s265 + $0xc] sm:$0xf]
      %v290 = vld [vmem:[%s265 + $0x10] sm:$0xf]
      %v291 = vld [vmem:[%s265 + $0x14] sm:$0x1]
      %v292 = vld [vmem:[%s265 + $0x18] sm:$0xf]
      %v293 = vld [vmem:[%s265 + $0x1c] sm:$0xf]
      %v294 = vld [vmem:[%s265 + $0x20] sm:$0x1]
      %v295 = vld [vmem:[%s265 + $0x24] sm:$0xf]
      %v296 = vld [vmem:[%s265 + $0x28] sm:$0xf]
      %v297 = vld [vmem:[%s265 + $0x2c] sm:$0x1]
      %v298 = vld [vmem:[%s265 + $0x30] sm:$0xf]
      %v299 = vld [vmem:[%s265 + $0x34] sm:$0xf]
      %v300 = vld [vmem:[%s265 + $0x38] sm:$0x1]
      %v301 = vld [vmem:[%s265 + $0x3c] sm:$0xf]
      %v302 = vld [vmem:[%s265 + $0x40] sm:$0xf]
      %v303 = vld [vmem:[%s265 + $0x44] sm:$0x1]
      %v304 = vld [vmem:[%s265 + $0x48] sm:$0xf]
      %v305 = vld [vmem:[%s265 + $0x4c] sm:$0xf]
      %v306 = vld [vmem:[%s265 + $0x50] sm:$0x1]
      %v307 = vld [vmem:[%s265 + $0x54] sm:$0xf]
      %v308 = vld [vmem:[%s265 + $0x58] sm:$0xf]
      %v309 = vld [vmem:[%s265 + $0x5c] sm:$0x1]
      %v310 = vld [vmem:[%s265 + $0x60] sm:$0xf]
      %v311 = vld [vmem:[%s265 + $0x64] sm:$0xf]
      %v312 = vld [vmem:[%s265 + $0x68] sm:$0x1]
      %v313 = vld [vmem:[%s265 + $0x6c] sm:$0xf]
      %v314 = vld [vmem:[%s265 + $0x70] sm:$0xf]
      %v315 = vld [vmem:[%s265 + $0x74] sm:$0x1]
      %v316 = vunpack.c.l.bf16 %v286
      %v317 = vunpack.c.l.bf16 %v287
      %v318 = vunpack.c.l.bf16 %v288
      %v319 = vunpack.c.l.bf16 %v289
      %v320 = vunpack.c.l.bf16 %v290
      %v321 = vunpack.c.l.bf16 %v291
      %v322 = vunpack.c.l.bf16 %v292
      %v323 = vunpack.c.l.bf16 %v293
      %v324 = vunpack.c.l.bf16 %v294
      %v325 = vunpack.c.l.bf16 %v295
      %v326 = vunpack.c.l.bf16 %v296
      %v327 = vunpack.c.l.bf16 %v297
      %v328 = vunpack.c.l.bf16 %v298
      %v329 = vunpack.c.l.bf16 %v299
      %v330 = vunpack.c.l.bf16 %v300
      %v331 = vunpack.c.l.bf16 %v301
      %v332 = vunpack.c.l.bf16 %v302
      %v333 = vunpack.c.l.bf16 %v303
      %v334 = vunpack.c.l.bf16 %v304
      %v335 = vunpack.c.l.bf16 %v305
      %v336 = vunpack.c.l.bf16 %v306
      %v337 = vunpack.c.l.bf16 %v307
      %v338 = vunpack.c.l.bf16 %v308
      %v339 = vunpack.c.l.bf16 %v309
      %v340 = vunpack.c.l.bf16 %v310
      %v341 = vunpack.c.l.bf16 %v311
      %v342 = vunpack.c.l.bf16 %v312
      %v343 = vunpack.c.l.bf16 %v313
      %v344 = vunpack.c.l.bf16 %v314
      %v345 = vunpack.c.l.bf16 %v315
      %v346 = vld [vmem:[%s1] sm:$0x1]
      %v348 = vlaneseq
      %v349 = vshrl.u32 %v348, 7
      %v350 = vsub.s32 0, %v349
      %v351 = vrot.slane %v346, %v350
      %v353 = vmul.f32 %v316, %v351
      %v354 = vmul.f32 %v317, %v351
      %v355 = vmul.f32 %v318, %v351
      %v356 = vmul.f32 %v319, %v351
      %v357 = vmul.f32 %v320, %v351
      %v358 = vmul.f32 %v321, %v351
      %v359 = vmul.f32 %v322, %v351
      %v360 = vmul.f32 %v323, %v351
      %v361 = vmul.f32 %v324, %v351
      %v362 = vmul.f32 %v325, %v351
      %v363 = vmul.f32 %v326, %v351
      %v364 = vmul.f32 %v327, %v351
      %v365 = vmul.f32 %v328, %v351
      %v366 = vmul.f32 %v329, %v351
      %v367 = vmul.f32 %v330, %v351
      %v368 = vmul.f32 %v331, %v351
      %v369 = vmul.f32 %v332, %v351
      %v370 = vmul.f32 %v333, %v351
      %v371 = vmul.f32 %v334, %v351
      %v372 = vmul.f32 %v335, %v351
      %v373 = vmul.f32 %v336, %v351
      %v374 = vmul.f32 %v337, %v351
      %v375 = vmul.f32 %v338, %v351
      %v376 = vmul.f32 %v339, %v351
      %v377 = vmul.f32 %v340, %v351
      %v378 = vmul.f32 %v341, %v351
      %v379 = vmul.f32 %v342, %v351
      %v380 = vmul.f32 %v343, %v351
      %v381 = vmul.f32 %v344, %v351
      %v382 = vmul.f32 %v345, %v351
      %v383 = vld [vmem:[%s2] sm:$0x1]
      %v385 = vlaneseq
      %v386 = vshrl.u32 %v385, 7
      %v387 = vsub.s32 0, %v386
      %v388 = vrot.slane %v383, %v387
      %v390 = vadd.f32 %v353, %v388
      %v391 = vadd.f32 %v354, %v388
      %v392 = vadd.f32 %v355, %v388
      %v393 = vadd.f32 %v356, %v388
      %v394 = vadd.f32 %v357, %v388
      %v395 = vadd.f32 %v358, %v388
      %v396 = vadd.f32 %v359, %v388
      %v397 = vadd.f32 %v360, %v388
      %v398 = vadd.f32 %v361, %v388
      %v399 = vadd.f32 %v362, %v388
      %v400 = vadd.f32 %v363, %v388
      %v401 = vadd.f32 %v364, %v388
      %v402 = vadd.f32 %v365, %v388
      %v403 = vadd.f32 %v366, %v388
      %v404 = vadd.f32 %v367, %v388
      %v405 = vadd.f32 %v368, %v388
      %v406 = vadd.f32 %v369, %v388
      %v407 = vadd.f32 %v370, %v388
      %v408 = vadd.f32 %v371, %v388
      %v409 = vadd.f32 %v372, %v388
      %v410 = vadd.f32 %v373, %v388
      %v411 = vadd.f32 %v374, %v388
      %v412 = vadd.f32 %v375, %v388
      %v413 = vadd.f32 %v376, %v388
      %v414 = vadd.f32 %v377, %v388
      %v415 = vadd.f32 %v378, %v388
      %v416 = vadd.f32 %v379, %v388
      %v417 = vadd.f32 %v380, %v388
      %v418 = vadd.f32 %v381, %v388
      %v419 = vadd.f32 %v382, %v388
      %v420 = vmax.f32 %v390, 0.0
      %v421 = vmax.f32 %v391, 0.0
      %v422 = vmax.f32 %v392, 0.0
      %v423 = vmax.f32 %v393, 0.0
      %v424 = vmax.f32 %v394, 0.0
      %v425 = vmax.f32 %v395, 0.0
      %v426 = vmax.f32 %v396, 0.0
      %v427 = vmax.f32 %v397, 0.0
      %v428 = vmax.f32 %v398, 0.0
      %v429 = vmax.f32 %v399, 0.0
      %v430 = vmax.f32 %v400, 0.0
      %v431 = vmax.f32 %v401, 0.0
      %v432 = vmax.f32 %v402, 0.0
      %v433 = vmax.f32 %v403, 0.0
      %v434 = vmax.f32 %v404, 0.0
      %v435 = vmax.f32 %v405, 0.0
      %v436 = vmax.f32 %v406, 0.0
      %v437 = vmax.f32 %v407, 0.0
      %v438 = vmax.f32 %v408, 0.0
      %v439 = vmax.f32 %v409, 0.0
      %v440 = vmax.f32 %v410, 0.0
      %v441 = vmax.f32 %v411, 0.0
      %v442 = vmax.f32 %v412, 0.0
      %v443 = vmax.f32 %v413, 0.0
      %v444 = vmax.f32 %v414, 0.0
      %v445 = vmax.f32 %v415, 0.0
      %v446 = vmax.f32 %v416, 0.0
      %v447 = vmax.f32 %v417, 0.0
      %v448 = vmax.f32 %v418, 0.0
      %v449 = vmax.f32 %v419, 0.0
      %v450 = vlaneseq
      %v451 = vshrl.u32 %v450, 7
      %v452 = vadd.s32 %v451, 8
      %v453 = vadd.s32 %v451, 16
      %vm454 = vcmp.eq.s32.totalorder %v451, 0
      %vm455 = vcmp.eq.s32.totalorder %v452, 0
      %vm456 = vcmp.eq.s32.totalorder %v453, 0
      %vm457 = vcmp.eq.s32.totalorder %v451, 17
      %vm458 = vcmp.eq.s32.totalorder %v452, 17
      %vm459 = vcmp.eq.s32.totalorder %v453, 17
      %vm460 = vmor %vm454, %vm457
      %vm461 = vmor %vm455, %vm458
      %vm462 = vmor %vm456, %vm459
      %p463 = scmp.eq.s32.totalorder %s22, 0
      %s464 = scalar_select %p463, 1, 0
      %v465 = vstv %s464
      %vm466 = vcmp.eq.s32.totalorder %v465, 1
      %vm467 = vmor %vm460, %vm466
      %vm468 = vmor %vm461, %vm466
      %vm469 = vmor %vm462, %vm466
      %vm470 = vmor %vm460, 0
      %vm471 = vmor %vm461, 0
      %vm472 = vmor %vm462, 0
      %p473 = scmp.eq.s32.totalorder %s22, 1
      %s474 = scalar_select %p473, 1, 0
      %v475 = vstv %s474
      %vm476 = vcmp.eq.s32.totalorder %v475, 1
      %vm477 = vmor %vm467, 0
      %vm478 = vmor %vm468, 0
      %vm479 = vmor %vm469, 0
      %vm480 = vmor %vm470, 0
      %vm481 = vmor %vm471, 0
      %vm482 = vmor %vm472, 0
      %vm483 = vmor %vm470, %vm476
      %vm484 = vmor %vm471, %vm476
      %vm485 = vmor %vm472, %vm476
      %v486 = vsel %vm477, 1, 0
      %v487 = vsel %vm478, 1, 0
      %v488 = vsel %vm479, 1, 0
      %v489 = vsel %vm480, 1, 0
      %v490 = vsel %vm481, 1, 0
      %v491 = vsel %vm482, 1, 0
      %v492 = vsel %vm483, 1, 0
      %v493 = vsel %vm484, 1, 0
      %v494 = vsel %vm485, 1, 0
      %vm495 = vcmp.eq.s32.totalorder %v486, 1
      %vm496 = vcmp.eq.s32.totalorder %v487, 1
      %vm497 = vcmp.eq.s32.totalorder %v488, 1
      %vm498 = vcmp.eq.s32.totalorder %v489, 1
      %vm499 = vcmp.eq.s32.totalorder %v490, 1
      %vm500 = vcmp.eq.s32.totalorder %v491, 1
      %vm501 = vcmp.eq.s32.totalorder %v492, 1
      %vm502 = vcmp.eq.s32.totalorder %v493, 1
      %vm503 = vcmp.eq.s32.totalorder %v494, 1
      %v504 = vsel %vm495, 0.0, %v420
      %v505 = vsel %vm496, 0.0, %v421
      %v506 = vsel %vm497, 0.0, %v422
      %v507 = vsel %vm498, 0.0, %v423
      %v508 = vsel %vm499, 0.0, %v424
      %v509 = vsel %vm500, 0.0, %v425
      %v510 = vsel %vm498, 0.0, %v426
      %v511 = vsel %vm499, 0.0, %v427
      %v512 = vsel %vm500, 0.0, %v428
      %v513 = vsel %vm498, 0.0, %v429
      %v514 = vsel %vm499, 0.0, %v430
      %v515 = vsel %vm500, 0.0, %v431
      %v516 = vsel %vm498, 0.0, %v432
      %v517 = vsel %vm499, 0.0, %v433
      %v518 = vsel %vm500, 0.0, %v434
      %v519 = vsel %vm498, 0.0, %v435
      %v520 = vsel %vm499, 0.0, %v436
      %v521 = vsel %vm500, 0.0, %v437
      %v522 = vsel %vm498, 0.0, %v438
      %v523 = vsel %vm499, 0.0, %v439
      %v524 = vsel %vm500, 0.0, %v440
      %v525 = vsel %vm498, 0.0, %v441
      %v526 = vsel %vm499, 0.0, %v442
      %v527 = vsel %vm500, 0.0, %v443
      %v528 = vsel %vm498, 0.0, %v444
      %v529 = vsel %vm499, 0.0, %v445
      %v530 = vsel %vm500, 0.0, %v446
      %v531 = vsel %vm501, 0.0, %v447
      %v532 = vsel %vm502, 0.0, %v448
      %v533 = vsel %vm503, 0.0, %v449
      %v534 = vpack.c.bf16 %v505, %v504
      %v535 = vpack.c.bf16 %v506, %v506
      %v536 = vpack.c.bf16 %v508, %v507
      %v537 = vpack.c.bf16 %v509, %v509
      %v538 = vpack.c.bf16 %v511, %v510
      %v539 = vpack.c.bf16 %v512, %v512
      %v540 = vpack.c.bf16 %v514, %v513
      %v541 = vpack.c.bf16 %v515, %v515
      %v542 = vpack.c.bf16 %v517, %v516
      %v543 = vpack.c.bf16 %v518, %v518
      %v544 = vpack.c.bf16 %v520, %v519
      %v545 = vpack.c.bf16 %v521, %v521
      %v546 = vpack.c.bf16 %v523, %v522
      %v547 = vpack.c.bf16 %v524, %v524
      %v548 = vpack.c.bf16 %v526, %v525
      %v549 = vpack.c.bf16 %v527, %v527
      %v550 = vpack.c.bf16 %v529, %v528
      %v551 = vpack.c.bf16 %v530, %v530
      %v552 = vpack.c.bf16 %v532, %v531
      %v553 = vpack.c.bf16 %v533, %v533
      %vm554 = vsmask.f32 7424
      %v556 = vshrl.u32 %v534, 16
      %v558 = vshll.u32 %v534, 16
      %v560 = vrot.slane %v558, 1
      %v561 = vor.u32 %v556, %v560
      %v563 = vshll.u32 %v535, 16
      %v565 = vrot.slane %v563, 1
      %v566 = vsel %vm554, %v561, %v565
      %v568 = vshrl.u32 %v536, 16
      %v570 = vshll.u32 %v536, 16
      %v572 = vrot.slane %v570, 1
      %v573 = vor.u32 %v568, %v572
      %v575 = vshll.u32 %v537, 16
      %v577 = vrot.slane %v575, 1
      %v578 = vsel %vm554, %v573, %v577
      %v580 = vshrl.u32 %v538, 16
      %v582 = vshll.u32 %v538, 16
      %v584 = vrot.slane %v582, 1
      %v585 = vor.u32 %v580, %v584
      %v587 = vshll.u32 %v539, 16
      %v589 = vrot.slane %v587, 1
      %v590 = vsel %vm554, %v585, %v589
      %v592 = vshrl.u32 %v540, 16
      %v594 = vshll.u32 %v540, 16
      %v596 = vrot.slane %v594, 1
      %v597 = vor.u32 %v592, %v596
      %v599 = vshll.u32 %v541, 16
      %v601 = vrot.slane %v599, 1
      %v602 = vsel %vm554, %v597, %v601
      %v604 = vshrl.u32 %v542, 16
      %v606 = vshll.u32 %v542, 16
      %v608 = vrot.slane %v606, 1
      %v609 = vor.u32 %v604, %v608
      %v611 = vshll.u32 %v543, 16
      %v613 = vrot.slane %v611, 1
      %v614 = vsel %vm554, %v609, %v613
      %v616 = vshrl.u32 %v544, 16
      %v618 = vshll.u32 %v544, 16
      %v620 = vrot.slane %v618, 1
      %v621 = vor.u32 %v616, %v620
      %v623 = vshll.u32 %v545, 16
      %v625 = vrot.slane %v623, 1
      %v626 = vsel %vm554, %v621, %v625
      %v628 = vshrl.u32 %v546, 16
      %v630 = vshll.u32 %v546, 16
      %v632 = vrot.slane %v630, 1
      %v633 = vor.u32 %v628, %v632
      %v635 = vshll.u32 %v547, 16
      %v637 = vrot.slane %v635, 1
      %v638 = vsel %vm554, %v633, %v637
      %v640 = vshrl.u32 %v548, 16
      %v642 = vshll.u32 %v548, 16
      %v644 = vrot.slane %v642, 1
      %v645 = vor.u32 %v640, %v644
      %v647 = vshll.u32 %v549, 16
      %v649 = vrot.slane %v647, 1
      %v650 = vsel %vm554, %v645, %v649
      %vm675 = vcmask 1046528
      %v676 = vrot.slane %v534, 1
      %v677 = vrot.slane %v535, 1
      %v678 = vsel %vm675, %v676, %v677
      %v679 = vrot.slane %v536, 1
      %v680 = vrot.slane %v537, 1
      %v681 = vsel %vm675, %v679, %v680
      %v682 = vrot.slane %v538, 1
      %v683 = vrot.slane %v539, 1
      %v684 = vsel %vm675, %v682, %v683
      %v685 = vrot.slane %v540, 1
      %v686 = vrot.slane %v541, 1
      %v687 = vsel %vm675, %v685, %v686
      %v688 = vrot.slane %v542, 1
      %v689 = vrot.slane %v543, 1
      %v690 = vsel %vm675, %v688, %v689
      %v691 = vrot.slane %v544, 1
      %v692 = vrot.slane %v545, 1
      %v693 = vsel %vm675, %v691, %v692
      %v694 = vrot.slane %v546, 1
      %v695 = vrot.slane %v547, 1
      %v696 = vsel %vm675, %v694, %v695
      %v697 = vrot.slane %v548, 1
      %v698 = vrot.slane %v549, 1
      %v699 = vsel %vm675, %v697, %v698
      %v708 = vld [vmem:[%s3] sm:$0xf]
      %v709 = vld [vmem:[%s3 + $0x4] sm:$0xf]
      %v710 = vld [vmem:[%s3 + $0x8] sm:$0xf]
      %v711 = vld [vmem:[%s3 + $0xc] sm:$0xf]
      %v712 = vld [vmem:[%s3 + $0x10] sm:$0xf]
      %v713 = vld [vmem:[%s3 + $0x14] sm:$0xf]
      %v714 = vld [vmem:[%s3 + $0x18] sm:$0xf]
      %v715 = vld [vmem:[%s3 + $0x1c] sm:$0xf]
      %v716 = vld [vmem:[%s3 + $0x20] sm:$0xf]
      %v717 = vld [vmem:[%s3 + $0x24] sm:$0xf]
      %v718 = vld [vmem:[%s3 + $0x28] sm:$0xf]
      %v719 = vld [vmem:[%s3 + $0x2c] sm:$0xf]
      %v720 = vld [vmem:[%s3 + $0x30] sm:$0xf]
      %v721 = vld [vmem:[%s3 + $0x34] sm:$0xf]
      %v722 = vld [vmem:[%s3 + $0x38] sm:$0xf]
      %v723 = vld [vmem:[%s3 + $0x3c] sm:$0xf]
      %v724 = vld [vmem:[%s3 + $0x40] sm:$0xf]
      %v725 = vld [vmem:[%s3 + $0x44] sm:$0xf]
      %v726 = vld [vmem:[%s3 + $0x48] sm:$0xf]
      %v727 = vld [vmem:[%s3 + $0x4c] sm:$0xf]
      %v728 = vld [vmem:[%s3 + $0x50] sm:$0xf]
      %v729 = vld [vmem:[%s3 + $0x54] sm:$0xf]
      %v730 = vld [vmem:[%s3 + $0x58] sm:$0xf]
      %v731 = vld [vmem:[%s3 + $0x5c] sm:$0xf]
      %v732 = vld [vmem:[%s3 + $0x60] sm:$0xf]
      %v733 = vld [vmem:[%s3 + $0x64] sm:$0xf]
      %v734 = vld [vmem:[%s3 + $0x68] sm:$0xf]
      %v735 = vld [vmem:[%s3 + $0x6c] sm:$0xf]
      %v736 = vld [vmem:[%s3 + $0x70] sm:$0xf]
      %v737 = vld [vmem:[%s3 + $0x74] sm:$0xf]
      %v738 = vld [vmem:[%s3 + $0x78] sm:$0xf]
      %v739 = vld [vmem:[%s3 + $0x7c] sm:$0xf]
      %v740 = vld [vmem:[%s3 + $0x80] sm:$0xf]
      %v741 = vld [vmem:[%s3 + $0x84] sm:$0xf]
      %v742 = vld [vmem:[%s3 + $0x88] sm:$0xf]
      %v743 = vld [vmem:[%s3 + $0x8c] sm:$0xf]
      %v744 = vld [vmem:[%s3 + $0x90] sm:$0xf]
      %v745 = vld [vmem:[%s3 + $0x94] sm:$0xf]
      %v746 = vld [vmem:[%s3 + $0x98] sm:$0xf]
      %v747 = vld [vmem:[%s3 + $0x9c] sm:$0xf]
      %v748 = vld [vmem:[%s3 + $0xa0] sm:$0xf]
      %v749 = vld [vmem:[%s3 + $0xa4] sm:$0xf]
      %v750 = vld [vmem:[%s3 + $0xa8] sm:$0xf]
      %v751 = vld [vmem:[%s3 + $0xac] sm:$0xf]
      %v752 = vld [vmem:[%s3 + $0xb0] sm:$0xf]
      %v753 = vld [vmem:[%s3 + $0xb4] sm:$0xf]
      %v754 = vld [vmem:[%s3 + $0xb8] sm:$0xf]
      %v755 = vld [vmem:[%s3 + $0xbc] sm:$0xf]
      %v757 = vshrl.u32 %v550, 16
      %v759 = vshll.u32 %v550, 16
      %v761 = vrot.slane %v759, 1
      %v762 = vor.u32 %v757, %v761
      %v764 = vshll.u32 %v551, 16
      %v766 = vrot.slane %v764, 1
      %v767 = vsel %vm554, %v762, %v766
      %v771 = vrot.slane %v550, 1
      %v772 = vrot.slane %v551, 1
      %v773 = vsel %vm675, %v771, %v772
      %s775 = scalar_lea.vmem %s3, 192
      %v776 = vld [vmem:[%s775] sm:$0xf]
      %v777 = vld [vmem:[%s775 + $0x4] sm:$0xf]
      %v778 = vld [vmem:[%s775 + $0x8] sm:$0xf]
      %v779 = vld [vmem:[%s775 + $0xc] sm:$0xf]
      %v780 = vld [vmem:[%s775 + $0x10] sm:$0xf]
      %v781 = vld [vmem:[%s775 + $0x14] sm:$0xf]
      %v782 = vld [vmem:[%s775 + $0x18] sm:$0xf]
      %v783 = vld [vmem:[%s775 + $0x1c] sm:$0xf]
      %v784 = vld [vmem:[%s775 + $0x20] sm:$0xf]
      %v785 = vld [vmem:[%s775 + $0x24] sm:$0xf]
      %v786 = vld [vmem:[%s775 + $0x28] sm:$0xf]
      %v787 = vld [vmem:[%s775 + $0x2c] sm:$0xf]
      %v788 = vld [vmem:[%s775 + $0x30] sm:$0xf]
      %v789 = vld [vmem:[%s775 + $0x34] sm:$0xf]
      %v790 = vld [vmem:[%s775 + $0x38] sm:$0xf]
      %v791 = vld [vmem:[%s775 + $0x3c] sm:$0xf]
      %v792 = vld [vmem:[%s775 + $0x40] sm:$0xf]
      %v793 = vld [vmem:[%s775 + $0x44] sm:$0xf]
      %v794 = vld [vmem:[%s775 + $0x48] sm:$0xf]
      %v795 = vld [vmem:[%s775 + $0x4c] sm:$0xf]
      %v796 = vld [vmem:[%s775 + $0x50] sm:$0xf]
      %v797 = vld [vmem:[%s775 + $0x54] sm:$0xf]
      %v798 = vld [vmem:[%s775 + $0x58] sm:$0xf]
      %v799 = vld [vmem:[%s775 + $0x5c] sm:$0xf]
      %v800 = vld [vmem:[%s775 + $0x60] sm:$0xf]
      %v801 = vld [vmem:[%s775 + $0x64] sm:$0xf]
      %v802 = vld [vmem:[%s775 + $0x68] sm:$0xf]
      %v803 = vld [vmem:[%s775 + $0x6c] sm:$0xf]
      %v804 = vld [vmem:[%s775 + $0x70] sm:$0xf]
      %v805 = vld [vmem:[%s775 + $0x74] sm:$0xf]
      %v806 = vld [vmem:[%s775 + $0x78] sm:$0xf]
      %v807 = vld [vmem:[%s775 + $0x7c] sm:$0xf]
      %v808 = vld [vmem:[%s775 + $0x80] sm:$0xf]
      %v809 = vld [vmem:[%s775 + $0x84] sm:$0xf]
      %v810 = vld [vmem:[%s775 + $0x88] sm:$0xf]
      %v811 = vld [vmem:[%s775 + $0x8c] sm:$0xf]
      %v812 = vld [vmem:[%s775 + $0x90] sm:$0xf]
      %v813 = vld [vmem:[%s775 + $0x94] sm:$0xf]
      %v814 = vld [vmem:[%s775 + $0x98] sm:$0xf]
      %v815 = vld [vmem:[%s775 + $0x9c] sm:$0xf]
      %v816 = vld [vmem:[%s775 + $0xa0] sm:$0xf]
      %v817 = vld [vmem:[%s775 + $0xa4] sm:$0xf]
      %v818 = vld [vmem:[%s775 + $0xa8] sm:$0xf]
      %v819 = vld [vmem:[%s775 + $0xac] sm:$0xf]
      %v820 = vld [vmem:[%s775 + $0xb0] sm:$0xf]
      %v821 = vld [vmem:[%s775 + $0xb4] sm:$0xf]
      %v822 = vld [vmem:[%s775 + $0xb8] sm:$0xf]
      %v823 = vld [vmem:[%s775 + $0xbc] sm:$0xf]
      %v872 = vunpack.c.l.b16 %v776
      %v873 = vunpack.c.l.b16 %v777
      %v874 = vunpack.c.l.b16 %v778
      %v875 = vunpack.c.l.b16 %v779
      %v876 = vunpack.c.l.b16 %v780
      %v877 = vunpack.c.l.b16 %v781
      %v878 = vunpack.c.l.b16 %v782
      %v879 = vunpack.c.l.b16 %v783
      %v880 = vunpack.c.l.b16 %v784
      %v881 = vunpack.c.l.b16 %v785
      %v882 = vunpack.c.l.b16 %v786
      %v883 = vunpack.c.l.b16 %v787
      %v884 = vunpack.c.l.b16 %v788
      %v885 = vunpack.c.l.b16 %v789
      %v886 = vunpack.c.l.b16 %v790
      %v887 = vunpack.c.l.b16 %v791
      %v888 = vunpack.c.l.b16 %v792
      %v889 = vunpack.c.l.b16 %v793
      %v890 = vunpack.c.l.b16 %v794
      %v891 = vunpack.c.l.b16 %v795
      %v892 = vunpack.c.l.b16 %v796
      %v893 = vunpack.c.l.b16 %v797
      %v894 = vunpack.c.l.b16 %v798
      %v895 = vunpack.c.l.b16 %v799
      %v896 = vunpack.c.l.b16 %v800
      %v897 = vunpack.c.l.b16 %v801
      %v898 = vunpack.c.l.b16 %v802
      %v899 = vunpack.c.l.b16 %v803
      %v900 = vunpack.c.l.b16 %v804
      %v901 = vunpack.c.l.b16 %v805
      %v902 = vunpack.c.l.b16 %v806
      %v903 = vunpack.c.l.b16 %v807
      %v904 = vunpack.c.l.b16 %v808
      %v905 = vunpack.c.l.b16 %v809
      %v906 = vunpack.c.l.b16 %v810
      %v907 = vunpack.c.l.b16 %v811
      %v908 = vunpack.c.l.b16 %v812
      %v909 = vunpack.c.l.b16 %v813
      %v910 = vunpack.c.l.b16 %v814
      %v911 = vunpack.c.l.b16 %v815
      %v912 = vunpack.c.l.b16 %v816
      %v913 = vunpack.c.l.b16 %v817
      %v914 = vunpack.c.l.b16 %v818
      %v915 = vunpack.c.l.b16 %v819
      %v916 = vunpack.c.l.b16 %v820
      %v917 = vunpack.c.l.b16 %v821
      %v918 = vunpack.c.l.b16 %v822
      %v919 = vunpack.c.l.b16 %v823
      %v920 = vpack.c.b16 %v873, %v872
      %v921 = vpack.c.b16 %v875, %v874
      %v922 = vpack.c.b16 %v877, %v876
      %v923 = vpack.c.b16 %v879, %v878
      %v924 = vpack.c.b16 %v881, %v880
      %v925 = vpack.c.b16 %v883, %v882
      %v926 = vpack.c.b16 %v885, %v884
      %v927 = vpack.c.b16 %v887, %v886
      %v928 = vpack.c.b16 %v889, %v888
      %v929 = vpack.c.b16 %v891, %v890
      %v930 = vpack.c.b16 %v893, %v892
      %v931 = vpack.c.b16 %v895, %v894
      %v932 = vpack.c.b16 %v897, %v896
      %v933 = vpack.c.b16 %v899, %v898
      %v934 = vpack.c.b16 %v901, %v900
      %v935 = vpack.c.b16 %v903, %v902
      %v936 = vpack.c.b16 %v905, %v904
      %v937 = vpack.c.b16 %v907, %v906
      %v938 = vpack.c.b16 %v909, %v908
      %v939 = vpack.c.b16 %v911, %v910
      %v940 = vpack.c.b16 %v913, %v912
      %v941 = vpack.c.b16 %v915, %v914
      %v942 = vpack.c.b16 %v917, %v916
      %v943 = vpack.c.b16 %v919, %v918
      %968 = vmatprep.subr.bf16.mxu0 0
      %969 = vmatpush1.bf16.msra.mxu0 %v927
      %970 = vmatprep.subr.bf16.mxu0 0
      %971 = vmatpush1.bf16.msra.mxu0 %v926
      %972 = vmatprep.subr.bf16.mxu0 0
      %973 = vmatpush1.bf16.msra.mxu0 %v925
      %974 = vmatprep.subr.bf16.mxu0 0
      %975 = vmatpush1.bf16.msra.mxu0 %v924
      %976 = vmatprep.subr.bf16.mxu0 0
      %977 = vmatpush1.bf16.msra.mxu0 %v923
      %978 = vmatprep.subr.bf16.mxu0 0
      %979 = vmatpush1.bf16.msra.mxu0 %v922
      %980 = vmatprep.subr.bf16.mxu0 0
      %981 = vmatpush1.bf16.msra.mxu0 %v921
      %982 = vmatprep.subr.bf16.mxu0 0
      %983 = vmatpush1.bf16.msra.mxu0 %v920
      %984 = vmatprep.subr.bf16.mxu0 0
      %985 = vmatpush2.bf16.msra.mxu0 %v935
      %986 = vmatprep.subr.bf16.mxu0 0
      %987 = vmatpush2.bf16.msra.mxu0 %v934
      %988 = vmatprep.subr.bf16.mxu0 0
      %989 = vmatpush2.bf16.msra.mxu0 %v933
      %990 = vmatprep.subr.bf16.mxu0 0
      %991 = vmatpush2.bf16.msra.mxu0 %v932
      %992 = vmatprep.subr.bf16.mxu0 0
      %993 = vmatpush2.bf16.msra.mxu0 %v931
      %994 = vmatprep.subr.bf16.mxu0 0
      %995 = vmatpush2.bf16.msra.mxu0 %v930
      %996 = vmatprep.subr.bf16.mxu0 0
      %997 = vmatpush2.bf16.msra.mxu0 %v929
      %998 = vmatprep.subr.bf16.mxu0 0
      %999 = vmatpush2.bf16.msra.mxu0 %v928
      %1000 = vmatprep.mubr.bf16.mxu0 %v578
      %1001 = vmatmul.mubr.bf16.gmra.mxu0 %v536
      %v1002 = vpop.f32.mrf.mxu0
      %v1003 = vadd.f32 0.0, %v1002
      %v1004 = vpop.f32.mrf.mxu0
      %v1005 = vpop.f32.mrf.mxu0
      %v1006 = vadd.f32 0.0, %v1005
      %v1007 = vpop.f32.mrf.mxu0
      %1008 = vmatprep.mubr.bf16.mxu0 %v590
      %1009 = vmatmul.mubr.bf16.gmra.mxu0 %v538
      %v1010 = vpop.f32.mrf.mxu0
      %v1011 = vadd.f32 0.0, %v1010
      %v1012 = vpop.f32.mrf.mxu0
      %v1013 = vpop.f32.mrf.mxu0
      %v1014 = vadd.f32 0.0, %v1013
      %v1015 = vpop.f32.mrf.mxu0
      %1016 = vmatprep.mubr.bf16.mxu0 %v602
      %1017 = vmatmul.mubr.bf16.gmra.mxu0 %v540
      %v1018 = vpop.f32.mrf.mxu0
      %v1019 = vadd.f32 0.0, %v1018
      %v1020 = vpop.f32.mrf.mxu0
      %v1021 = vpop.f32.mrf.mxu0
      %v1022 = vadd.f32 0.0, %v1021
      %v1023 = vpop.f32.mrf.mxu0
      %1024 = vmatprep.mubr.bf16.mxu0 %v614
      %1025 = vmatmul.mubr.bf16.gmra.mxu0 %v542
      %v1026 = vpop.f32.mrf.mxu0
      %v1027 = vadd.f32 0.0, %v1026
      %v1028 = vpop.f32.mrf.mxu0
      %v1029 = vpop.f32.mrf.mxu0
      %v1030 = vadd.f32 0.0, %v1029
      %v1031 = vpop.f32.mrf.mxu0
      %1032 = vmatprep.mubr.bf16.mxu0 %v626
      %1033 = vmatmul.mubr.bf16.gmra.mxu0 %v544
      %v1034 = vpop.f32.mrf.mxu0
      %v1035 = vadd.f32 0.0, %v1034
      %v1036 = vpop.f32.mrf.mxu0
      %v1037 = vpop.f32.mrf.mxu0
      %v1038 = vadd.f32 0.0, %v1037
      %v1039 = vpop.f32.mrf.mxu0
      %1040 = vmatprep.mubr.bf16.mxu0 %v638
      %1041 = vmatmul.mubr.bf16.gmra.mxu0 %v546
      %v1042 = vpop.f32.mrf.mxu0
      %v1043 = vadd.f32 0.0, %v1042
      %v1044 = vpop.f32.mrf.mxu0
      %v1045 = vpop.f32.mrf.mxu0
      %v1046 = vadd.f32 0.0, %v1045
      %v1047 = vpop.f32.mrf.mxu0
      %1048 = vmatprep.mubr.bf16.mxu0 %v650
      %1049 = vmatmul.mubr.bf16.gmra.mxu0 %v548
      %v1050 = vpop.f32.mrf.mxu0
      %v1051 = vadd.f32 0.0, %v1050
      %v1052 = vpop.f32.mrf.mxu0
      %v1053 = vpop.f32.mrf.mxu0
      %v1054 = vadd.f32 0.0, %v1053
      %v1055 = vpop.f32.mrf.mxu0
      %1056 = vmatprep.mubr.bf16.mxu0 %v767
      %1057 = vmatmul.mubr.bf16.gmra.mxu0 %v550
      %v1058 = vpop.f32.mrf.mxu0
      %v1059 = vadd.f32 0.0, %v1058
      %v1060 = vpop.f32.mrf.mxu0
      %v1061 = vpop.f32.mrf.mxu0
      %v1062 = vadd.f32 0.0, %v1061
      %v1063 = vpop.f32.mrf.mxu0
      %1064 = vdwg.mxu0
      %1065 = vmatprep.subr.bf16.mxu0 0
      %1066 = vmatpush1.bf16.msra.mxu0 %v943
      %1067 = vmatprep.subr.bf16.mxu0 0
      %1068 = vmatpush1.bf16.msra.mxu0 %v942
      %1069 = vmatprep.subr.bf16.mxu0 0
      %1070 = vmatpush1.bf16.msra.mxu0 %v941
      %1071 = vmatprep.subr.bf16.mxu0 0
      %1072 = vmatpush1.bf16.msra.mxu0 %v940
      %1073 = vmatprep.subr.bf16.mxu0 0
      %1074 = vmatpush1.bf16.msra.mxu0 %v939
      %1075 = vmatprep.subr.bf16.mxu0 0
      %1076 = vmatpush1.bf16.msra.mxu0 %v938
      %1077 = vmatprep.subr.bf16.mxu0 0
      %1078 = vmatpush1.bf16.msra.mxu0 %v937
      %1079 = vmatprep.subr.bf16.mxu0 0
      %1080 = vmatpush1.bf16.msra.mxu0 %v936
      %1081 = vmatprep.subr.bf16.mxu0 0
      %1082 = vmatpush2.bf16.msra.mxu0 0
      %1083 = vmatprep.subr.bf16.mxu0 0
      %1084 = vmatpush2.bf16.msra.mxu0 0
      %1085 = vmatprep.subr.bf16.mxu0 0
      %1086 = vmatpush2.bf16.msra.mxu0 0
      %1087 = vmatprep.subr.bf16.mxu0 0
      %1088 = vmatpush2.bf16.msra.mxu0 0
      %1089 = vmatprep.subr.bf16.mxu0 0
      %1090 = vmatpush2.bf16.msra.mxu0 0
      %1091 = vmatprep.subr.bf16.mxu0 0
      %1092 = vmatpush2.bf16.msra.mxu0 0
      %1093 = vmatprep.subr.bf16.mxu0 0
      %1094 = vmatpush2.bf16.msra.mxu0 0
      %1095 = vmatprep.subr.bf16.mxu0 0
      %1096 = vmatpush2.bf16.msra.mxu0 0
      %1097 = vmatprep.mubr.bf16.mxu0 0
      %1098 = vmatmul.mubr.bf16.gmra.mxu0 %v681
      %v1099 = vpop.f32.mrf.mxu0
      %v1100 = vadd.f32 %v1003, %v1099
      %v1101 = vpop.f32.mrf.mxu0
      %v1102 = vpop.f32.mrf.mxu0
      %v1103 = vadd.f32 %v1006, %v1102
      %v1104 = vpop.f32.mrf.mxu0
      %1105 = vmatprep.mubr.bf16.mxu0 0
      %1106 = vmatmul.mubr.bf16.gmra.mxu0 %v684
      %v1107 = vpop.f32.mrf.mxu0
      %v1108 = vadd.f32 %v1011, %v1107
      %v1109 = vpop.f32.mrf.mxu0
      %v1110 = vpop.f32.mrf.mxu0
      %v1111 = vadd.f32 %v1014, %v1110
      %v1112 = vpop.f32.mrf.mxu0
      %1113 = vmatprep.mubr.bf16.mxu0 0
      %1114 = vmatmul.mubr.bf16.gmra.mxu0 %v687
      %v1115 = vpop.f32.mrf.mxu0
      %v1116 = vadd.f32 %v1019, %v1115
      %v1117 = vpop.f32.mrf.mxu0
      %v1118 = vpop.f32.mrf.mxu0
      %v1119 = vadd.f32 %v1022, %v1118
      %v1120 = vpop.f32.mrf.mxu0
      %1121 = vmatprep.mubr.bf16.mxu0 0
      %1122 = vmatmul.mubr.bf16.gmra.mxu0 %v690
      %v1123 = vpop.f32.mrf.mxu0
      %v1124 = vadd.f32 %v1027, %v1123
      %v1125 = vpop.f32.mrf.mxu0
      %v1126 = vpop.f32.mrf.mxu0
      %v1127 = vadd.f32 %v1030, %v1126
      %v1128 = vpop.f32.mrf.mxu0
      %1129 = vmatprep.mubr.bf16.mxu0 0
      %1130 = vmatmul.mubr.bf16.gmra.mxu0 %v693
      %v1131 = vpop.f32.mrf.mxu0
      %v1132 = vadd.f32 %v1035, %v1131
      %v1133 = vpop.f32.mrf.mxu0
      %v1134 = vpop.f32.mrf.mxu0
      %v1135 = vadd.f32 %v1038, %v1134
      %v1136 = vpop.f32.mrf.mxu0
      %1137 = vmatprep.mubr.bf16.mxu0 0
      %1138 = vmatmul.mubr.bf16.gmra.mxu0 %v696
      %v1139 = vpop.f32.mrf.mxu0
      %v1140 = vadd.f32 %v1043, %v1139
      %v1141 = vpop.f32.mrf.mxu0
      %v1142 = vpop.f32.mrf.mxu0
      %v1143 = vadd.f32 %v1046, %v1142
      %v1144 = vpop.f32.mrf.mxu0
      %1145 = vmatprep.mubr.bf16.mxu0 0
      %1146 = vmatmul.mubr.bf16.gmra.mxu0 %v699
      %v1147 = vpop.f32.mrf.mxu0
      %v1148 = vadd.f32 %v1051, %v1147
      %v1149 = vpop.f32.mrf.mxu0
      %v1150 = vpop.f32.mrf.mxu0
      %v1151 = vadd.f32 %v1054, %v1150
      %v1152 = vpop.f32.mrf.mxu0
      %1153 = vmatprep.mubr.bf16.mxu0 0
      %1154 = vmatmul.mubr.bf16.gmra.mxu0 %v773
      %v1155 = vpop.f32.mrf.mxu0
      %v1156 = vadd.f32 %v1059, %v1155
      %v1157 = vpop.f32.mrf.mxu0
      %v1158 = vpop.f32.mrf.mxu0
      %v1159 = vadd.f32 %v1062, %v1158
      %v1160 = vpop.f32.mrf.mxu0
      %1161 = vdwg.mxu0
      %v1210 = vunpack.c.l.b16 %v708
      %v1211 = vunpack.c.l.b16 %v709
      %v1212 = vunpack.c.l.b16 %v710
      %v1213 = vunpack.c.l.b16 %v711
      %v1214 = vunpack.c.l.b16 %v712
      %v1215 = vunpack.c.l.b16 %v713
      %v1216 = vunpack.c.l.b16 %v714
      %v1217 = vunpack.c.l.b16 %v715
      %v1218 = vunpack.c.l.b16 %v716
      %v1219 = vunpack.c.l.b16 %v717
      %v1220 = vunpack.c.l.b16 %v718
      %v1221 = vunpack.c.l.b16 %v719
      %v1222 = vunpack.c.l.b16 %v720
      %v1223 = vunpack.c.l.b16 %v721
      %v1224 = vunpack.c.l.b16 %v722
      %v1225 = vunpack.c.l.b16 %v723
      %v1226 = vunpack.c.l.b16 %v724
      %v1227 = vunpack.c.l.b16 %v725
      %v1228 = vunpack.c.l.b16 %v726
      %v1229 = vunpack.c.l.b16 %v727
      %v1230 = vunpack.c.l.b16 %v728
      %v1231 = vunpack.c.l.b16 %v729
      %v1232 = vunpack.c.l.b16 %v730
      %v1233 = vunpack.c.l.b16 %v731
      %v1234 = vunpack.c.l.b16 %v732
      %v1235 = vunpack.c.l.b16 %v733
      %v1236 = vunpack.c.l.b16 %v734
      %v1237 = vunpack.c.l.b16 %v735
      %v1238 = vunpack.c.l.b16 %v736
      %v1239 = vunpack.c.l.b16 %v737
      %v1240 = vunpack.c.l.b16 %v738
      %v1241 = vunpack.c.l.b16 %v739
      %v1242 = vunpack.c.l.b16 %v740
      %v1243 = vunpack.c.l.b16 %v741
      %v1244 = vunpack.c.l.b16 %v742
      %v1245 = vunpack.c.l.b16 %v743
      %v1246 = vunpack.c.l.b16 %v744
      %v1247 = vunpack.c.l.b16 %v745
      %v1248 = vunpack.c.l.b16 %v746
      %v1249 = vunpack.c.l.b16 %v747
      %v1250 = vunpack.c.l.b16 %v748
      %v1251 = vunpack.c.l.b16 %v749
      %v1252 = vunpack.c.l.b16 %v750
      %v1253 = vunpack.c.l.b16 %v751
      %v1254 = vunpack.c.l.b16 %v752
      %v1255 = vunpack.c.l.b16 %v753
      %v1256 = vunpack.c.l.b16 %v754
      %v1257 = vunpack.c.l.b16 %v755
      %v1258 = vpack.c.b16 %v1211, %v1210
      %v1259 = vpack.c.b16 %v1213, %v1212
      %v1260 = vpack.c.b16 %v1215, %v1214
      %v1261 = vpack.c.b16 %v1217, %v1216
      %v1262 = vpack.c.b16 %v1219, %v1218
      %v1263 = vpack.c.b16 %v1221, %v1220
      %v1264 = vpack.c.b16 %v1223, %v1222
      %v1265 = vpack.c.b16 %v1225, %v1224
      %v1266 = vpack.c.b16 %v1227, %v1226
      %v1267 = vpack.c.b16 %v1229, %v1228
      %v1268 = vpack.c.b16 %v1231, %v1230
      %v1269 = vpack.c.b16 %v1233, %v1232
      %v1270 = vpack.c.b16 %v1235, %v1234
      %v1271 = vpack.c.b16 %v1237, %v1236
      %v1272 = vpack.c.b16 %v1239, %v1238
      %v1273 = vpack.c.b16 %v1241, %v1240
      %v1274 = vpack.c.b16 %v1243, %v1242
      %v1275 = vpack.c.b16 %v1245, %v1244
      %v1276 = vpack.c.b16 %v1247, %v1246
      %v1277 = vpack.c.b16 %v1249, %v1248
      %v1278 = vpack.c.b16 %v1251, %v1250
      %v1279 = vpack.c.b16 %v1253, %v1252
      %v1280 = vpack.c.b16 %v1255, %v1254
      %v1281 = vpack.c.b16 %v1257, %v1256
      %1306 = vmatprep.subr.bf16.mxu0 0
      %1307 = vmatpush1.bf16.msra.mxu0 %v1265
      %1308 = vmatprep.subr.bf16.mxu0 0
      %1309 = vmatpush1.bf16.msra.mxu0 %v1264
      %1310 = vmatprep.subr.bf16.mxu0 0
      %1311 = vmatpush1.bf16.msra.mxu0 %v1263
      %1312 = vmatprep.subr.bf16.mxu0 0
      %1313 = vmatpush1.bf16.msra.mxu0 %v1262
      %1314 = vmatprep.subr.bf16.mxu0 0
      %1315 = vmatpush1.bf16.msra.mxu0 %v1261
      %1316 = vmatprep.subr.bf16.mxu0 0
      %1317 = vmatpush1.bf16.msra.mxu0 %v1260
      %1318 = vmatprep.subr.bf16.mxu0 0
      %1319 = vmatpush1.bf16.msra.mxu0 %v1259
      %1320 = vmatprep.subr.bf16.mxu0 0
      %1321 = vmatpush1.bf16.msra.mxu0 %v1258
      %1322 = vmatprep.subr.bf16.mxu0 0
      %1323 = vmatpush2.bf16.msra.mxu0 %v1273
      %1324 = vmatprep.subr.bf16.mxu0 0
      %1325 = vmatpush2.bf16.msra.mxu0 %v1272
      %1326 = vmatprep.subr.bf16.mxu0 0
      %1327 = vmatpush2.bf16.msra.mxu0 %v1271
      %1328 = vmatprep.subr.bf16.mxu0 0
      %1329 = vmatpush2.bf16.msra.mxu0 %v1270
      %1330 = vmatprep.subr.bf16.mxu0 0
      %1331 = vmatpush2.bf16.msra.mxu0 %v1269
      %1332 = vmatprep.subr.bf16.mxu0 0
      %1333 = vmatpush2.bf16.msra.mxu0 %v1268
      %1334 = vmatprep.subr.bf16.mxu0 0
      %1335 = vmatpush2.bf16.msra.mxu0 %v1267
      %1336 = vmatprep.subr.bf16.mxu0 0
      %1337 = vmatpush2.bf16.msra.mxu0 %v1266
      %1338 = vmatprep.mubr.bf16.mxu0 %v566
      %1339 = vmatmul.mubr.bf16.gmra.mxu0 %v534
      %v1340 = vpop.f32.mrf.mxu0
      %v1341 = vadd.f32 %v1100, %v1340
      %v1342 = vpop.f32.mrf.mxu0
      %v1343 = vpop.f32.mrf.mxu0
      %v1344 = vadd.f32 %v1103, %v1343
      %v1345 = vpop.f32.mrf.mxu0
      %1346 = vmatprep.mubr.bf16.mxu0 %v578
      %1347 = vmatmul.mubr.bf16.gmra.mxu0 %v536
      %v1348 = vpop.f32.mrf.mxu0
      %v1349 = vadd.f32 %v1108, %v1348
      %v1350 = vpop.f32.mrf.mxu0
      %v1351 = vpop.f32.mrf.mxu0
      %v1352 = vadd.f32 %v1111, %v1351
      %v1353 = vpop.f32.mrf.mxu0
      %1354 = vmatprep.mubr.bf16.mxu0 %v590
      %1355 = vmatmul.mubr.bf16.gmra.mxu0 %v538
      %v1356 = vpop.f32.mrf.mxu0
      %v1357 = vadd.f32 %v1116, %v1356
      %v1358 = vpop.f32.mrf.mxu0
      %v1359 = vpop.f32.mrf.mxu0
      %v1360 = vadd.f32 %v1119, %v1359
      %v1361 = vpop.f32.mrf.mxu0
      %1362 = vmatprep.mubr.bf16.mxu0 %v602
      %1363 = vmatmul.mubr.bf16.gmra.mxu0 %v540
      %v1364 = vpop.f32.mrf.mxu0
      %v1365 = vadd.f32 %v1124, %v1364
      %v1366 = vpop.f32.mrf.mxu0
      %v1367 = vpop.f32.mrf.mxu0
      %v1368 = vadd.f32 %v1127, %v1367
      %v1369 = vpop.f32.mrf.mxu0
      %1370 = vmatprep.mubr.bf16.mxu0 %v614
      %1371 = vmatmul.mubr.bf16.gmra.mxu0 %v542
      %v1372 = vpop.f32.mrf.mxu0
      %v1373 = vadd.f32 %v1132, %v1372
      %v1374 = vpop.f32.mrf.mxu0
      %v1375 = vpop.f32.mrf.mxu0
      %v1376 = vadd.f32 %v1135, %v1375
      %v1377 = vpop.f32.mrf.mxu0
      %1378 = vmatprep.mubr.bf16.mxu0 %v626
      %1379 = vmatmul.mubr.bf16.gmra.mxu0 %v544
      %v1380 = vpop.f32.mrf.mxu0
      %v1381 = vadd.f32 %v1140, %v1380
      %v1382 = vpop.f32.mrf.mxu0
      %v1383 = vpop.f32.mrf.mxu0
      %v1384 = vadd.f32 %v1143, %v1383
      %v1385 = vpop.f32.mrf.mxu0
      %1386 = vmatprep.mubr.bf16.mxu0 %v638
      %1387 = vmatmul.mubr.bf16.gmra.mxu0 %v546
      %v1388 = vpop.f32.mrf.mxu0
      %v1389 = vadd.f32 %v1148, %v1388
      %v1390 = vpop.f32.mrf.mxu0
      %v1391 = vpop.f32.mrf.mxu0
      %v1392 = vadd.f32 %v1151, %v1391
      %v1393 = vpop.f32.mrf.mxu0
      %1394 = vmatprep.mubr.bf16.mxu0 %v650
      %1395 = vmatmul.mubr.bf16.gmra.mxu0 %v548
      %v1396 = vpop.f32.mrf.mxu0
      %v1397 = vadd.f32 %v1156, %v1396
      %v1398 = vpop.f32.mrf.mxu0
      %v1399 = vpop.f32.mrf.mxu0
      %v1400 = vadd.f32 %v1159, %v1399
      %v1401 = vpop.f32.mrf.mxu0
      %1402 = vdwg.mxu0
      %1403 = vmatprep.subr.bf16.mxu0 0
      %1404 = vmatpush1.bf16.msra.mxu0 %v1281
      %1405 = vmatprep.subr.bf16.mxu0 0
      %1406 = vmatpush1.bf16.msra.mxu0 %v1280
      %1407 = vmatprep.subr.bf16.mxu0 0
      %1408 = vmatpush1.bf16.msra.mxu0 %v1279
      %1409 = vmatprep.subr.bf16.mxu0 0
      %1410 = vmatpush1.bf16.msra.mxu0 %v1278
      %1411 = vmatprep.subr.bf16.mxu0 0
      %1412 = vmatpush1.bf16.msra.mxu0 %v1277
      %1413 = vmatprep.subr.bf16.mxu0 0
      %1414 = vmatpush1.bf16.msra.mxu0 %v1276
      %1415 = vmatprep.subr.bf16.mxu0 0
      %1416 = vmatpush1.bf16.msra.mxu0 %v1275
      %1417 = vmatprep.subr.bf16.mxu0 0
      %1418 = vmatpush1.bf16.msra.mxu0 %v1274
      %1419 = vmatprep.subr.bf16.mxu0 0
      %1420 = vmatpush2.bf16.msra.mxu0 0
      %1421 = vmatprep.subr.bf16.mxu0 0
      %1422 = vmatpush2.bf16.msra.mxu0 0
      %1423 = vmatprep.subr.bf16.mxu0 0
      %1424 = vmatpush2.bf16.msra.mxu0 0
      %1425 = vmatprep.subr.bf16.mxu0 0
      %1426 = vmatpush2.bf16.msra.mxu0 0
      %1427 = vmatprep.subr.bf16.mxu0 0
      %1428 = vmatpush2.bf16.msra.mxu0 0
      %1429 = vmatprep.subr.bf16.mxu0 0
      %1430 = vmatpush2.bf16.msra.mxu0 0
      %1431 = vmatprep.subr.bf16.mxu0 0
      %1432 = vmatpush2.bf16.msra.mxu0 0
      %1433 = vmatprep.subr.bf16.mxu0 0
      %1434 = vmatpush2.bf16.msra.mxu0 0
      %1435 = vmatprep.mubr.bf16.mxu0 0
      %1436 = vmatmul.mubr.bf16.gmra.mxu0 %v678
      %v1437 = vpop.f32.mrf.mxu0
      %v1438 = vadd.f32 %v1341, %v1437
      %v1439 = vpop.f32.mrf.mxu0
      %v1440 = vpop.f32.mrf.mxu0
      %v1441 = vadd.f32 %v1344, %v1440
      %v1442 = vpop.f32.mrf.mxu0
      %1443 = vmatprep.mubr.bf16.mxu0 0
      %1444 = vmatmul.mubr.bf16.gmra.mxu0 %v681
      %v1445 = vpop.f32.mrf.mxu0
      %v1446 = vadd.f32 %v1349, %v1445
      %v1447 = vpop.f32.mrf.mxu0
      %v1448 = vpop.f32.mrf.mxu0
      %v1449 = vadd.f32 %v1352, %v1448
      %v1450 = vpop.f32.mrf.mxu0
      %1451 = vmatprep.mubr.bf16.mxu0 0
      %1452 = vmatmul.mubr.bf16.gmra.mxu0 %v684
      %v1453 = vpop.f32.mrf.mxu0
      %v1454 = vadd.f32 %v1357, %v1453
      %v1455 = vpop.f32.mrf.mxu0
      %v1456 = vpop.f32.mrf.mxu0
      %v1457 = vadd.f32 %v1360, %v1456
      %v1458 = vpop.f32.mrf.mxu0
      %1459 = vmatprep.mubr.bf16.mxu0 0
      %1460 = vmatmul.mubr.bf16.gmra.mxu0 %v687
      %v1461 = vpop.f32.mrf.mxu0
      %v1462 = vadd.f32 %v1365, %v1461
      %v1463 = vpop.f32.mrf.mxu0
      %v1464 = vpop.f32.mrf.mxu0
      %v1465 = vadd.f32 %v1368, %v1464
      %v1466 = vpop.f32.mrf.mxu0
      %1467 = vmatprep.mubr.bf16.mxu0 0
      %1468 = vmatmul.mubr.bf16.gmra.mxu0 %v690
      %v1469 = vpop.f32.mrf.mxu0
      %v1470 = vadd.f32 %v1373, %v1469
      %v1471 = vpop.f32.mrf.mxu0
      %v1472 = vpop.f32.mrf.mxu0
      %v1473 = vadd.f32 %v1376, %v1472
      %v1474 = vpop.f32.mrf.mxu0
      %1475 = vmatprep.mubr.bf16.mxu0 0
      %1476 = vmatmul.mubr.bf16.gmra.mxu0 %v693
      %v1477 = vpop.f32.mrf.mxu0
      %v1478 = vadd.f32 %v1381, %v1477
      %v1479 = vpop.f32.mrf.mxu0
      %v1480 = vpop.f32.mrf.mxu0
      %v1481 = vadd.f32 %v1384, %v1480
      %v1482 = vpop.f32.mrf.mxu0
      %1483 = vmatprep.mubr.bf16.mxu0 0
      %1484 = vmatmul.mubr.bf16.gmra.mxu0 %v696
      %v1485 = vpop.f32.mrf.mxu0
      %v1486 = vadd.f32 %v1389, %v1485
      %v1487 = vpop.f32.mrf.mxu0
      %v1488 = vpop.f32.mrf.mxu0
      %v1489 = vadd.f32 %v1392, %v1488
      %v1490 = vpop.f32.mrf.mxu0
      %1491 = vmatprep.mubr.bf16.mxu0 0
      %1492 = vmatmul.mubr.bf16.gmra.mxu0 %v699
      %v1493 = vpop.f32.mrf.mxu0
      %v1494 = vadd.f32 %v1397, %v1493
      %v1495 = vpop.f32.mrf.mxu0
      %v1496 = vpop.f32.mrf.mxu0
      %v1497 = vadd.f32 %v1400, %v1496
      %v1498 = vpop.f32.mrf.mxu0
      %1499 = vdwg.mxu0
      %v1501 = vshrl.u32 %v552, 16
      %v1503 = vshll.u32 %v552, 16
      %v1505 = vrot.slane %v1503, 1
      %v1506 = vor.u32 %v1501, %v1505
      %v1508 = vshll.u32 %v553, 16
      %v1510 = vrot.slane %v1508, 1
      %v1511 = vsel %vm554, %v1506, %v1510
      %v1515 = vrot.slane %v552, 1
      %v1516 = vrot.slane %v553, 1
      %v1517 = vsel %vm675, %v1515, %v1516
      %s1519 = scalar_lea.vmem %s3, 384
      %v1520 = vld [vmem:[%s1519] sm:$0xf]
      %v1521 = vld [vmem:[%s1519 + $0x4] sm:$0xf]
      %v1522 = vld [vmem:[%s1519 + $0x8] sm:$0xf]
      %v1523 = vld [vmem:[%s1519 + $0xc] sm:$0xf]
      %v1524 = vld [vmem:[%s1519 + $0x10] sm:$0xf]
      %v1525 = vld [vmem:[%s1519 + $0x14] sm:$0xf]
      %v1526 = vld [vmem:[%s1519 + $0x18] sm:$0xf]
      %v1527 = vld [vmem:[%s1519 + $0x1c] sm:$0xf]
      %v1528 = vld [vmem:[%s1519 + $0x20] sm:$0xf]
      %v1529 = vld [vmem:[%s1519 + $0x24] sm:$0xf]
      %v1530 = vld [vmem:[%s1519 + $0x28] sm:$0xf]
      %v1531 = vld [vmem:[%s1519 + $0x2c] sm:$0xf]
      %v1532 = vld [vmem:[%s1519 + $0x30] sm:$0xf]
      %v1533 = vld [vmem:[%s1519 + $0x34] sm:$0xf]
      %v1534 = vld [vmem:[%s1519 + $0x38] sm:$0xf]
      %v1535 = vld [vmem:[%s1519 + $0x3c] sm:$0xf]
      %v1536 = vld [vmem:[%s1519 + $0x40] sm:$0xf]
      %v1537 = vld [vmem:[%s1519 + $0x44] sm:$0xf]
      %v1538 = vld [vmem:[%s1519 + $0x48] sm:$0xf]
      %v1539 = vld [vmem:[%s1519 + $0x4c] sm:$0xf]
      %v1540 = vld [vmem:[%s1519 + $0x50] sm:$0xf]
      %v1541 = vld [vmem:[%s1519 + $0x54] sm:$0xf]
      %v1542 = vld [vmem:[%s1519 + $0x58] sm:$0xf]
      %v1543 = vld [vmem:[%s1519 + $0x5c] sm:$0xf]
      %v1544 = vld [vmem:[%s1519 + $0x60] sm:$0xf]
      %v1545 = vld [vmem:[%s1519 + $0x64] sm:$0xf]
      %v1546 = vld [vmem:[%s1519 + $0x68] sm:$0xf]
      %v1547 = vld [vmem:[%s1519 + $0x6c] sm:$0xf]
      %v1548 = vld [vmem:[%s1519 + $0x70] sm:$0xf]
      %v1549 = vld [vmem:[%s1519 + $0x74] sm:$0xf]
      %v1550 = vld [vmem:[%s1519 + $0x78] sm:$0xf]
      %v1551 = vld [vmem:[%s1519 + $0x7c] sm:$0xf]
      %v1552 = vld [vmem:[%s1519 + $0x80] sm:$0xf]
      %v1553 = vld [vmem:[%s1519 + $0x84] sm:$0xf]
      %v1554 = vld [vmem:[%s1519 + $0x88] sm:$0xf]
      %v1555 = vld [vmem:[%s1519 + $0x8c] sm:$0xf]
      %v1556 = vld [vmem:[%s1519 + $0x90] sm:$0xf]
      %v1557 = vld [vmem:[%s1519 + $0x94] sm:$0xf]
      %v1558 = vld [vmem:[%s1519 + $0x98] sm:$0xf]
      %v1559 = vld [vmem:[%s1519 + $0x9c] sm:$0xf]
      %v1560 = vld [vmem:[%s1519 + $0xa0] sm:$0xf]
      %v1561 = vld [vmem:[%s1519 + $0xa4] sm:$0xf]
      %v1562 = vld [vmem:[%s1519 + $0xa8] sm:$0xf]
      %v1563 = vld [vmem:[%s1519 + $0xac] sm:$0xf]
      %v1564 = vld [vmem:[%s1519 + $0xb0] sm:$0xf]
      %v1565 = vld [vmem:[%s1519 + $0xb4] sm:$0xf]
      %v1566 = vld [vmem:[%s1519 + $0xb8] sm:$0xf]
      %v1567 = vld [vmem:[%s1519 + $0xbc] sm:$0xf]
      %v1616 = vunpack.c.l.b16 %v1520
      %v1617 = vunpack.c.l.b16 %v1521
      %v1618 = vunpack.c.l.b16 %v1522
      %v1619 = vunpack.c.l.b16 %v1523
      %v1620 = vunpack.c.l.b16 %v1524
      %v1621 = vunpack.c.l.b16 %v1525
      %v1622 = vunpack.c.l.b16 %v1526
      %v1623 = vunpack.c.l.b16 %v1527
      %v1624 = vunpack.c.l.b16 %v1528
      %v1625 = vunpack.c.l.b16 %v1529
      %v1626 = vunpack.c.l.b16 %v1530
      %v1627 = vunpack.c.l.b16 %v1531
      %v1628 = vunpack.c.l.b16 %v1532
      %v1629 = vunpack.c.l.b16 %v1533
      %v1630 = vunpack.c.l.b16 %v1534
      %v1631 = vunpack.c.l.b16 %v1535
      %v1632 = vunpack.c.l.b16 %v1536
      %v1633 = vunpack.c.l.b16 %v1537
      %v1634 = vunpack.c.l.b16 %v1538
      %v1635 = vunpack.c.l.b16 %v1539
      %v1636 = vunpack.c.l.b16 %v1540
      %v1637 = vunpack.c.l.b16 %v1541
      %v1638 = vunpack.c.l.b16 %v1542
      %v1639 = vunpack.c.l.b16 %v1543
      %v1640 = vunpack.c.l.b16 %v1544
      %v1641 = vunpack.c.l.b16 %v1545
      %v1642 = vunpack.c.l.b16 %v1546
      %v1643 = vunpack.c.l.b16 %v1547
      %v1644 = vunpack.c.l.b16 %v1548
      %v1645 = vunpack.c.l.b16 %v1549
      %v1646 = vunpack.c.l.b16 %v1550
      %v1647 = vunpack.c.l.b16 %v1551
      %v1648 = vunpack.c.l.b16 %v1552
      %v1649 = vunpack.c.l.b16 %v1553
      %v1650 = vunpack.c.l.b16 %v1554
      %v1651 = vunpack.c.l.b16 %v1555
      %v1652 = vunpack.c.l.b16 %v1556
      %v1653 = vunpack.c.l.b16 %v1557
      %v1654 = vunpack.c.l.b16 %v1558
      %v1655 = vunpack.c.l.b16 %v1559
      %v1656 = vunpack.c.l.b16 %v1560
      %v1657 = vunpack.c.l.b16 %v1561
      %v1658 = vunpack.c.l.b16 %v1562
      %v1659 = vunpack.c.l.b16 %v1563
      %v1660 = vunpack.c.l.b16 %v1564
      %v1661 = vunpack.c.l.b16 %v1565
      %v1662 = vunpack.c.l.b16 %v1566
      %v1663 = vunpack.c.l.b16 %v1567
      %v1664 = vpack.c.b16 %v1617, %v1616
      %v1665 = vpack.c.b16 %v1619, %v1618
      %v1666 = vpack.c.b16 %v1621, %v1620
      %v1667 = vpack.c.b16 %v1623, %v1622
      %v1668 = vpack.c.b16 %v1625, %v1624
      %v1669 = vpack.c.b16 %v1627, %v1626
      %v1670 = vpack.c.b16 %v1629, %v1628
      %v1671 = vpack.c.b16 %v1631, %v1630
      %v1672 = vpack.c.b16 %v1633, %v1632
      %v1673 = vpack.c.b16 %v1635, %v1634
      %v1674 = vpack.c.b16 %v1637, %v1636
      %v1675 = vpack.c.b16 %v1639, %v1638
      %v1676 = vpack.c.b16 %v1641, %v1640
      %v1677 = vpack.c.b16 %v1643, %v1642
      %v1678 = vpack.c.b16 %v1645, %v1644
      %v1679 = vpack.c.b16 %v1647, %v1646
      %v1680 = vpack.c.b16 %v1649, %v1648
      %v1681 = vpack.c.b16 %v1651, %v1650
      %v1682 = vpack.c.b16 %v1653, %v1652
      %v1683 = vpack.c.b16 %v1655, %v1654
      %v1684 = vpack.c.b16 %v1657, %v1656
      %v1685 = vpack.c.b16 %v1659, %v1658
      %v1686 = vpack.c.b16 %v1661, %v1660
      %v1687 = vpack.c.b16 %v1663, %v1662
      %1712 = vmatprep.subr.bf16.mxu0 0
      %1713 = vmatpush1.bf16.msra.mxu0 %v1671
      %1714 = vmatprep.subr.bf16.mxu0 0
      %1715 = vmatpush1.bf16.msra.mxu0 %v1670
      %1716 = vmatprep.subr.bf16.mxu0 0
      %1717 = vmatpush1.bf16.msra.mxu0 %v1669
      %1718 = vmatprep.subr.bf16.mxu0 0
      %1719 = vmatpush1.bf16.msra.mxu0 %v1668
      %1720 = vmatprep.subr.bf16.mxu0 0
      %1721 = vmatpush1.bf16.msra.mxu0 %v1667
      %1722 = vmatprep.subr.bf16.mxu0 0
      %1723 = vmatpush1.bf16.msra.mxu0 %v1666
      %1724 = vmatprep.subr.bf16.mxu0 0
      %1725 = vmatpush1.bf16.msra.mxu0 %v1665
      %1726 = vmatprep.subr.bf16.mxu0 0
      %1727 = vmatpush1.bf16.msra.mxu0 %v1664
      %1728 = vmatprep.subr.bf16.mxu0 0
      %1729 = vmatpush2.bf16.msra.mxu0 %v1679
      %1730 = vmatprep.subr.bf16.mxu0 0
      %1731 = vmatpush2.bf16.msra.mxu0 %v1678
      %1732 = vmatprep.subr.bf16.mxu0 0
      %1733 = vmatpush2.bf16.msra.mxu0 %v1677
      %1734 = vmatprep.subr.bf16.mxu0 0
      %1735 = vmatpush2.bf16.msra.mxu0 %v1676
      %1736 = vmatprep.subr.bf16.mxu0 0
      %1737 = vmatpush2.bf16.msra.mxu0 %v1675
      %1738 = vmatprep.subr.bf16.mxu0 0
      %1739 = vmatpush2.bf16.msra.mxu0 %v1674
      %1740 = vmatprep.subr.bf16.mxu0 0
      %1741 = vmatpush2.bf16.msra.mxu0 %v1673
      %1742 = vmatprep.subr.bf16.mxu0 0
      %1743 = vmatpush2.bf16.msra.mxu0 %v1672
      %1744 = vmatprep.mubr.bf16.mxu0 %v590
      %1745 = vmatmul.mubr.bf16.gmra.mxu0 %v538
      %v1746 = vpop.f32.mrf.mxu0
      %v1747 = vadd.f32 0.0, %v1746
      %v1748 = vpop.f32.mrf.mxu0
      %v1749 = vpop.f32.mrf.mxu0
      %v1750 = vadd.f32 0.0, %v1749
      %v1751 = vpop.f32.mrf.mxu0
      %1752 = vmatprep.mubr.bf16.mxu0 %v602
      %1753 = vmatmul.mubr.bf16.gmra.mxu0 %v540
      %v1754 = vpop.f32.mrf.mxu0
      %v1755 = vadd.f32 0.0, %v1754
      %v1756 = vpop.f32.mrf.mxu0
      %v1757 = vpop.f32.mrf.mxu0
      %v1758 = vadd.f32 0.0, %v1757
      %v1759 = vpop.f32.mrf.mxu0
      %1760 = vmatprep.mubr.bf16.mxu0 %v614
      %1761 = vmatmul.mubr.bf16.gmra.mxu0 %v542
      %v1762 = vpop.f32.mrf.mxu0
      %v1763 = vadd.f32 0.0, %v1762
      %v1764 = vpop.f32.mrf.mxu0
      %v1765 = vpop.f32.mrf.mxu0
      %v1766 = vadd.f32 0.0, %v1765
      %v1767 = vpop.f32.mrf.mxu0
      %1768 = vmatprep.mubr.bf16.mxu0 %v626
      %1769 = vmatmul.mubr.bf16.gmra.mxu0 %v544
      %v1770 = vpop.f32.mrf.mxu0
      %v1771 = vadd.f32 0.0, %v1770
      %v1772 = vpop.f32.mrf.mxu0
      %v1773 = vpop.f32.mrf.mxu0
      %v1774 = vadd.f32 0.0, %v1773
      %v1775 = vpop.f32.mrf.mxu0
      %1776 = vmatprep.mubr.bf16.mxu0 %v638
      %1777 = vmatmul.mubr.bf16.gmra.mxu0 %v546
      %v1778 = vpop.f32.mrf.mxu0
      %v1779 = vadd.f32 0.0, %v1778
      %v1780 = vpop.f32.mrf.mxu0
      %v1781 = vpop.f32.mrf.mxu0
      %v1782 = vadd.f32 0.0, %v1781
      %v1783 = vpop.f32.mrf.mxu0
      %1784 = vmatprep.mubr.bf16.mxu0 %v650
      %1785 = vmatmul.mubr.bf16.gmra.mxu0 %v548
      %v1786 = vpop.f32.mrf.mxu0
      %v1787 = vadd.f32 0.0, %v1786
      %v1788 = vpop.f32.mrf.mxu0
      %v1789 = vpop.f32.mrf.mxu0
      %v1790 = vadd.f32 0.0, %v1789
      %v1791 = vpop.f32.mrf.mxu0
      %1792 = vmatprep.mubr.bf16.mxu0 %v767
      %1793 = vmatmul.mubr.bf16.gmra.mxu0 %v550
      %v1794 = vpop.f32.mrf.mxu0
      %v1795 = vadd.f32 0.0, %v1794
      %v1796 = vpop.f32.mrf.mxu0
      %v1797 = vpop.f32.mrf.mxu0
      %v1798 = vadd.f32 0.0, %v1797
      %v1799 = vpop.f32.mrf.mxu0
      %1800 = vmatprep.mubr.bf16.mxu0 %v1511
      %1801 = vmatmul.mubr.bf16.gmra.mxu0 %v552
      %v1802 = vpop.f32.mrf.mxu0
      %v1803 = vadd.f32 0.0, %v1802
      %v1804 = vpop.f32.mrf.mxu0
      %v1805 = vpop.f32.mrf.mxu0
      %v1806 = vadd.f32 0.0, %v1805
      %v1807 = vpop.f32.mrf.mxu0
      %1808 = vdwg.mxu0
      %1809 = vmatprep.subr.bf16.mxu0 0
      %1810 = vmatpush1.bf16.msra.mxu0 %v1687
      %1811 = vmatprep.subr.bf16.mxu0 0
      %1812 = vmatpush1.bf16.msra.mxu0 %v1686
      %1813 = vmatprep.subr.bf16.mxu0 0
      %1814 = vmatpush1.bf16.msra.mxu0 %v1685
      %1815 = vmatprep.subr.bf16.mxu0 0
      %1816 = vmatpush1.bf16.msra.mxu0 %v1684
      %1817 = vmatprep.subr.bf16.mxu0 0
      %1818 = vmatpush1.bf16.msra.mxu0 %v1683
      %1819 = vmatprep.subr.bf16.mxu0 0
      %1820 = vmatpush1.bf16.msra.mxu0 %v1682
      %1821 = vmatprep.subr.bf16.mxu0 0
      %1822 = vmatpush1.bf16.msra.mxu0 %v1681
      %1823 = vmatprep.subr.bf16.mxu0 0
      %1824 = vmatpush1.bf16.msra.mxu0 %v1680
      %1825 = vmatprep.subr.bf16.mxu0 0
      %1826 = vmatpush2.bf16.msra.mxu0 0
      %1827 = vmatprep.subr.bf16.mxu0 0
      %1828 = vmatpush2.bf16.msra.mxu0 0
      %1829 = vmatprep.subr.bf16.mxu0 0
      %1830 = vmatpush2.bf16.msra.mxu0 0
      %1831 = vmatprep.subr.bf16.mxu0 0
      %1832 = vmatpush2.bf16.msra.mxu0 0
      %1833 = vmatprep.subr.bf16.mxu0 0
      %1834 = vmatpush2.bf16.msra.mxu0 0
      %1835 = vmatprep.subr.bf16.mxu0 0
      %1836 = vmatpush2.bf16.msra.mxu0 0
      %1837 = vmatprep.subr.bf16.mxu0 0
      %1838 = vmatpush2.bf16.msra.mxu0 0
      %1839 = vmatprep.subr.bf16.mxu0 0
      %1840 = vmatpush2.bf16.msra.mxu0 0
      %1841 = vmatprep.mubr.bf16.mxu0 0
      %1842 = vmatmul.mubr.bf16.gmra.mxu0 %v684
      %v1843 = vpop.f32.mrf.mxu0
      %v1844 = vadd.f32 %v1747, %v1843
      %v1845 = vpop.f32.mrf.mxu0
      %v1846 = vpop.f32.mrf.mxu0
      %v1847 = vadd.f32 %v1750, %v1846
      %v1848 = vpop.f32.mrf.mxu0
      %1849 = vmatprep.mubr.bf16.mxu0 0
      %1850 = vmatmul.mubr.bf16.gmra.mxu0 %v687
      %v1851 = vpop.f32.mrf.mxu0
      %v1852 = vadd.f32 %v1755, %v1851
      %v1853 = vpop.f32.mrf.mxu0
      %v1854 = vpop.f32.mrf.mxu0
      %v1855 = vadd.f32 %v1758, %v1854
      %v1856 = vpop.f32.mrf.mxu0
      %1857 = vmatprep.mubr.bf16.mxu0 0
      %1858 = vmatmul.mubr.bf16.gmra.mxu0 %v690
      %v1859 = vpop.f32.mrf.mxu0
      %v1860 = vadd.f32 %v1763, %v1859
      %v1861 = vpop.f32.mrf.mxu0
      %v1862 = vpop.f32.mrf.mxu0
      %v1863 = vadd.f32 %v1766, %v1862
      %v1864 = vpop.f32.mrf.mxu0
      %1865 = vmatprep.mubr.bf16.mxu0 0
      %1866 = vmatmul.mubr.bf16.gmra.mxu0 %v693
      %v1867 = vpop.f32.mrf.mxu0
      %v1868 = vadd.f32 %v1771, %v1867
      %v1869 = vpop.f32.mrf.mxu0
      %v1870 = vpop.f32.mrf.mxu0
      %v1871 = vadd.f32 %v1774, %v1870
      %v1872 = vpop.f32.mrf.mxu0
      %1873 = vmatprep.mubr.bf16.mxu0 0
      %1874 = vmatmul.mubr.bf16.gmra.mxu0 %v696
      %v1875 = vpop.f32.mrf.mxu0
      %v1876 = vadd.f32 %v1779, %v1875
      %v1877 = vpop.f32.mrf.mxu0
      %v1878 = vpop.f32.mrf.mxu0
      %v1879 = vadd.f32 %v1782, %v1878
      %v1880 = vpop.f32.mrf.mxu0
      %1881 = vmatprep.mubr.bf16.mxu0 0
      %1882 = vmatmul.mubr.bf16.gmra.mxu0 %v699
      %v1883 = vpop.f32.mrf.mxu0
      %v1884 = vadd.f32 %v1787, %v1883
      %v1885 = vpop.f32.mrf.mxu0
      %v1886 = vpop.f32.mrf.mxu0
      %v1887 = vadd.f32 %v1790, %v1886
      %v1888 = vpop.f32.mrf.mxu0
      %1889 = vmatprep.mubr.bf16.mxu0 0
      %1890 = vmatmul.mubr.bf16.gmra.mxu0 %v773
      %v1891 = vpop.f32.mrf.mxu0
      %v1892 = vadd.f32 %v1795, %v1891
      %v1893 = vpop.f32.mrf.mxu0
      %v1894 = vpop.f32.mrf.mxu0
      %v1895 = vadd.f32 %v1798, %v1894
      %v1896 = vpop.f32.mrf.mxu0
      %1897 = vmatprep.mubr.bf16.mxu0 0
      %1898 = vmatmul.mubr.bf16.gmra.mxu0 %v1517
      %v1899 = vpop.f32.mrf.mxu0
      %v1900 = vadd.f32 %v1803, %v1899
      %v1901 = vpop.f32.mrf.mxu0
      %v1902 = vpop.f32.mrf.mxu0
      %v1903 = vadd.f32 %v1806, %v1902
      %v1904 = vpop.f32.mrf.mxu0
      %1905 = vdwg.mxu0
      %v1906 = vadd.f32 %v1438, %v1844
      %v1907 = vadd.f32 %v1441, %v1847
      %v1908 = vadd.f32 %v1446, %v1852
      %v1909 = vadd.f32 %v1449, %v1855
      %v1910 = vadd.f32 %v1454, %v1860
      %v1911 = vadd.f32 %v1457, %v1863
      %v1912 = vadd.f32 %v1462, %v1868
      %v1913 = vadd.f32 %v1465, %v1871
      %v1914 = vadd.f32 %v1470, %v1876
      %v1915 = vadd.f32 %v1473, %v1879
      %v1916 = vadd.f32 %v1478, %v1884
      %v1917 = vadd.f32 %v1481, %v1887
      %v1918 = vadd.f32 %v1486, %v1892
      %v1919 = vadd.f32 %v1489, %v1895
      %v1920 = vadd.f32 %v1494, %v1900
      %v1921 = vadd.f32 %v1497, %v1903
      %v1922 = vadd.f32 %v1906, %v1907
      %v1923 = vadd.f32 %v1922, %v1908
      %v1924 = vadd.f32 %v1923, %v1909
      %v1925 = vadd.f32 %v1924, %v1910
      %v1926 = vadd.f32 %v1925, %v1911
      %v1927 = vadd.f32 %v1926, %v1912
      %v1928 = vadd.f32 %v1927, %v1913
      %v1929 = vadd.f32 %v1928, %v1914
      %v1930 = vadd.f32 %v1929, %v1915
      %v1931 = vadd.f32 %v1930, %v1916
      %v1932 = vadd.f32 %v1931, %v1917
      %v1933 = vadd.f32 %v1932, %v1918
      %v1934 = vadd.f32 %v1933, %v1919
      %v1935 = vadd.f32 %v1934, %v1920
      %v1936 = vadd.f32 %v1935, %v1921
      %v1937 = vrot.slane %v1936, 4
      %v1938 = vadd.f32 %v1936, %v1937
      %v1939 = vrot.slane %v1938, 2
      %v1940 = vadd.f32 %v1938, %v1939
      %v1941 = vrot.slane %v1940, 1
      %v1942 = vadd.f32 %v1940, %v1941
      %v1943 = vrcp.pop 128.0
      %v1944 = vmul.f32 %v1942, %v1943
      %v1945 = vsub.f32 %v1906, %v1944
      %v1946 = vsub.f32 %v1907, %v1944
      %v1947 = vsub.f32 %v1908, %v1944
      %v1948 = vsub.f32 %v1909, %v1944
      %v1949 = vsub.f32 %v1910, %v1944
      %v1950 = vsub.f32 %v1911, %v1944
      %v1951 = vsub.f32 %v1912, %v1944
      %v1952 = vsub.f32 %v1913, %v1944
      %v1953 = vsub.f32 %v1914, %v1944
      %v1954 = vsub.f32 %v1915, %v1944
      %v1955 = vsub.f32 %v1916, %v1944
      %v1956 = vsub.f32 %v1917, %v1944
      %v1957 = vsub.f32 %v1918, %v1944
      %v1958 = vsub.f32 %v1919, %v1944
      %v1959 = vsub.f32 %v1920, %v1944
      %v1960 = vsub.f32 %v1921, %v1944
      %v1961 = vmul.f32 %v1945, %v1945
      %v1962 = vmul.f32 %v1946, %v1946
      %v1963 = vmul.f32 %v1947, %v1947
      %v1964 = vmul.f32 %v1948, %v1948
      %v1965 = vmul.f32 %v1949, %v1949
      %v1966 = vmul.f32 %v1950, %v1950
      %v1967 = vmul.f32 %v1951, %v1951
      %v1968 = vmul.f32 %v1952, %v1952
      %v1969 = vmul.f32 %v1953, %v1953
      %v1970 = vmul.f32 %v1954, %v1954
      %v1971 = vmul.f32 %v1955, %v1955
      %v1972 = vmul.f32 %v1956, %v1956
      %v1973 = vmul.f32 %v1957, %v1957
      %v1974 = vmul.f32 %v1958, %v1958
      %v1975 = vmul.f32 %v1959, %v1959
      %v1976 = vmul.f32 %v1960, %v1960
      %v1977 = vadd.f32 %v1961, %v1962
      %v1978 = vadd.f32 %v1977, %v1963
      %v1979 = vadd.f32 %v1978, %v1964
      %v1980 = vadd.f32 %v1979, %v1965
      %v1981 = vadd.f32 %v1980, %v1966
      %v1982 = vadd.f32 %v1981, %v1967
      %v1983 = vadd.f32 %v1982, %v1968
      %v1984 = vadd.f32 %v1983, %v1969
      %v1985 = vadd.f32 %v1984, %v1970
      %v1986 = vadd.f32 %v1985, %v1971
      %v1987 = vadd.f32 %v1986, %v1972
      %v1988 = vadd.f32 %v1987, %v1973
      %v1989 = vadd.f32 %v1988, %v1974
      %v1990 = vadd.f32 %v1989, %v1975
      %v1991 = vadd.f32 %v1990, %v1976
      %v1992 = vrot.slane %v1991, 4
      %v1993 = vadd.f32 %v1991, %v1992
      %v1994 = vrot.slane %v1993, 2
      %v1995 = vadd.f32 %v1993, %v1994
      %v1996 = vrot.slane %v1995, 1
      %v1997 = vadd.f32 %v1995, %v1996
      %vm1998 = vcmask 1040384
      %v1999 = vsel %vm1998, %v1942, %v1997
      %2000 = vst [vmem:[%s284] sm:$0x3] %v1999
      %v2001 = vpack.c.bf16 %v1907, %v1906
      %v2002 = vpack.c.bf16 %v1909, %v1908
      %v2003 = vpack.c.bf16 %v1911, %v1910
      %v2004 = vpack.c.bf16 %v1913, %v1912
      %v2005 = vpack.c.bf16 %v1915, %v1914
      %v2006 = vpack.c.bf16 %v1917, %v1916
      %v2007 = vpack.c.bf16 %v1919, %v1918
      %v2008 = vpack.c.bf16 %v1921, %v1920
      %v2017 = vunpack.c.l.b16 %v2001
      %v2018 = vunpack.c.h.b16 %v2001
      %v2019 = vunpack.c.l.b16 %v2002
      %v2020 = vunpack.c.h.b16 %v2002
      %v2021 = vunpack.c.l.b16 %v2003
      %v2022 = vunpack.c.h.b16 %v2003
      %v2023 = vunpack.c.l.b16 %v2004
      %v2024 = vunpack.c.h.b16 %v2004
      %v2025 = vunpack.c.l.b16 %v2005
      %v2026 = vunpack.c.h.b16 %v2005
      %v2027 = vunpack.c.l.b16 %v2006
      %v2028 = vunpack.c.h.b16 %v2006
      %v2029 = vunpack.c.l.b16 %v2007
      %v2030 = vunpack.c.h.b16 %v2007
      %v2031 = vunpack.c.l.b16 %v2008
      %v2032 = vunpack.c.h.b16 %v2008
      %v2033 = vpack.c.b16 %v2017, %v2017
      %v2034 = vpack.c.b16 %v2018, %v2018
      %v2035 = vpack.c.b16 %v2019, %v2019
      %v2036 = vpack.c.b16 %v2020, %v2020
      %v2037 = vpack.c.b16 %v2021, %v2021
      %v2038 = vpack.c.b16 %v2022, %v2022
      %v2039 = vpack.c.b16 %v2023, %v2023
      %v2040 = vpack.c.b16 %v2024, %v2024
      %v2041 = vpack.c.b16 %v2025, %v2025
      %v2042 = vpack.c.b16 %v2026, %v2026
      %v2043 = vpack.c.b16 %v2027, %v2027
      %v2044 = vpack.c.b16 %v2028, %v2028
      %v2045 = vpack.c.b16 %v2029, %v2029
      %v2046 = vpack.c.b16 %v2030, %v2030
      %v2047 = vpack.c.b16 %v2031, %v2031
      %v2048 = vpack.c.b16 %v2032, %v2032
      %2065 = vst [vmem:[%s275] sm:$0xf] %v2033
      %2066 = vst [vmem:[%s275 + $0x4] sm:$0xf] %v2034
      %2067 = vst [vmem:[%s275 + $0x8] sm:$0xf] %v2035
      %2068 = vst [vmem:[%s275 + $0xc] sm:$0xf] %v2036
      %2069 = vst [vmem:[%s275 + $0x10] sm:$0xf] %v2037
      %2070 = vst [vmem:[%s275 + $0x14] sm:$0xf] %v2038
      %2071 = vst [vmem:[%s275 + $0x18] sm:$0xf] %v2039
      %2072 = vst [vmem:[%s275 + $0x1c] sm:$0xf] %v2040
      %2073 = vst [vmem:[%s275 + $0x20] sm:$0xf] %v2041
      %2074 = vst [vmem:[%s275 + $0x24] sm:$0xf] %v2042
      %2075 = vst [vmem:[%s275 + $0x28] sm:$0xf] %v2043
      %2076 = vst [vmem:[%s275 + $0x2c] sm:$0xf] %v2044
      %2077 = vst [vmem:[%s275 + $0x30] sm:$0xf] %v2045
      %2078 = vst [vmem:[%s275 + $0x34] sm:$0xf] %v2046
      %2079 = vst [vmem:[%s275 + $0x38] sm:$0xf] %v2047
      %2080 = vst [vmem:[%s275 + $0x3c] sm:$0xf] %v2048
      %s2081 = smul.u32 8, %s22
      %p2082 = scmp.lt.s32.totalorder %s21, 1
      %s2083 = scalar_select %p2082, %s21, 1
      %p2084 = scmp.lt.s32.totalorder %s2081, 15
      %s2085 = scalar_select %p2084, %s2081, 15
      %s2086 = smul.addr %s2085, 2
      %s2087 = smul.addr %s2083, 32
      %s2088 = sadd.s32 %s2086, %s2087
      %s2089 = smul.addr %s2088, 4
      %s2090 = scalar_lea.vmem %s4, %s2089
      %p2091 = scmp.lt.s32.totalorder %s21, 1
      %s2092 = scalar_select %p2091, %s21, 1
      %p2093 = scmp.lt.s32.totalorder %s22, 1
      %s2094 = scalar_select %p2093, %s22, 1
      %s2095 = smul.addr %s2092, 2
      %s2096 = sadd.s32 %s2094, %s2095
      %s2097 = smul.addr %s2096, 2
      %s2098 = scalar_lea.vmem %s5, %s2097
      // Predicated region
      $region37: #{double_conv.3} parent=35 // pred_check
        %p2099 = pneg %p140
      $region38: #{double_conv.3} parent=35 // pred_check_branch
        %2101 = sbr.rel (%p2099) target = $region40
      $region39: #{double_conv.3} parent=35 // pred_region
        %s2102 = smul.u32 8, %s22
      $region40: #{double_conv.3} parent=35 // pred_fallthru
        _
      // Predicated region
      $region41: #{double_conv.3} parent=35 // pred_check
        %p2103 = pneg %p168
      $region42: #{double_conv.3} parent=35 // pred_check_branch
        %2105 = sbr.rel (%p2103) target = $region44
      $region43: #{double_conv.3} parent=35 // pred_region
        _
      $region44: #{double_conv.3} parent=35 // pred_fallthru
        _
    $region36: #{double_conv.3} parent=5 // pred_fallthru
      _
    %p2106 = scmp.le.s32.totalorder 2, %s12
    // Predicated region
    $region45: #{double_conv.3} parent=5 // pred_check
      %p2107 = pneg %p2106
    $region46: #{double_conv.3} parent=5 // pred_check_branch
      %2109 = sbr.rel (%p2107) target = $region48
    $region47: #{double_conv.3} parent=5 // pred_region
      %s2110 = ssub.s32 %s12, 2
      // Predicated region
      $region49: #{double_conv.3} parent=47 // pred_check
        %p2111 = pneg %p146
      $region50: #{double_conv.3} parent=47 // pred_check_branch
        %2113 = sbr.rel (%p2111) target = $region52
      $region51: #{double_conv.3} parent=47 // pred_region
        %s2114 = smul.u32 8, %s24
        %p2115 = scmp.lt.s32.totalorder %s23, 1
        %s2116 = scalar_select %p2115, %s23, 1
        %p2117 = scmp.lt.s32.totalorder %s2114, 15
        %s2118 = scalar_select %p2117, %s2114, 15
        %s2119 = smul.addr %s2118, 2
        %s2120 = smul.addr %s2116, 32
        %s2121 = sadd.s32 %s2119, %s2120
        %s2122 = smul.addr %s2121, 4
        %s2123 = scalar_lea.vmem %s4, %s2122
      $region52: #{double_conv.3} parent=47 // pred_fallthru
        _
      // Predicated region
      $region53: #{double_conv.3} parent=47 // pred_check
        %p2124 = pneg %p174
      $region54: #{double_conv.3} parent=47 // pred_check_branch
        %2126 = sbr.rel (%p2124) target = $region56
      $region55: #{double_conv.3} parent=47 // pred_region
        %p2127 = scmp.lt.s32.totalorder %s23, 1
        %s2128 = scalar_select %p2127, %s23, 1
        %p2129 = scmp.lt.s32.totalorder %s24, 1
        %s2130 = scalar_select %p2129, %s24, 1
        %s2131 = smul.addr %s2128, 2
        %s2132 = sadd.s32 %s2130, %s2131
        %s2133 = smul.addr %s2132, 2
        %s2134 = scalar_lea.vmem %s5, %s2133
      $region56: #{double_conv.3} parent=47 // pred_fallthru
        _
    $region48: #{double_conv.3} parent=5 // pred_fallthru
      _
  $region6: #{double_conv.3} parent=0 // loop_footer
    %s16 = sadd.s32 1, %s12
  $region7: #{double_conv.3} parent=0 // loop_footer_branch
    %11 = sbr.rel target = $region3
  $region8: #{double_conv.3} parent=0 // loop_exit
    _

</llo_original>
